<compile_context>
chip_gen: v5e
topology: v5e:2x2
jax: 0.10.0
libtpu: 0.0.40
codegen_flags: <defaults>
</compile_context>

<pallas_src>
import math

import jax
import jax.numpy as jnp
from jax import lax
from jax.experimental import pallas as pl
from jax.experimental.pallas import tpu as pltpu

HIDDEN = 32          # hidden_size / mem_dim
SEQ = 8              # sequence length
BATCH = 2
NUM_LAYERS = 2       # LSR num_layers (2 -> [SA, GCN, SA, GCN])
SUBLAYER_FIRST = 2   # first GraphConvLayer sub-layers
SUBLAYER_SECOND = 4  # second GraphConvLayer sub-layers


# --------------------------------------------------------------------------
# Fully fused Pallas kernel
# --------------------------------------------------------------------------

def _make_lsr_kernel(B, N, H, subs):
    """Build the single fused LSR forward kernel for static (B, N, H, subs)."""
    NL = len(subs)
    inv_sqrt_h = 1.0 / math.sqrt(H)

    def kernel(*refs):
        it = iter(refs)
        # ------------- unpack refs (inputs..., output, scratch) -------------
        x_ref = next(it)                      # (B*N, H) input activations
        w_g = next(it); b_g = next(it)        # input_W_G
        sa_p, gcn_p = [], []
        for i in range(NL):
            sa_p.append(tuple(next(it) for _ in range(6)))   # wq,bq,wk,bk,wr,br
            nsub = subs[i]
            ws = [next(it) for _ in range(nsub)]
            bs = [next(it) for _ in range(nsub)]
            wo = next(it); bo = next(it)
            gcn_p.append((ws, bs, wo, bo))
        w_agg = next(it); b_agg = next(it)    # aggregate_W
        out_ref = next(it)                    # (B*N, H) output
        cat_scr = next(it)                    # (N, 2H) dense-connection slab
        ax_scr = next(it)                     # (N, 2H) cached adj @ cat slab

        f32 = jnp.float32
        # ------------- masks / iotas, built once per kernel -----------------
        row = lax.broadcasted_iota(jnp.int32, (N, N), 0)
        col = lax.broadcasted_iota(jnp.int32, (N, N), 1)
        eye = (row == col).astype(f32)
        offdiag = 1.0 - eye
        mask_row = (row != 0).astype(f32)     # zeroes first row
        mask_col = (col != 0).astype(f32)     # zeroes first column
        row_n1 = lax.broadcasted_iota(jnp.int32, (N, 1), 0)

        # ------------- input_W_G on the whole (B*N, H) slab ------------------
        x2d = jnp.dot(x_ref[...], w_g[...], preferred_element_type=f32) + b_g[...]

        layer_outs = []
        for i in range(NL):
            wq, bq, wk, bk, wr, br = sa_p[i]
            ws, bs, wo, bo = gcn_p[i]
            nsub = subs[i]
            hd = H // nsub

            # --- StructuredAttention projections, batched over B*N rows ---
            q = (jnp.dot(x2d, wq[...], preferred_element_type=f32) + bq[...]) * inv_sqrt_h
            kproj = jnp.dot(x2d, wk[...], preferred_element_type=f32) + bk[...]
            fr = jnp.exp(jnp.dot(x2d, wr[...], preferred_element_type=f32) + br[...])  # (B*N,1)

            new_parts = []
            for b in range(B):                       # static, B=2
                lo = b * N
                x_b = x2d[lo:lo + N, :]
                q_b = q[lo:lo + N, :]
                k_b = kproj[lo:lo + N, :]
                fr_b = fr[lo:lo + N, :]              # (N, 1)

                # pairwise scores: q @ k^T, contraction over H (no explicit .T)
                s = lax.dot_general(q_b, k_b, (((1,), (1,)), ((), ())),
                                    preferred_element_type=f32)       # (N, N)
                A = jnp.exp(s) * offdiag             # zero diagonal
                colsum = jnp.sum(A, axis=0, keepdims=True)            # (1, N)
                L = eye * colsum - A
                # Laplacian with first row replaced by exp(root score)
                L_bar = jnp.where(row == 0, jnp.transpose(fr_b), L)

                # --- in-kernel inverse: unrolled vectorised Gauss-Jordan ---
                M = jnp.concatenate([L_bar, eye], axis=1)             # (N, 2N)
                for kk in range(N):                  # static, N=8
                    piv_row = M[kk:kk + 1, :] / M[kk:kk + 1, kk:kk + 1]
                    col_k = M[:, kk:kk + 1]
                    ek = (row_n1 == kk).astype(f32)
                    M = M - (col_k - ek) * piv_row
                Linv = M[:, N:]                                       # (N, N)

                # --- matrix-tree edge marginals; dx-transpose folded in ---
                # adj_ij = A_ji * ((i!=0)*Linv_ii - (j!=0)*Linv_ij)
                diag_col = jnp.sum(Linv * eye, axis=1, keepdims=True)  # (N,1)
                adj = jnp.transpose(A) * (mask_row * diag_col - mask_col * Linv)

                # --- densely connected GCN (GraphConvLayer) ---
                denom = jnp.sum(adj, axis=1, keepdims=True) + 1.0
                inv_denom = 1.0 / denom              # hoisted: one divide/layer
                cat_scr[:, :H] = x_b
                ax_scr[:, :H] = jnp.dot(adj, x_b, preferred_element_type=f32)
                for l in range(nsub):                # static
                    width = H + l * hd
                    pre = ax_scr[:, :width] + cat_scr[:, :width]
                    # (ax@W + b) + (cat@W + b) == (ax + cat)@W + 2b
                    axw = (jnp.dot(pre, ws[l][...], preferred_element_type=f32)
                           + 2.0 * bs[l][...])
                    gaxw = jnp.maximum(axw * inv_denom, 0.0)          # relu
                    cat_scr[:, width:width + hd] = gaxw               # dense conn.
                    if l + 1 < nsub:                 # incremental adj@cat cache
                        ax_scr[:, width:width + hd] = jnp.dot(
                            adj, gaxw, preferred_element_type=f32)
                gcn_out = cat_scr[:, H:2 * H] + x_b  # concat(sub_outs) + inputs
                new_parts.append(jnp.dot(gcn_out, wo[...],
                                         preferred_element_type=f32) + bo[...])

            x2d = jnp.concatenate(new_parts, axis=0)                  # (B*N, H)
            layer_outs.append(x2d)

        # --- aggregate_W over the concatenated layer outputs ---
        agg = jnp.concatenate(layer_outs, axis=1)                     # (B*N, NL*H)
        out_ref[...] = (jnp.dot(agg, w_agg[...], preferred_element_type=f32)
                        + b_agg[...])

    return kernel


def lsr_forward(vec, params):
    """LSR.forward, fully fused into a single VMEM-resident pallas_call."""
    b, n, h = vec.shape
    subs = (SUBLAYER_FIRST, SUBLAYER_SECOND)
    kernel = _make_lsr_kernel(b, n, h, subs)

    args = [vec.reshape(b * n, h), params['w_g'], params['b_g'].reshape(1, h)]
    for i in range(NUM_LAYERS):
        sa = params['sa'][i]
        args += [sa['wq'], sa['bq'].reshape(1, h),
                 sa['wk'], sa['bk'].reshape(1, h),
                 sa['wr'], sa['br'].reshape(1, 1)]
        g = params['gcn'][i]
        nsub = subs[i]
        hd = h // nsub
        args += list(g['w'])
        args += [bb.reshape(1, hd) for bb in g['b']]
        args += [g['w_out'], g['b_out'].reshape(1, h)]
    args += [params['w_agg'], params['b_agg'].reshape(1, h)]

    out2d = pl.pallas_call(
        kernel,
        out_shape=jax.ShapeDtypeStruct((b * n, h), jnp.float32),
        scratch_shapes=[pltpu.VMEM((n, 2 * h), jnp.float32),   # cat slab
                        pltpu.VMEM((n, 2 * h), jnp.float32)],  # adj@cat slab
    )(*args)
    return out2d.reshape(b, n, h)


# --------------------------------------------------------------------------
# Deterministic parameter init + pure-JAX reference for validation
# --------------------------------------------------------------------------

def init_params(key, h, num_layers, sub_first, sub_second):
    def dense(k, din, dout, scale=0.1):
        kw, kb = jax.random.split(k)
        return (scale * jax.random.normal(kw, (din, dout), jnp.float32),
                scale * jax.random.normal(kb, (dout,), jnp.float32))

    keys = iter(jax.random.split(key, 32))
    params = {}
    params['w_g'], params['b_g'] = dense(next(keys), h, h)
    params['sa'], params['gcn'] = [], []
    subs = [sub_first, sub_second]
    for i in range(num_layers):
        wq, bq = dense(next(keys), h, h)
        wk, bk = dense(next(keys), h, h)
        wr, br = dense(next(keys), h, 1)
        params['sa'].append(dict(wq=wq, bq=bq, wk=wk, bk=bk, wr=wr, br=br))
        nsub = subs[i]
        hd = h // nsub
        ws, bs = [], []
        for l in range(nsub):
            w, bb = dense(next(keys), h + l * hd, hd)
            ws.append(w)
            bs.append(bb)
        wo, bo = dense(next(keys), h, h)
        params['gcn'].append(dict(w=ws, b=bs, w_out=wo, b_out=bo))
    params['w_agg'], params['b_agg'] = dense(next(keys), num_layers * h, h)
    return params


def ref_forward(vec, params):
    def linear(x, w, b):
        return x @ w + b

    def sa(x, p):
        n = x.shape[1]
        q = linear(x, p['wq'], p['bq']) / math.sqrt(x.shape[-1])
        k = linear(x, p['wk'], p['bk'])
        fr = jnp.exp(linear(x, p['wr'], p['br']))
        s = jnp.einsum('bnd,bmd->bnm', q, k)
        A = jnp.exp(s) * (1.0 - jnp.eye(n))[None]
        colsum = A.sum(axis=1)
        L = -A + jnp.eye(n)[None] * colsum[:, None, :]
        L_bar = L.at[:, 0, :].set(fr[:, :, 0])
        Linv = jnp.linalg.inv(L_bar)
        diag = jnp.diagonal(Linv, axis1=-2, axis2=-1)[:, :, None]
        tmp1 = A * jnp.transpose(diag, (0, 2, 1))
        tmp2 = A * jnp.transpose(Linv, (0, 2, 1))
        mask1 = (jnp.arange(n)[None, None, :] != 0).astype(A.dtype)
        mask2 = (jnp.arange(n)[None, :, None] != 0).astype(A.dtype)
        dx = mask1 * tmp1 - mask2 * tmp2
        return jnp.transpose(dx, (0, 2, 1))

    def gcn(adj, x, p, nsub):
        denom = adj.sum(axis=2, keepdims=True) + 1.0
        cat, outs = x, []
        for l in range(nsub):
            ax = jnp.einsum('bnm,bmd->bnd', adj, cat)
            axw = linear(ax, p['w'][l], p['b'][l]) + linear(cat, p['w'][l], p['b'][l])
            g = jax.nn.relu(axw / denom)
            outs.append(g)
            cat = jnp.concatenate([cat, g], axis=2)
        go = jnp.concatenate(outs, axis=2) + x
        return linear(go, p['w_out'], p['b_out'])

    x = linear(vec, params['w_g'], params['b_g'])
    outs, layer_list = x, []
    subs = [SUBLAYER_FIRST, SUBLAYER_SECOND]
    for i in range(NUM_LAYERS):
        adj = sa(outs, params['sa'][i])
        outs = gcn(adj, outs, params['gcn'][i], subs[i])
        layer_list.append(outs)
    agg = jnp.concatenate(layer_list, axis=2)
    return linear(agg, params['w_agg'], params['b_agg'])


if __name__ == "__main__":
    key = jax.random.PRNGKey(0)
    kp, kx = jax.random.split(key)
    params = init_params(kp, HIDDEN, NUM_LAYERS, SUBLAYER_FIRST, SUBLAYER_SECOND)
    vec = jax.random.normal(kx, (BATCH, SEQ, HIDDEN), jnp.float32)

    out = jax.block_until_ready(lsr_forward(vec, params))

    ref = ref_forward(vec, params)
    assert out.shape == (BATCH, SEQ, HIDDEN), out.shape
    assert jnp.allclose(out, ref, atol=1e-3, rtol=1e-3), \
        float(jnp.max(jnp.abs(out - ref)))
    print("KERNEL_OK")
</pallas_src>

<mosaic_0001>
module attributes {stable_mosaic.version = 11 : i64} {
  func.func @kernel(%arg0: memref<16x32xf32, #tpu.memory_space<vmem>>, %arg1: memref<32x32xf32, #tpu.memory_space<vmem>>, %arg2: memref<1x32xf32, #tpu.memory_space<vmem>>, %arg3: memref<32x32xf32, #tpu.memory_space<vmem>>, %arg4: memref<1x32xf32, #tpu.memory_space<vmem>>, %arg5: memref<32x32xf32, #tpu.memory_space<vmem>>, %arg6: memref<1x32xf32, #tpu.memory_space<vmem>>, %arg7: memref<32x1xf32, #tpu.memory_space<vmem>>, %arg8: memref<1x1xf32, #tpu.memory_space<vmem>>, %arg9: memref<32x16xf32, #tpu.memory_space<vmem>>, %arg10: memref<48x16xf32, #tpu.memory_space<vmem>>, %arg11: memref<1x16xf32, #tpu.memory_space<vmem>>, %arg12: memref<1x16xf32, #tpu.memory_space<vmem>>, %arg13: memref<32x32xf32, #tpu.memory_space<vmem>>, %arg14: memref<1x32xf32, #tpu.memory_space<vmem>>, %arg15: memref<32x32xf32, #tpu.memory_space<vmem>>, %arg16: memref<1x32xf32, #tpu.memory_space<vmem>>, %arg17: memref<32x32xf32, #tpu.memory_space<vmem>>, %arg18: memref<1x32xf32, #tpu.memory_space<vmem>>, %arg19: memref<32x1xf32, #tpu.memory_space<vmem>>, %arg20: memref<1x1xf32, #tpu.memory_space<vmem>>, %arg21: memref<32x8xf32, #tpu.memory_space<vmem>>, %arg22: memref<40x8xf32, #tpu.memory_space<vmem>>, %arg23: memref<48x8xf32, #tpu.memory_space<vmem>>, %arg24: memref<56x8xf32, #tpu.memory_space<vmem>>, %arg25: memref<1x8xf32, #tpu.memory_space<vmem>>, %arg26: memref<1x8xf32, #tpu.memory_space<vmem>>, %arg27: memref<1x8xf32, #tpu.memory_space<vmem>>, %arg28: memref<1x8xf32, #tpu.memory_space<vmem>>, %arg29: memref<32x32xf32, #tpu.memory_space<vmem>>, %arg30: memref<1x32xf32, #tpu.memory_space<vmem>>, %arg31: memref<64x32xf32, #tpu.memory_space<vmem>>, %arg32: memref<1x32xf32, #tpu.memory_space<vmem>>, %arg33: memref<16x32xf32, #tpu.memory_space<vmem>>, %arg34: memref<8x64xf32, #tpu.memory_space<vmem>>, %arg35: memref<8x64xf32, #tpu.memory_space<vmem>>) attributes {dimension_semantics = [], scalar_prefetch = 0 : i64, scratch_operands = 2 : i64, tpu.core_type = #tpu.core_type<tc>} {
    %0 = tpu.iota {dimensions = array<i32: 0>} : vector<8x8xi32>
    %1 = tpu.iota {dimensions = array<i32: 1>} : vector<8x8xi32>
    %2 = arith.cmpi eq, %0, %1 : vector<8x8xi32>
    %3 = arith.extui %2 : vector<8x8xi1> to vector<8x8xi32>
    %4 = arith.sitofp %3 : vector<8x8xi32> to vector<8x8xf32>
    %cst = arith.constant 1.000000e+00 : f32
    %5 = vector.broadcast %cst : f32 to vector<8x8xf32>
    %6 = arith.subf %5, %4 : vector<8x8xf32>
    %c0_i32 = arith.constant 0 : i32
    %7 = vector.broadcast %c0_i32 : i32 to vector<8x8xi32>
    %8 = arith.cmpi ne, %0, %7 : vector<8x8xi32>
    %9 = arith.extui %8 : vector<8x8xi1> to vector<8x8xi32>
    %10 = arith.sitofp %9 : vector<8x8xi32> to vector<8x8xf32>
    %c0_i32_0 = arith.constant 0 : i32
    %11 = vector.broadcast %c0_i32_0 : i32 to vector<8x8xi32>
    %12 = arith.cmpi ne, %1, %11 : vector<8x8xi32>
    %13 = arith.extui %12 : vector<8x8xi1> to vector<8x8xi32>
    %14 = arith.sitofp %13 : vector<8x8xi32> to vector<8x8xf32>
    %15 = tpu.iota {dimensions = array<i32: 0>} : vector<8x1xi32>
    %c0 = arith.constant 0 : index
    %c0_1 = arith.constant 0 : index
    %16 = vector.load %arg0[%c0, %c0_1] : memref<16x32xf32, #tpu.memory_space<vmem>>, vector<16x32xf32>
    %c0_2 = arith.constant 0 : index
    %c0_3 = arith.constant 0 : index
    %17 = vector.load %arg1[%c0_2, %c0_3] : memref<32x32xf32, #tpu.memory_space<vmem>>, vector<32x32xf32>
    %cst_4 = arith.constant dense<0.000000e+00> : vector<16x32xf32>
    %18 = tpu.matmul %16, %17, %cst_4 {dimension_numbers = #tpu.dot_dimension_numbers<[1], [0], [0], [1], [0, 0, 1, 1], [], []>} : vector<16x32xf32>, vector<32x32xf32>, vector<16x32xf32> -> vector<16x32xf32>
    %c0_5 = arith.constant 0 : index
    %c0_6 = arith.constant 0 : index
    %19 = vector.load %arg2[%c0_5, %c0_6] : memref<1x32xf32, #tpu.memory_space<vmem>>, vector<1x32xf32>
    %20 = vector.broadcast %19 : vector<1x32xf32> to vector<16x32xf32>
    %21 = arith.addf %18, %20 : vector<16x32xf32>
    %c0_7 = arith.constant 0 : index
    %c0_8 = arith.constant 0 : index
    %22 = vector.load %arg3[%c0_7, %c0_8] : memref<32x32xf32, #tpu.memory_space<vmem>>, vector<32x32xf32>
    %cst_9 = arith.constant dense<0.000000e+00> : vector<16x32xf32>
    %23 = tpu.matmul %21, %22, %cst_9 {dimension_numbers = #tpu.dot_dimension_numbers<[1], [0], [0], [1], [0, 0, 1, 1], [], []>} : vector<16x32xf32>, vector<32x32xf32>, vector<16x32xf32> -> vector<16x32xf32>
    %c0_10 = arith.constant 0 : index
    %c0_11 = arith.constant 0 : index
    %24 = vector.load %arg4[%c0_10, %c0_11] : memref<1x32xf32, #tpu.memory_space<vmem>>, vector<1x32xf32>
    %25 = vector.broadcast %24 : vector<1x32xf32> to vector<16x32xf32>
    %26 = arith.addf %23, %25 : vector<16x32xf32>
    %cst_12 = arith.constant 0.176776692 : f32
    %27 = vector.broadcast %cst_12 : f32 to vector<16x32xf32>
    %28 = arith.mulf %26, %27 : vector<16x32xf32>
    %c0_13 = arith.constant 0 : index
    %c0_14 = arith.constant 0 : index
    %29 = vector.load %arg5[%c0_13, %c0_14] : memref<32x32xf32, #tpu.memory_space<vmem>>, vector<32x32xf32>
    %cst_15 = arith.constant dense<0.000000e+00> : vector<16x32xf32>
    %30 = tpu.matmul %21, %29, %cst_15 {dimension_numbers = #tpu.dot_dimension_numbers<[1], [0], [0], [1], [0, 0, 1, 1], [], []>} : vector<16x32xf32>, vector<32x32xf32>, vector<16x32xf32> -> vector<16x32xf32>
    %c0_16 = arith.constant 0 : index
    %c0_17 = arith.constant 0 : index
    %31 = vector.load %arg6[%c0_16, %c0_17] : memref<1x32xf32, #tpu.memory_space<vmem>>, vector<1x32xf32>
    %32 = vector.broadcast %31 : vector<1x32xf32> to vector<16x32xf32>
    %33 = arith.addf %30, %32 : vector<16x32xf32>
    %c0_18 = arith.constant 0 : index
    %c0_19 = arith.constant 0 : index
    %34 = vector.load %arg7[%c0_18, %c0_19] : memref<32x1xf32, #tpu.memory_space<vmem>>, vector<32x1xf32>
    %cst_20 = arith.constant dense<0.000000e+00> : vector<16x1xf32>
    %35 = tpu.matmul %21, %34, %cst_20 {dimension_numbers = #tpu.dot_dimension_numbers<[1], [0], [0], [1], [0, 0, 1, 1], [], []>} : vector<16x32xf32>, vector<32x1xf32>, vector<16x1xf32> -> vector<16x1xf32>
    %c0_21 = arith.constant 0 : index
    %c0_22 = arith.constant 0 : index
    %36 = vector.load %arg8[%c0_21, %c0_22] : memref<1x1xf32, #tpu.memory_space<vmem>>, vector<1x1xf32>
    %37 = vector.broadcast %36 : vector<1x1xf32> to vector<16x1xf32>
    %38 = arith.addf %35, %37 : vector<16x1xf32>
    %39 = math.exp %38 : vector<16x1xf32>
    %40 = vector.extract_strided_slice %21 {offsets = [0, 0], sizes = [8, 32], strides = [1, 1]} : vector<16x32xf32> to vector<8x32xf32>
    %41 = vector.extract_strided_slice %28 {offsets = [0, 0], sizes = [8, 32], strides = [1, 1]} : vector<16x32xf32> to vector<8x32xf32>
    %42 = vector.extract_strided_slice %33 {offsets = [0, 0], sizes = [8, 32], strides = [1, 1]} : vector<16x32xf32> to vector<8x32xf32>
    %43 = vector.extract_strided_slice %39 {offsets = [0, 0], sizes = [8, 1], strides = [1, 1]} : vector<16x1xf32> to vector<8x1xf32>
    %cst_23 = arith.constant dense<0.000000e+00> : vector<8x8xf32>
    %44 = tpu.matmul %41, %42, %cst_23 {dimension_numbers = #tpu.dot_dimension_numbers<[1], [1], [0], [0], [0, 0, 1, 0], [], []>} : vector<8x32xf32>, vector<8x32xf32>, vector<8x8xf32> -> vector<8x8xf32>
    %45 = math.exp %44 : vector<8x8xf32>
    %46 = arith.mulf %45, %6 : vector<8x8xf32>
    %cst_24 = arith.constant dense<0.000000e+00> : vector<8xf32>
    %47 = vector.multi_reduction <add>, %46, %cst_24 [0] : vector<8x8xf32> to vector<8xf32>
    %48 = vector.shape_cast %47 : vector<8xf32> to vector<1x8xf32>
    %49 = vector.broadcast %48 : vector<1x8xf32> to vector<8x8xf32>
    %50 = arith.mulf %4, %49 : vector<8x8xf32>
    %51 = arith.subf %50, %46 : vector<8x8xf32>
    %c0_i32_25 = arith.constant 0 : i32
    %52 = vector.broadcast %c0_i32_25 : i32 to vector<8x8xi32>
    %53 = arith.cmpi eq, %0, %52 : vector<8x8xi32>
    %54 = tpu.transpose %43, [1, 0] : vector<8x1xf32> -> vector<1x8xf32>
    %55 = vector.shape_cast %54 : vector<1x8xf32> to vector<1x8xf32>
    %56 = vector.broadcast %55 : vector<1x8xf32> to vector<8x8xf32>
    %57 = arith.select %53, %56, %51 : vector<8x8xi1>, vector<8x8xf32>
    %58 = tpu.concatenate %57, %4 in 1 : vector<8x8xf32>, vector<8x8xf32> -> vector<8x16xf32>
    %59 = vector.extract_strided_slice %58 {offsets = [0, 0], sizes = [1, 16], strides = [1, 1]} : vector<8x16xf32> to vector<1x16xf32>
    %60 = vector.extract_strided_slice %58 {offsets = [0, 0], sizes = [1, 1], strides = [1, 1]} : vector<8x16xf32> to vector<1x1xf32>
    %61 = vector.broadcast %60 : vector<1x1xf32> to vector<1x16xf32>
    %62 = arith.divf %59, %61 : vector<1x16xf32>
    %63 = vector.extract_strided_slice %58 {offsets = [0, 0], sizes = [8, 1], strides = [1, 1]} : vector<8x16xf32> to vector<8x1xf32>
    %c0_i32_26 = arith.constant 0 : i32
    %64 = vector.broadcast %c0_i32_26 : i32 to vector<8x1xi32>
    %65 = arith.cmpi eq, %15, %64 : vector<8x1xi32>
    %66 = arith.extui %65 : vector<8x1xi1> to vector<8x1xi32>
    %67 = arith.sitofp %66 : vector<8x1xi32> to vector<8x1xf32>
    %68 = arith.subf %63, %67 : vector<8x1xf32>
    %69 = vector.broadcast %68 : vector<8x1xf32> to vector<8x16xf32>
    %70 = vector.broadcast %62 : vector<1x16xf32> to vector<8x16xf32>
    %71 = arith.mulf %69, %70 : vector<8x16xf32>
    %72 = arith.subf %58, %71 : vector<8x16xf32>
    %73 = vector.extract_strided_slice %72 {offsets = [1, 0], sizes = [1, 16], strides = [1, 1]} : vector<8x16xf32> to vector<1x16xf32>
    %74 = vector.extract_strided_slice %72 {offsets = [1, 1], sizes = [1, 1], strides = [1, 1]} : vector<8x16xf32> to vector<1x1xf32>
    %75 = vector.broadcast %74 : vector<1x1xf32> to vector<1x16xf32>
    %76 = arith.divf %73, %75 : vector<1x16xf32>
    %77 = vector.extract_strided_slice %72 {offsets = [0, 1], sizes = [8, 1], strides = [1, 1]} : vector<8x16xf32> to vector<8x1xf32>
    %c1_i32 = arith.constant 1 : i32
    %78 = vector.broadcast %c1_i32 : i32 to vector<8x1xi32>
    %79 = arith.cmpi eq, %15, %78 : vector<8x1xi32>
    %80 = arith.extui %79 : vector<8x1xi1> to vector<8x1xi32>
    %81 = arith.sitofp %80 : vector<8x1xi32> to vector<8x1xf32>
    %82 = arith.subf %77, %81 : vector<8x1xf32>
    %83 = vector.broadcast %82 : vector<8x1xf32> to vector<8x16xf32>
    %84 = vector.broadcast %76 : vector<1x16xf32> to vector<8x16xf32>
    %85 = arith.mulf %83, %84 : vector<8x16xf32>
    %86 = arith.subf %72, %85 : vector<8x16xf32>
    %87 = vector.extract_strided_slice %86 {offsets = [2, 0], sizes = [1, 16], strides = [1, 1]} : vector<8x16xf32> to vector<1x16xf32>
    %88 = vector.extract_strided_slice %86 {offsets = [2, 2], sizes = [1, 1], strides = [1, 1]} : vector<8x16xf32> to vector<1x1xf32>
    %89 = vector.broadcast %88 : vector<1x1xf32> to vector<1x16xf32>
    %90 = arith.divf %87, %89 : vector<1x16xf32>
    %91 = vector.extract_strided_slice %86 {offsets = [0, 2], sizes = [8, 1], strides = [1, 1]} : vector<8x16xf32> to vector<8x1xf32>
    %c2_i32 = arith.constant 2 : i32
    %92 = vector.broadcast %c2_i32 : i32 to vector<8x1xi32>
    %93 = arith.cmpi eq, %15, %92 : vector<8x1xi32>
    %94 = arith.extui %93 : vector<8x1xi1> to vector<8x1xi32>
    %95 = arith.sitofp %94 : vector<8x1xi32> to vector<8x1xf32>
    %96 = arith.subf %91, %95 : vector<8x1xf32>
    %97 = vector.broadcast %96 : vector<8x1xf32> to vector<8x16xf32>
    %98 = vector.broadcast %90 : vector<1x16xf32> to vector<8x16xf32>
    %99 = arith.mulf %97, %98 : vector<8x16xf32>
    %100 = arith.subf %86, %99 : vector<8x16xf32>
    %101 = vector.extract_strided_slice %100 {offsets = [3, 0], sizes = [1, 16], strides = [1, 1]} : vector<8x16xf32> to vector<1x16xf32>
    %102 = vector.extract_strided_slice %100 {offsets = [3, 3], sizes = [1, 1], strides = [1, 1]} : vector<8x16xf32> to vector<1x1xf32>
    %103 = vector.broadcast %102 : vector<1x1xf32> to vector<1x16xf32>
    %104 = arith.divf %101, %103 : vector<1x16xf32>
    %105 = vector.extract_strided_slice %100 {offsets = [0, 3], sizes = [8, 1], strides = [1, 1]} : vector<8x16xf32> to vector<8x1xf32>
    %c3_i32 = arith.constant 3 : i32
    %106 = vector.broadcast %c3_i32 : i32 to vector<8x1xi32>
    %107 = arith.cmpi eq, %15, %106 : vector<8x1xi32>
    %108 = arith.extui %107 : vector<8x1xi1> to vector<8x1xi32>
    %109 = arith.sitofp %108 : vector<8x1xi32> to vector<8x1xf32>
    %110 = arith.subf %105, %109 : vector<8x1xf32>
    %111 = vector.broadcast %110 : vector<8x1xf32> to vector<8x16xf32>
    %112 = vector.broadcast %104 : vector<1x16xf32> to vector<8x16xf32>
    %113 = arith.mulf %111, %112 : vector<8x16xf32>
    %114 = arith.subf %100, %113 : vector<8x16xf32>
    %115 = vector.extract_strided_slice %114 {offsets = [4, 0], sizes = [1, 16], strides = [1, 1]} : vector<8x16xf32> to vector<1x16xf32>
    %116 = vector.extract_strided_slice %114 {offsets = [4, 4], sizes = [1, 1], strides = [1, 1]} : vector<8x16xf32> to vector<1x1xf32>
    %117 = vector.broadcast %116 : vector<1x1xf32> to vector<1x16xf32>
    %118 = arith.divf %115, %117 : vector<1x16xf32>
    %119 = vector.extract_strided_slice %114 {offsets = [0, 4], sizes = [8, 1], strides = [1, 1]} : vector<8x16xf32> to vector<8x1xf32>
    %c4_i32 = arith.constant 4 : i32
    %120 = vector.broadcast %c4_i32 : i32 to vector<8x1xi32>
    %121 = arith.cmpi eq, %15, %120 : vector<8x1xi32>
    %122 = arith.extui %121 : vector<8x1xi1> to vector<8x1xi32>
    %123 = arith.sitofp %122 : vector<8x1xi32> to vector<8x1xf32>
    %124 = arith.subf %119, %123 : vector<8x1xf32>
    %125 = vector.broadcast %124 : vector<8x1xf32> to vector<8x16xf32>
    %126 = vector.broadcast %118 : vector<1x16xf32> to vector<8x16xf32>
    %127 = arith.mulf %125, %126 : vector<8x16xf32>
    %128 = arith.subf %114, %127 : vector<8x16xf32>
    %129 = vector.extract_strided_slice %128 {offsets = [5, 0], sizes = [1, 16], strides = [1, 1]} : vector<8x16xf32> to vector<1x16xf32>
    %130 = vector.extract_strided_slice %128 {offsets = [5, 5], sizes = [1, 1], strides = [1, 1]} : vector<8x16xf32> to vector<1x1xf32>
    %131 = vector.broadcast %130 : vector<1x1xf32> to vector<1x16xf32>
    %132 = arith.divf %129, %131 : vector<1x16xf32>
    %133 = vector.extract_strided_slice %128 {offsets = [0, 5], sizes = [8, 1], strides = [1, 1]} : vector<8x16xf32> to vector<8x1xf32>
    %c5_i32 = arith.constant 5 : i32
    %134 = vector.broadcast %c5_i32 : i32 to vector<8x1xi32>
    %135 = arith.cmpi eq, %15, %134 : vector<8x1xi32>
    %136 = arith.extui %135 : vector<8x1xi1> to vector<8x1xi32>
    %137 = arith.sitofp %136 : vector<8x1xi32> to vector<8x1xf32>
    %138 = arith.subf %133, %137 : vector<8x1xf32>
    %139 = vector.broadcast %138 : vector<8x1xf32> to vector<8x16xf32>
    %140 = vector.broadcast %132 : vector<1x16xf32> to vector<8x16xf32>
    %141 = arith.mulf %139, %140 : vector<8x16xf32>
    %142 = arith.subf %128, %141 : vector<8x16xf32>
    %143 = vector.extract_strided_slice %142 {offsets = [6, 0], sizes = [1, 16], strides = [1, 1]} : vector<8x16xf32> to vector<1x16xf32>
    %144 = vector.extract_strided_slice %142 {offsets = [6, 6], sizes = [1, 1], strides = [1, 1]} : vector<8x16xf32> to vector<1x1xf32>
    %145 = vector.broadcast %144 : vector<1x1xf32> to vector<1x16xf32>
    %146 = arith.divf %143, %145 : vector<1x16xf32>
    %147 = vector.extract_strided_slice %142 {offsets = [0, 6], sizes = [8, 1], strides = [1, 1]} : vector<8x16xf32> to vector<8x1xf32>
    %c6_i32 = arith.constant 6 : i32
    %148 = vector.broadcast %c6_i32 : i32 to vector<8x1xi32>
    %149 = arith.cmpi eq, %15, %148 : vector<8x1xi32>
    %150 = arith.extui %149 : vector<8x1xi1> to vector<8x1xi32>
    %151 = arith.sitofp %150 : vector<8x1xi32> to vector<8x1xf32>
    %152 = arith.subf %147, %151 : vector<8x1xf32>
    %153 = vector.broadcast %152 : vector<8x1xf32> to vector<8x16xf32>
    %154 = vector.broadcast %146 : vector<1x16xf32> to vector<8x16xf32>
    %155 = arith.mulf %153, %154 : vector<8x16xf32>
    %156 = arith.subf %142, %155 : vector<8x16xf32>
    %157 = vector.extract_strided_slice %156 {offsets = [7, 0], sizes = [1, 16], strides = [1, 1]} : vector<8x16xf32> to vector<1x16xf32>
    %158 = vector.extract_strided_slice %156 {offsets = [7, 7], sizes = [1, 1], strides = [1, 1]} : vector<8x16xf32> to vector<1x1xf32>
    %159 = vector.broadcast %158 : vector<1x1xf32> to vector<1x16xf32>
    %160 = arith.divf %157, %159 : vector<1x16xf32>
    %161 = vector.extract_strided_slice %156 {offsets = [0, 7], sizes = [8, 1], strides = [1, 1]} : vector<8x16xf32> to vector<8x1xf32>
    %c7_i32 = arith.constant 7 : i32
    %162 = vector.broadcast %c7_i32 : i32 to vector<8x1xi32>
    %163 = arith.cmpi eq, %15, %162 : vector<8x1xi32>
    %164 = arith.extui %163 : vector<8x1xi1> to vector<8x1xi32>
    %165 = arith.sitofp %164 : vector<8x1xi32> to vector<8x1xf32>
    %166 = arith.subf %161, %165 : vector<8x1xf32>
    %167 = vector.broadcast %166 : vector<8x1xf32> to vector<8x16xf32>
    %168 = vector.broadcast %160 : vector<1x16xf32> to vector<8x16xf32>
    %169 = arith.mulf %167, %168 : vector<8x16xf32>
    %170 = arith.subf %156, %169 : vector<8x16xf32>
    %171 = vector.extract_strided_slice %170 {offsets = [0, 8], sizes = [8, 8], strides = [1, 1]} : vector<8x16xf32> to vector<8x8xf32>
    %172 = arith.mulf %171, %4 : vector<8x8xf32>
    %cst_27 = arith.constant dense<0.000000e+00> : vector<8xf32>
    %173 = vector.multi_reduction <add>, %172, %cst_27 [1] : vector<8x8xf32> to vector<8xf32>
    %174 = vector.shape_cast %173 : vector<8xf32> to vector<8x1xf32>
    %175 = tpu.transpose %46, [1, 0] : vector<8x8xf32> -> vector<8x8xf32>
    %176 = vector.broadcast %174 : vector<8x1xf32> to vector<8x8xf32>
    %177 = arith.mulf %10, %176 : vector<8x8xf32>
    %178 = arith.mulf %14, %171 : vector<8x8xf32>
    %179 = arith.subf %177, %178 : vector<8x8xf32>
    %180 = arith.mulf %175, %179 : vector<8x8xf32>
    %cst_28 = arith.constant dense<0.000000e+00> : vector<8xf32>
    %181 = vector.multi_reduction <add>, %180, %cst_28 [1] : vector<8x8xf32> to vector<8xf32>
    %182 = vector.shape_cast %181 : vector<8xf32> to vector<8x1xf32>
    %cst_29 = arith.constant 1.000000e+00 : f32
    %183 = vector.broadcast %cst_29 : f32 to vector<8x1xf32>
    %184 = arith.addf %182, %183 : vector<8x1xf32>
    %cst_30 = arith.constant 1.000000e+00 : f32
    %185 = vector.broadcast %cst_30 : f32 to vector<8x1xf32>
    %186 = arith.divf %185, %184 : vector<8x1xf32>
    %c0_31 = arith.constant 0 : index
    %c0_32 = arith.constant 0 : index
    %187 = vector.load %arg34[%c0_31, %c0_32] : memref<8x64xf32, #tpu.memory_space<vmem>>, vector<8x32xf32>
    tpu.vector_store %arg34[%c0_31, %c0_32], %40 {strides = array<i32>} : memref<8x64xf32, #tpu.memory_space<vmem>>, vector<8x32xf32>,
    %cst_33 = arith.constant dense<0.000000e+00> : vector<8x32xf32>
    %188 = tpu.matmul %180, %40, %cst_33 {dimension_numbers = #tpu.dot_dimension_numbers<[1], [0], [0], [1], [0, 0, 1, 1], [], []>} : vector<8x8xf32>, vector<8x32xf32>, vector<8x32xf32> -> vector<8x32xf32>
    %c0_34 = arith.constant 0 : index
    %c0_35 = arith.constant 0 : index
    %189 = vector.load %arg35[%c0_34, %c0_35] : memref<8x64xf32, #tpu.memory_space<vmem>>, vector<8x32xf32>
    tpu.vector_store %arg35[%c0_34, %c0_35], %188 {strides = array<i32>} : memref<8x64xf32, #tpu.memory_space<vmem>>, vector<8x32xf32>,
    %c0_36 = arith.constant 0 : index
    %c0_37 = arith.constant 0 : index
    %190 = vector.load %arg35[%c0_36, %c0_37] : memref<8x64xf32, #tpu.memory_space<vmem>>, vector<8x32xf32>
    %c0_38 = arith.constant 0 : index
    %c0_39 = arith.constant 0 : index
    %191 = vector.load %arg34[%c0_38, %c0_39] : memref<8x64xf32, #tpu.memory_space<vmem>>, vector<8x32xf32>
    %192 = arith.addf %190, %191 : vector<8x32xf32>
    %c0_40 = arith.constant 0 : index
    %c0_41 = arith.constant 0 : index
    %193 = vector.load %arg9[%c0_40, %c0_41] : memref<32x16xf32, #tpu.memory_space<vmem>>, vector<32x16xf32>
    %cst_42 = arith.constant dense<0.000000e+00> : vector<8x16xf32>
    %194 = tpu.matmul %192, %193, %cst_42 {dimension_numbers = #tpu.dot_dimension_numbers<[1], [0], [0], [1], [0, 0, 1, 1], [], []>} : vector<8x32xf32>, vector<32x16xf32>, vector<8x16xf32> -> vector<8x16xf32>
    %c0_43 = arith.constant 0 : index
    %c0_44 = arith.constant 0 : index
    %195 = vector.load %arg11[%c0_43, %c0_44] : memref<1x16xf32, #tpu.memory_space<vmem>>, vector<1x16xf32>
    %cst_45 = arith.constant 2.000000e+00 : f32
    %196 = vector.broadcast %cst_45 : f32 to vector<1x16xf32>
    %197 = arith.mulf %196, %195 : vector<1x16xf32>
    %198 = vector.broadcast %197 : vector<1x16xf32> to vector<8x16xf32>
    %199 = arith.addf %194, %198 : vector<8x16xf32>
    %200 = vector.broadcast %186 : vector<8x1xf32> to vector<8x16xf32>
    %201 = arith.mulf %199, %200 : vector<8x16xf32>
    %cst_46 = arith.constant 0.000000e+00 : f32
    %202 = vector.broadcast %cst_46 : f32 to vector<8x16xf32>
    %203 = arith.maximumf %201, %202 : vector<8x16xf32>
    %c0_47 = arith.constant 0 : index
    %c32 = arith.constant 32 : index
    %204 = vector.load %arg34[%c0_47, %c32] : memref<8x64xf32, #tpu.memory_space<vmem>>, vector<8x16xf32>
    tpu.vector_store %arg34[%c0_47, %c32], %203 {strides = array<i32>} : memref<8x64xf32, #tpu.memory_space<vmem>>, vector<8x16xf32>,
    %cst_48 = arith.constant dense<0.000000e+00> : vector<8x16xf32>
    %205 = tpu.matmul %180, %203, %cst_48 {dimension_numbers = #tpu.dot_dimension_numbers<[1], [0], [0], [1], [0, 0, 1, 1], [], []>} : vector<8x8xf32>, vector<8x16xf32>, vector<8x16xf32> -> vector<8x16xf32>
    %c0_49 = arith.constant 0 : index
    %c32_50 = arith.constant 32 : index
    %206 = vector.load %arg35[%c0_49, %c32_50] : memref<8x64xf32, #tpu.memory_space<vmem>>, vector<8x16xf32>
    tpu.vector_store %arg35[%c0_49, %c32_50], %205 {strides = array<i32>} : memref<8x64xf32, #tpu.memory_space<vmem>>, vector<8x16xf32>,
    %c0_51 = arith.constant 0 : index
    %c0_52 = arith.constant 0 : index
    %207 = vector.load %arg35[%c0_51, %c0_52] : memref<8x64xf32, #tpu.memory_space<vmem>>, vector<8x48xf32>
    %c0_53 = arith.constant 0 : index
    %c0_54 = arith.constant 0 : index
    %208 = vector.load %arg34[%c0_53, %c0_54] : memref<8x64xf32, #tpu.memory_space<vmem>>, vector<8x48xf32>
    %209 = arith.addf %207, %208 : vector<8x48xf32>
    %c0_55 = arith.constant 0 : index
    %c0_56 = arith.constant 0 : index
    %210 = vector.load %arg10[%c0_55, %c0_56] : memref<48x16xf32, #tpu.memory_space<vmem>>, vector<48x16xf32>
    %cst_57 = arith.constant dense<0.000000e+00> : vector<8x16xf32>
    %211 = tpu.matmul %209, %210, %cst_57 {dimension_numbers = #tpu.dot_dimension_numbers<[1], [0], [0], [1], [0, 0, 1, 1], [], []>} : vector<8x48xf32>, vector<48x16xf32>, vector<8x16xf32> -> vector<8x16xf32>
    %c0_58 = arith.constant 0 : index
    %c0_59 = arith.constant 0 : index
    %212 = vector.load %arg12[%c0_58, %c0_59] : memref<1x16xf32, #tpu.memory_space<vmem>>, vector<1x16xf32>
    %cst_60 = arith.constant 2.000000e+00 : f32
    %213 = vector.broadcast %cst_60 : f32 to vector<1x16xf32>
    %214 = arith.mulf %213, %212 : vector<1x16xf32>
    %215 = vector.broadcast %214 : vector<1x16xf32> to vector<8x16xf32>
    %216 = arith.addf %211, %215 : vector<8x16xf32>
    %217 = vector.broadcast %186 : vector<8x1xf32> to vector<8x16xf32>
    %218 = arith.mulf %216, %217 : vector<8x16xf32>
    %cst_61 = arith.constant 0.000000e+00 : f32
    %219 = vector.broadcast %cst_61 : f32 to vector<8x16xf32>
    %220 = arith.maximumf %218, %219 : vector<8x16xf32>
    %c0_62 = arith.constant 0 : index
    %c48 = arith.constant 48 : index
    %221 = vector.load %arg34[%c0_62, %c48] : memref<8x64xf32, #tpu.memory_space<vmem>>, vector<8x16xf32>
    tpu.vector_store %arg34[%c0_62, %c48], %220 {strides = array<i32>} : memref<8x64xf32, #tpu.memory_space<vmem>>, vector<8x16xf32>,
    %c0_63 = arith.constant 0 : index
    %c32_64 = arith.constant 32 : index
    %222 = vector.load %arg34[%c0_63, %c32_64] : memref<8x64xf32, #tpu.memory_space<vmem>>, vector<8x32xf32>
    %223 = arith.addf %222, %40 : vector<8x32xf32>
    %c0_65 = arith.constant 0 : index
    %c0_66 = arith.constant 0 : index
    %224 = vector.load %arg13[%c0_65, %c0_66] : memref<32x32xf32, #tpu.memory_space<vmem>>, vector<32x32xf32>
    %cst_67 = arith.constant dense<0.000000e+00> : vector<8x32xf32>
    %225 = tpu.matmul %223, %224, %cst_67 {dimension_numbers = #tpu.dot_dimension_numbers<[1], [0], [0], [1], [0, 0, 1, 1], [], []>} : vector<8x32xf32>, vector<32x32xf32>, vector<8x32xf32> -> vector<8x32xf32>
    %c0_68 = arith.constant 0 : index
    %c0_69 = arith.constant 0 : index
    %226 = vector.load %arg14[%c0_68, %c0_69] : memref<1x32xf32, #tpu.memory_space<vmem>>, vector<1x32xf32>
    %227 = vector.broadcast %226 : vector<1x32xf32> to vector<8x32xf32>
    %228 = arith.addf %225, %227 : vector<8x32xf32>
    %229 = vector.extract_strided_slice %21 {offsets = [8, 0], sizes = [8, 32], strides = [1, 1]} : vector<16x32xf32> to vector<8x32xf32>
    %230 = vector.extract_strided_slice %28 {offsets = [8, 0], sizes = [8, 32], strides = [1, 1]} : vector<16x32xf32> to vector<8x32xf32>
    %231 = vector.extract_strided_slice %33 {offsets = [8, 0], sizes = [8, 32], strides = [1, 1]} : vector<16x32xf32> to vector<8x32xf32>
    %232 = vector.extract_strided_slice %39 {offsets = [8, 0], sizes = [8, 1], strides = [1, 1]} : vector<16x1xf32> to vector<8x1xf32>
    %cst_70 = arith.constant dense<0.000000e+00> : vector<8x8xf32>
    %233 = tpu.matmul %230, %231, %cst_70 {dimension_numbers = #tpu.dot_dimension_numbers<[1], [1], [0], [0], [0, 0, 1, 0], [], []>} : vector<8x32xf32>, vector<8x32xf32>, vector<8x8xf32> -> vector<8x8xf32>
    %234 = math.exp %233 : vector<8x8xf32>
    %235 = arith.mulf %234, %6 : vector<8x8xf32>
    %cst_71 = arith.constant dense<0.000000e+00> : vector<8xf32>
    %236 = vector.multi_reduction <add>, %235, %cst_71 [0] : vector<8x8xf32> to vector<8xf32>
    %237 = vector.shape_cast %236 : vector<8xf32> to vector<1x8xf32>
    %238 = vector.broadcast %237 : vector<1x8xf32> to vector<8x8xf32>
    %239 = arith.mulf %4, %238 : vector<8x8xf32>
    %240 = arith.subf %239, %235 : vector<8x8xf32>
    %c0_i32_72 = arith.constant 0 : i32
    %241 = vector.broadcast %c0_i32_72 : i32 to vector<8x8xi32>
    %242 = arith.cmpi eq, %0, %241 : vector<8x8xi32>
    %243 = tpu.transpose %232, [1, 0] : vector<8x1xf32> -> vector<1x8xf32>
    %244 = vector.shape_cast %243 : vector<1x8xf32> to vector<1x8xf32>
    %245 = vector.broadcast %244 : vector<1x8xf32> to vector<8x8xf32>
    %246 = arith.select %242, %245, %240 : vector<8x8xi1>, vector<8x8xf32>
    %247 = tpu.concatenate %246, %4 in 1 : vector<8x8xf32>, vector<8x8xf32> -> vector<8x16xf32>
    %248 = vector.extract_strided_slice %247 {offsets = [0, 0], sizes = [1, 16], strides = [1, 1]} : vector<8x16xf32> to vector<1x16xf32>
    %249 = vector.extract_strided_slice %247 {offsets = [0, 0], sizes = [1, 1], strides = [1, 1]} : vector<8x16xf32> to vector<1x1xf32>
    %250 = vector.broadcast %249 : vector<1x1xf32> to vector<1x16xf32>
    %251 = arith.divf %248, %250 : vector<1x16xf32>
    %252 = vector.extract_strided_slice %247 {offsets = [0, 0], sizes = [8, 1], strides = [1, 1]} : vector<8x16xf32> to vector<8x1xf32>
    %c0_i32_73 = arith.constant 0 : i32
    %253 = vector.broadcast %c0_i32_73 : i32 to vector<8x1xi32>
    %254 = arith.cmpi eq, %15, %253 : vector<8x1xi32>
    %255 = arith.extui %254 : vector<8x1xi1> to vector<8x1xi32>
    %256 = arith.sitofp %255 : vector<8x1xi32> to vector<8x1xf32>
    %257 = arith.subf %252, %256 : vector<8x1xf32>
    %258 = vector.broadcast %257 : vector<8x1xf32> to vector<8x16xf32>
    %259 = vector.broadcast %251 : vector<1x16xf32> to vector<8x16xf32>
    %260 = arith.mulf %258, %259 : vector<8x16xf32>
    %261 = arith.subf %247, %260 : vector<8x16xf32>
    %262 = vector.extract_strided_slice %261 {offsets = [1, 0], sizes = [1, 16], strides = [1, 1]} : vector<8x16xf32> to vector<1x16xf32>
    %263 = vector.extract_strided_slice %261 {offsets = [1, 1], sizes = [1, 1], strides = [1, 1]} : vector<8x16xf32> to vector<1x1xf32>
    %264 = vector.broadcast %263 : vector<1x1xf32> to vector<1x16xf32>
    %265 = arith.divf %262, %264 : vector<1x16xf32>
    %266 = vector.extract_strided_slice %261 {offsets = [0, 1], sizes = [8, 1], strides = [1, 1]} : vector<8x16xf32> to vector<8x1xf32>
    %c1_i32_74 = arith.constant 1 : i32
    %267 = vector.broadcast %c1_i32_74 : i32 to vector<8x1xi32>
    %268 = arith.cmpi eq, %15, %267 : vector<8x1xi32>
    %269 = arith.extui %268 : vector<8x1xi1> to vector<8x1xi32>
    %270 = arith.sitofp %269 : vector<8x1xi32> to vector<8x1xf32>
    %271 = arith.subf %266, %270 : vector<8x1xf32>
    %272 = vector.broadcast %271 : vector<8x1xf32> to vector<8x16xf32>
    %273 = vector.broadcast %265 : vector<1x16xf32> to vector<8x16xf32>
    %274 = arith.mulf %272, %273 : vector<8x16xf32>
    %275 = arith.subf %261, %274 : vector<8x16xf32>
    %276 = vector.extract_strided_slice %275 {offsets = [2, 0], sizes = [1, 16], strides = [1, 1]} : vector<8x16xf32> to vector<1x16xf32>
    %277 = vector.extract_strided_slice %275 {offsets = [2, 2], sizes = [1, 1], strides = [1, 1]} : vector<8x16xf32> to vector<1x1xf32>
    %278 = vector.broadcast %277 : vector<1x1xf32> to vector<1x16xf32>
    %279 = arith.divf %276, %278 : vector<1x16xf32>
    %280 = vector.extract_strided_slice %275 {offsets = [0, 2], sizes = [8, 1], strides = [1, 1]} : vector<8x16xf32> to vector<8x1xf32>
    %c2_i32_75 = arith.constant 2 : i32
    %281 = vector.broadcast %c2_i32_75 : i32 to vector<8x1xi32>
    %282 = arith.cmpi eq, %15, %281 : vector<8x1xi32>
    %283 = arith.extui %282 : vector<8x1xi1> to vector<8x1xi32>
    %284 = arith.sitofp %283 : vector<8x1xi32> to vector<8x1xf32>
    %285 = arith.subf %280, %284 : vector<8x1xf32>
    %286 = vector.broadcast %285 : vector<8x1xf32> to vector<8x16xf32>
    %287 = vector.broadcast %279 : vector<1x16xf32> to vector<8x16xf32>
    %288 = arith.mulf %286, %287 : vector<8x16xf32>
    %289 = arith.subf %275, %288 : vector<8x16xf32>
    %290 = vector.extract_strided_slice %289 {offsets = [3, 0], sizes = [1, 16], strides = [1, 1]} : vector<8x16xf32> to vector<1x16xf32>
    %291 = vector.extract_strided_slice %289 {offsets = [3, 3], sizes = [1, 1], strides = [1, 1]} : vector<8x16xf32> to vector<1x1xf32>
    %292 = vector.broadcast %291 : vector<1x1xf32> to vector<1x16xf32>
    %293 = arith.divf %290, %292 : vector<1x16xf32>
    %294 = vector.extract_strided_slice %289 {offsets = [0, 3], sizes = [8, 1], strides = [1, 1]} : vector<8x16xf32> to vector<8x1xf32>
    %c3_i32_76 = arith.constant 3 : i32
    %295 = vector.broadcast %c3_i32_76 : i32 to vector<8x1xi32>
    %296 = arith.cmpi eq, %15, %295 : vector<8x1xi32>
    %297 = arith.extui %296 : vector<8x1xi1> to vector<8x1xi32>
    %298 = arith.sitofp %297 : vector<8x1xi32> to vector<8x1xf32>
    %299 = arith.subf %294, %298 : vector<8x1xf32>
    %300 = vector.broadcast %299 : vector<8x1xf32> to vector<8x16xf32>
    %301 = vector.broadcast %293 : vector<1x16xf32> to vector<8x16xf32>
    %302 = arith.mulf %300, %301 : vector<8x16xf32>
    %303 = arith.subf %289, %302 : vector<8x16xf32>
    %304 = vector.extract_strided_slice %303 {offsets = [4, 0], sizes = [1, 16], strides = [1, 1]} : vector<8x16xf32> to vector<1x16xf32>
    %305 = vector.extract_strided_slice %303 {offsets = [4, 4], sizes = [1, 1], strides = [1, 1]} : vector<8x16xf32> to vector<1x1xf32>
    %306 = vector.broadcast %305 : vector<1x1xf32> to vector<1x16xf32>
    %307 = arith.divf %304, %306 : vector<1x16xf32>
    %308 = vector.extract_strided_slice %303 {offsets = [0, 4], sizes = [8, 1], strides = [1, 1]} : vector<8x16xf32> to vector<8x1xf32>
    %c4_i32_77 = arith.constant 4 : i32
    %309 = vector.broadcast %c4_i32_77 : i32 to vector<8x1xi32>
    %310 = arith.cmpi eq, %15, %309 : vector<8x1xi32>
    %311 = arith.extui %310 : vector<8x1xi1> to vector<8x1xi32>
    %312 = arith.sitofp %311 : vector<8x1xi32> to vector<8x1xf32>
    %313 = arith.subf %308, %312 : vector<8x1xf32>
    %314 = vector.broadcast %313 : vector<8x1xf32> to vector<8x16xf32>
    %315 = vector.broadcast %307 : vector<1x16xf32> to vector<8x16xf32>
    %316 = arith.mulf %314, %315 : vector<8x16xf32>
    %317 = arith.subf %303, %316 : vector<8x16xf32>
    %318 = vector.extract_strided_slice %317 {offsets = [5, 0], sizes = [1, 16], strides = [1, 1]} : vector<8x16xf32> to vector<1x16xf32>
    %319 = vector.extract_strided_slice %317 {offsets = [5, 5], sizes = [1, 1], strides = [1, 1]} : vector<8x16xf32> to vector<1x1xf32>
    %320 = vector.broadcast %319 : vector<1x1xf32> to vector<1x16xf32>
    %321 = arith.divf %318, %320 : vector<1x16xf32>
    %322 = vector.extract_strided_slice %317 {offsets = [0, 5], sizes = [8, 1], strides = [1, 1]} : vector<8x16xf32> to vector<8x1xf32>
    %c5_i32_78 = arith.constant 5 : i32
    %323 = vector.broadcast %c5_i32_78 : i32 to vector<8x1xi32>
    %324 = arith.cmpi eq, %15, %323 : vector<8x1xi32>
    %325 = arith.extui %324 : vector<8x1xi1> to vector<8x1xi32>
    %326 = arith.sitofp %325 : vector<8x1xi32> to vector<8x1xf32>
    %327 = arith.subf %322, %326 : vector<8x1xf32>
    %328 = vector.broadcast %327 : vector<8x1xf32> to vector<8x16xf32>
    %329 = vector.broadcast %321 : vector<1x16xf32> to vector<8x16xf32>
    %330 = arith.mulf %328, %329 : vector<8x16xf32>
    %331 = arith.subf %317, %330 : vector<8x16xf32>
    %332 = vector.extract_strided_slice %331 {offsets = [6, 0], sizes = [1, 16], strides = [1, 1]} : vector<8x16xf32> to vector<1x16xf32>
    %333 = vector.extract_strided_slice %331 {offsets = [6, 6], sizes = [1, 1], strides = [1, 1]} : vector<8x16xf32> to vector<1x1xf32>
    %334 = vector.broadcast %333 : vector<1x1xf32> to vector<1x16xf32>
    %335 = arith.divf %332, %334 : vector<1x16xf32>
    %336 = vector.extract_strided_slice %331 {offsets = [0, 6], sizes = [8, 1], strides = [1, 1]} : vector<8x16xf32> to vector<8x1xf32>
    %c6_i32_79 = arith.constant 6 : i32
    %337 = vector.broadcast %c6_i32_79 : i32 to vector<8x1xi32>
    %338 = arith.cmpi eq, %15, %337 : vector<8x1xi32>
    %339 = arith.extui %338 : vector<8x1xi1> to vector<8x1xi32>
    %340 = arith.sitofp %339 : vector<8x1xi32> to vector<8x1xf32>
    %341 = arith.subf %336, %340 : vector<8x1xf32>
    %342 = vector.broadcast %341 : vector<8x1xf32> to vector<8x16xf32>
    %343 = vector.broadcast %335 : vector<1x16xf32> to vector<8x16xf32>
    %344 = arith.mulf %342, %343 : vector<8x16xf32>
    %345 = arith.subf %331, %344 : vector<8x16xf32>
    %346 = vector.extract_strided_slice %345 {offsets = [7, 0], sizes = [1, 16], strides = [1, 1]} : vector<8x16xf32> to vector<1x16xf32>
    %347 = vector.extract_strided_slice %345 {offsets = [7, 7], sizes = [1, 1], strides = [1, 1]} : vector<8x16xf32> to vector<1x1xf32>
    %348 = vector.broadcast %347 : vector<1x1xf32> to vector<1x16xf32>
    %349 = arith.divf %346, %348 : vector<1x16xf32>
    %350 = vector.extract_strided_slice %345 {offsets = [0, 7], sizes = [8, 1], strides = [1, 1]} : vector<8x16xf32> to vector<8x1xf32>
    %c7_i32_80 = arith.constant 7 : i32
    %351 = vector.broadcast %c7_i32_80 : i32 to vector<8x1xi32>
    %352 = arith.cmpi eq, %15, %351 : vector<8x1xi32>
    %353 = arith.extui %352 : vector<8x1xi1> to vector<8x1xi32>
    %354 = arith.sitofp %353 : vector<8x1xi32> to vector<8x1xf32>
    %355 = arith.subf %350, %354 : vector<8x1xf32>
    %356 = vector.broadcast %355 : vector<8x1xf32> to vector<8x16xf32>
    %357 = vector.broadcast %349 : vector<1x16xf32> to vector<8x16xf32>
    %358 = arith.mulf %356, %357 : vector<8x16xf32>
    %359 = arith.subf %345, %358 : vector<8x16xf32>
    %360 = vector.extract_strided_slice %359 {offsets = [0, 8], sizes = [8, 8], strides = [1, 1]} : vector<8x16xf32> to vector<8x8xf32>
    %361 = arith.mulf %360, %4 : vector<8x8xf32>
    %cst_81 = arith.constant dense<0.000000e+00> : vector<8xf32>
    %362 = vector.multi_reduction <add>, %361, %cst_81 [1] : vector<8x8xf32> to vector<8xf32>
    %363 = vector.shape_cast %362 : vector<8xf32> to vector<8x1xf32>
    %364 = tpu.transpose %235, [1, 0] : vector<8x8xf32> -> vector<8x8xf32>
    %365 = vector.broadcast %363 : vector<8x1xf32> to vector<8x8xf32>
    %366 = arith.mulf %10, %365 : vector<8x8xf32>
    %367 = arith.mulf %14, %360 : vector<8x8xf32>
    %368 = arith.subf %366, %367 : vector<8x8xf32>
    %369 = arith.mulf %364, %368 : vector<8x8xf32>
    %cst_82 = arith.constant dense<0.000000e+00> : vector<8xf32>
    %370 = vector.multi_reduction <add>, %369, %cst_82 [1] : vector<8x8xf32> to vector<8xf32>
    %371 = vector.shape_cast %370 : vector<8xf32> to vector<8x1xf32>
    %cst_83 = arith.constant 1.000000e+00 : f32
    %372 = vector.broadcast %cst_83 : f32 to vector<8x1xf32>
    %373 = arith.addf %371, %372 : vector<8x1xf32>
    %cst_84 = arith.constant 1.000000e+00 : f32
    %374 = vector.broadcast %cst_84 : f32 to vector<8x1xf32>
    %375 = arith.divf %374, %373 : vector<8x1xf32>
    %c0_85 = arith.constant 0 : index
    %c0_86 = arith.constant 0 : index
    %376 = vector.load %arg34[%c0_85, %c0_86] : memref<8x64xf32, #tpu.memory_space<vmem>>, vector<8x32xf32>
    tpu.vector_store %arg34[%c0_85, %c0_86], %229 {strides = array<i32>} : memref<8x64xf32, #tpu.memory_space<vmem>>, vector<8x32xf32>,
    %cst_87 = arith.constant dense<0.000000e+00> : vector<8x32xf32>
    %377 = tpu.matmul %369, %229, %cst_87 {dimension_numbers = #tpu.dot_dimension_numbers<[1], [0], [0], [1], [0, 0, 1, 1], [], []>} : vector<8x8xf32>, vector<8x32xf32>, vector<8x32xf32> -> vector<8x32xf32>
    %c0_88 = arith.constant 0 : index
    %c0_89 = arith.constant 0 : index
    %378 = vector.load %arg35[%c0_88, %c0_89] : memref<8x64xf32, #tpu.memory_space<vmem>>, vector<8x32xf32>
    tpu.vector_store %arg35[%c0_88, %c0_89], %377 {strides = array<i32>} : memref<8x64xf32, #tpu.memory_space<vmem>>, vector<8x32xf32>,
    %c0_90 = arith.constant 0 : index
    %c0_91 = arith.constant 0 : index
    %379 = vector.load %arg35[%c0_90, %c0_91] : memref<8x64xf32, #tpu.memory_space<vmem>>, vector<8x32xf32>
    %c0_92 = arith.constant 0 : index
    %c0_93 = arith.constant 0 : index
    %380 = vector.load %arg34[%c0_92, %c0_93] : memref<8x64xf32, #tpu.memory_space<vmem>>, vector<8x32xf32>
    %381 = arith.addf %379, %380 : vector<8x32xf32>
    %c0_94 = arith.constant 0 : index
    %c0_95 = arith.constant 0 : index
    %382 = vector.load %arg9[%c0_94, %c0_95] : memref<32x16xf32, #tpu.memory_space<vmem>>, vector<32x16xf32>
    %cst_96 = arith.constant dense<0.000000e+00> : vector<8x16xf32>
    %383 = tpu.matmul %381, %382, %cst_96 {dimension_numbers = #tpu.dot_dimension_numbers<[1], [0], [0], [1], [0, 0, 1, 1], [], []>} : vector<8x32xf32>, vector<32x16xf32>, vector<8x16xf32> -> vector<8x16xf32>
    %c0_97 = arith.constant 0 : index
    %c0_98 = arith.constant 0 : index
    %384 = vector.load %arg11[%c0_97, %c0_98] : memref<1x16xf32, #tpu.memory_space<vmem>>, vector<1x16xf32>
    %cst_99 = arith.constant 2.000000e+00 : f32
    %385 = vector.broadcast %cst_99 : f32 to vector<1x16xf32>
    %386 = arith.mulf %385, %384 : vector<1x16xf32>
    %387 = vector.broadcast %386 : vector<1x16xf32> to vector<8x16xf32>
    %388 = arith.addf %383, %387 : vector<8x16xf32>
    %389 = vector.broadcast %375 : vector<8x1xf32> to vector<8x16xf32>
    %390 = arith.mulf %388, %389 : vector<8x16xf32>
    %cst_100 = arith.constant 0.000000e+00 : f32
    %391 = vector.broadcast %cst_100 : f32 to vector<8x16xf32>
    %392 = arith.maximumf %390, %391 : vector<8x16xf32>
    %c0_101 = arith.constant 0 : index
    %c32_102 = arith.constant 32 : index
    %393 = vector.load %arg34[%c0_101, %c32_102] : memref<8x64xf32, #tpu.memory_space<vmem>>, vector<8x16xf32>
    tpu.vector_store %arg34[%c0_101, %c32_102], %392 {strides = array<i32>} : memref<8x64xf32, #tpu.memory_space<vmem>>, vector<8x16xf32>,
    %cst_103 = arith.constant dense<0.000000e+00> : vector<8x16xf32>
    %394 = tpu.matmul %369, %392, %cst_103 {dimension_numbers = #tpu.dot_dimension_numbers<[1], [0], [0], [1], [0, 0, 1, 1], [], []>} : vector<8x8xf32>, vector<8x16xf32>, vector<8x16xf32> -> vector<8x16xf32>
    %c0_104 = arith.constant 0 : index
    %c32_105 = arith.constant 32 : index
    %395 = vector.load %arg35[%c0_104, %c32_105] : memref<8x64xf32, #tpu.memory_space<vmem>>, vector<8x16xf32>
    tpu.vector_store %arg35[%c0_104, %c32_105], %394 {strides = array<i32>} : memref<8x64xf32, #tpu.memory_space<vmem>>, vector<8x16xf32>,
    %c0_106 = arith.constant 0 : index
    %c0_107 = arith.constant 0 : index
    %396 = vector.load %arg35[%c0_106, %c0_107] : memref<8x64xf32, #tpu.memory_space<vmem>>, vector<8x48xf32>
    %c0_108 = arith.constant 0 : index
    %c0_109 = arith.constant 0 : index
    %397 = vector.load %arg34[%c0_108, %c0_109] : memref<8x64xf32, #tpu.memory_space<vmem>>, vector<8x48xf32>
    %398 = arith.addf %396, %397 : vector<8x48xf32>
    %c0_110 = arith.constant 0 : index
    %c0_111 = arith.constant 0 : index
    %399 = vector.load %arg10[%c0_110, %c0_111] : memref<48x16xf32, #tpu.memory_space<vmem>>, vector<48x16xf32>
    %cst_112 = arith.constant dense<0.000000e+00> : vector<8x16xf32>
    %400 = tpu.matmul %398, %399, %cst_112 {dimension_numbers = #tpu.dot_dimension_numbers<[1], [0], [0], [1], [0, 0, 1, 1], [], []>} : vector<8x48xf32>, vector<48x16xf32>, vector<8x16xf32> -> vector<8x16xf32>
    %c0_113 = arith.constant 0 : index
    %c0_114 = arith.constant 0 : index
    %401 = vector.load %arg12[%c0_113, %c0_114] : memref<1x16xf32, #tpu.memory_space<vmem>>, vector<1x16xf32>
    %cst_115 = arith.constant 2.000000e+00 : f32
    %402 = vector.broadcast %cst_115 : f32 to vector<1x16xf32>
    %403 = arith.mulf %402, %401 : vector<1x16xf32>
    %404 = vector.broadcast %403 : vector<1x16xf32> to vector<8x16xf32>
    %405 = arith.addf %400, %404 : vector<8x16xf32>
    %406 = vector.broadcast %375 : vector<8x1xf32> to vector<8x16xf32>
    %407 = arith.mulf %405, %406 : vector<8x16xf32>
    %cst_116 = arith.constant 0.000000e+00 : f32
    %408 = vector.broadcast %cst_116 : f32 to vector<8x16xf32>
    %409 = arith.maximumf %407, %408 : vector<8x16xf32>
    %c0_117 = arith.constant 0 : index
    %c48_118 = arith.constant 48 : index
    %410 = vector.load %arg34[%c0_117, %c48_118] : memref<8x64xf32, #tpu.memory_space<vmem>>, vector<8x16xf32>
    tpu.vector_store %arg34[%c0_117, %c48_118], %409 {strides = array<i32>} : memref<8x64xf32, #tpu.memory_space<vmem>>, vector<8x16xf32>,
    %c0_119 = arith.constant 0 : index
    %c32_120 = arith.constant 32 : index
    %411 = vector.load %arg34[%c0_119, %c32_120] : memref<8x64xf32, #tpu.memory_space<vmem>>, vector<8x32xf32>
    %412 = arith.addf %411, %229 : vector<8x32xf32>
    %c0_121 = arith.constant 0 : index
    %c0_122 = arith.constant 0 : index
    %413 = vector.load %arg13[%c0_121, %c0_122] : memref<32x32xf32, #tpu.memory_space<vmem>>, vector<32x32xf32>
    %cst_123 = arith.constant dense<0.000000e+00> : vector<8x32xf32>
    %414 = tpu.matmul %412, %413, %cst_123 {dimension_numbers = #tpu.dot_dimension_numbers<[1], [0], [0], [1], [0, 0, 1, 1], [], []>} : vector<8x32xf32>, vector<32x32xf32>, vector<8x32xf32> -> vector<8x32xf32>
    %c0_124 = arith.constant 0 : index
    %c0_125 = arith.constant 0 : index
    %415 = vector.load %arg14[%c0_124, %c0_125] : memref<1x32xf32, #tpu.memory_space<vmem>>, vector<1x32xf32>
    %416 = vector.broadcast %415 : vector<1x32xf32> to vector<8x32xf32>
    %417 = arith.addf %414, %416 : vector<8x32xf32>
    %418 = tpu.concatenate %228, %417 in 0 : vector<8x32xf32>, vector<8x32xf32> -> vector<16x32xf32>
    %c0_126 = arith.constant 0 : index
    %c0_127 = arith.constant 0 : index
    %419 = vector.load %arg15[%c0_126, %c0_127] : memref<32x32xf32, #tpu.memory_space<vmem>>, vector<32x32xf32>
    %cst_128 = arith.constant dense<0.000000e+00> : vector<16x32xf32>
    %420 = tpu.matmul %418, %419, %cst_128 {dimension_numbers = #tpu.dot_dimension_numbers<[1], [0], [0], [1], [0, 0, 1, 1], [], []>} : vector<16x32xf32>, vector<32x32xf32>, vector<16x32xf32> -> vector<16x32xf32>
    %c0_129 = arith.constant 0 : index
    %c0_130 = arith.constant 0 : index
    %421 = vector.load %arg16[%c0_129, %c0_130] : memref<1x32xf32, #tpu.memory_space<vmem>>, vector<1x32xf32>
    %422 = vector.broadcast %421 : vector<1x32xf32> to vector<16x32xf32>
    %423 = arith.addf %420, %422 : vector<16x32xf32>
    %cst_131 = arith.constant 0.176776692 : f32
    %424 = vector.broadcast %cst_131 : f32 to vector<16x32xf32>
    %425 = arith.mulf %423, %424 : vector<16x32xf32>
    %c0_132 = arith.constant 0 : index
    %c0_133 = arith.constant 0 : index
    %426 = vector.load %arg17[%c0_132, %c0_133] : memref<32x32xf32, #tpu.memory_space<vmem>>, vector<32x32xf32>
    %cst_134 = arith.constant dense<0.000000e+00> : vector<16x32xf32>
    %427 = tpu.matmul %418, %426, %cst_134 {dimension_numbers = #tpu.dot_dimension_numbers<[1], [0], [0], [1], [0, 0, 1, 1], [], []>} : vector<16x32xf32>, vector<32x32xf32>, vector<16x32xf32> -> vector<16x32xf32>
    %c0_135 = arith.constant 0 : index
    %c0_136 = arith.constant 0 : index
    %428 = vector.load %arg18[%c0_135, %c0_136] : memref<1x32xf32, #tpu.memory_space<vmem>>, vector<1x32xf32>
    %429 = vector.broadcast %428 : vector<1x32xf32> to vector<16x32xf32>
    %430 = arith.addf %427, %429 : vector<16x32xf32>
    %c0_137 = arith.constant 0 : index
    %c0_138 = arith.constant 0 : index
    %431 = vector.load %arg19[%c0_137, %c0_138] : memref<32x1xf32, #tpu.memory_space<vmem>>, vector<32x1xf32>
    %cst_139 = arith.constant dense<0.000000e+00> : vector<16x1xf32>
    %432 = tpu.matmul %418, %431, %cst_139 {dimension_numbers = #tpu.dot_dimension_numbers<[1], [0], [0], [1], [0, 0, 1, 1], [], []>} : vector<16x32xf32>, vector<32x1xf32>, vector<16x1xf32> -> vector<16x1xf32>
    %c0_140 = arith.constant 0 : index
    %c0_141 = arith.constant 0 : index
    %433 = vector.load %arg20[%c0_140, %c0_141] : memref<1x1xf32, #tpu.memory_space<vmem>>, vector<1x1xf32>
    %434 = vector.broadcast %433 : vector<1x1xf32> to vector<16x1xf32>
    %435 = arith.addf %432, %434 : vector<16x1xf32>
    %436 = math.exp %435 : vector<16x1xf32>
    %437 = vector.extract_strided_slice %418 {offsets = [0, 0], sizes = [8, 32], strides = [1, 1]} : vector<16x32xf32> to vector<8x32xf32>
    %438 = vector.extract_strided_slice %425 {offsets = [0, 0], sizes = [8, 32], strides = [1, 1]} : vector<16x32xf32> to vector<8x32xf32>
    %439 = vector.extract_strided_slice %430 {offsets = [0, 0], sizes = [8, 32], strides = [1, 1]} : vector<16x32xf32> to vector<8x32xf32>
    %440 = vector.extract_strided_slice %436 {offsets = [0, 0], sizes = [8, 1], strides = [1, 1]} : vector<16x1xf32> to vector<8x1xf32>
    %cst_142 = arith.constant dense<0.000000e+00> : vector<8x8xf32>
    %441 = tpu.matmul %438, %439, %cst_142 {dimension_numbers = #tpu.dot_dimension_numbers<[1], [1], [0], [0], [0, 0, 1, 0], [], []>} : vector<8x32xf32>, vector<8x32xf32>, vector<8x8xf32> -> vector<8x8xf32>
    %442 = math.exp %441 : vector<8x8xf32>
    %443 = arith.mulf %442, %6 : vector<8x8xf32>
    %cst_143 = arith.constant dense<0.000000e+00> : vector<8xf32>
    %444 = vector.multi_reduction <add>, %443, %cst_143 [0] : vector<8x8xf32> to vector<8xf32>
    %445 = vector.shape_cast %444 : vector<8xf32> to vector<1x8xf32>
    %446 = vector.broadcast %445 : vector<1x8xf32> to vector<8x8xf32>
    %447 = arith.mulf %4, %446 : vector<8x8xf32>
    %448 = arith.subf %447, %443 : vector<8x8xf32>
    %c0_i32_144 = arith.constant 0 : i32
    %449 = vector.broadcast %c0_i32_144 : i32 to vector<8x8xi32>
    %450 = arith.cmpi eq, %0, %449 : vector<8x8xi32>
    %451 = tpu.transpose %440, [1, 0] : vector<8x1xf32> -> vector<1x8xf32>
    %452 = vector.shape_cast %451 : vector<1x8xf32> to vector<1x8xf32>
    %453 = vector.broadcast %452 : vector<1x8xf32> to vector<8x8xf32>
    %454 = arith.select %450, %453, %448 : vector<8x8xi1>, vector<8x8xf32>
    %455 = tpu.concatenate %454, %4 in 1 : vector<8x8xf32>, vector<8x8xf32> -> vector<8x16xf32>
    %456 = vector.extract_strided_slice %455 {offsets = [0, 0], sizes = [1, 16], strides = [1, 1]} : vector<8x16xf32> to vector<1x16xf32>
    %457 = vector.extract_strided_slice %455 {offsets = [0, 0], sizes = [1, 1], strides = [1, 1]} : vector<8x16xf32> to vector<1x1xf32>
    %458 = vector.broadcast %457 : vector<1x1xf32> to vector<1x16xf32>
    %459 = arith.divf %456, %458 : vector<1x16xf32>
    %460 = vector.extract_strided_slice %455 {offsets = [0, 0], sizes = [8, 1], strides = [1, 1]} : vector<8x16xf32> to vector<8x1xf32>
    %c0_i32_145 = arith.constant 0 : i32
    %461 = vector.broadcast %c0_i32_145 : i32 to vector<8x1xi32>
    %462 = arith.cmpi eq, %15, %461 : vector<8x1xi32>
    %463 = arith.extui %462 : vector<8x1xi1> to vector<8x1xi32>
    %464 = arith.sitofp %463 : vector<8x1xi32> to vector<8x1xf32>
    %465 = arith.subf %460, %464 : vector<8x1xf32>
    %466 = vector.broadcast %465 : vector<8x1xf32> to vector<8x16xf32>
    %467 = vector.broadcast %459 : vector<1x16xf32> to vector<8x16xf32>
    %468 = arith.mulf %466, %467 : vector<8x16xf32>
    %469 = arith.subf %455, %468 : vector<8x16xf32>
    %470 = vector.extract_strided_slice %469 {offsets = [1, 0], sizes = [1, 16], strides = [1, 1]} : vector<8x16xf32> to vector<1x16xf32>
    %471 = vector.extract_strided_slice %469 {offsets = [1, 1], sizes = [1, 1], strides = [1, 1]} : vector<8x16xf32> to vector<1x1xf32>
    %472 = vector.broadcast %471 : vector<1x1xf32> to vector<1x16xf32>
    %473 = arith.divf %470, %472 : vector<1x16xf32>
    %474 = vector.extract_strided_slice %469 {offsets = [0, 1], sizes = [8, 1], strides = [1, 1]} : vector<8x16xf32> to vector<8x1xf32>
    %c1_i32_146 = arith.constant 1 : i32
    %475 = vector.broadcast %c1_i32_146 : i32 to vector<8x1xi32>
    %476 = arith.cmpi eq, %15, %475 : vector<8x1xi32>
    %477 = arith.extui %476 : vector<8x1xi1> to vector<8x1xi32>
    %478 = arith.sitofp %477 : vector<8x1xi32> to vector<8x1xf32>
    %479 = arith.subf %474, %478 : vector<8x1xf32>
    %480 = vector.broadcast %479 : vector<8x1xf32> to vector<8x16xf32>
    %481 = vector.broadcast %473 : vector<1x16xf32> to vector<8x16xf32>
    %482 = arith.mulf %480, %481 : vector<8x16xf32>
    %483 = arith.subf %469, %482 : vector<8x16xf32>
    %484 = vector.extract_strided_slice %483 {offsets = [2, 0], sizes = [1, 16], strides = [1, 1]} : vector<8x16xf32> to vector<1x16xf32>
    %485 = vector.extract_strided_slice %483 {offsets = [2, 2], sizes = [1, 1], strides = [1, 1]} : vector<8x16xf32> to vector<1x1xf32>
    %486 = vector.broadcast %485 : vector<1x1xf32> to vector<1x16xf32>
    %487 = arith.divf %484, %486 : vector<1x16xf32>
    %488 = vector.extract_strided_slice %483 {offsets = [0, 2], sizes = [8, 1], strides = [1, 1]} : vector<8x16xf32> to vector<8x1xf32>
    %c2_i32_147 = arith.constant 2 : i32
    %489 = vector.broadcast %c2_i32_147 : i32 to vector<8x1xi32>
    %490 = arith.cmpi eq, %15, %489 : vector<8x1xi32>
    %491 = arith.extui %490 : vector<8x1xi1> to vector<8x1xi32>
    %492 = arith.sitofp %491 : vector<8x1xi32> to vector<8x1xf32>
    %493 = arith.subf %488, %492 : vector<8x1xf32>
    %494 = vector.broadcast %493 : vector<8x1xf32> to vector<8x16xf32>
    %495 = vector.broadcast %487 : vector<1x16xf32> to vector<8x16xf32>
    %496 = arith.mulf %494, %495 : vector<8x16xf32>
    %497 = arith.subf %483, %496 : vector<8x16xf32>
    %498 = vector.extract_strided_slice %497 {offsets = [3, 0], sizes = [1, 16], strides = [1, 1]} : vector<8x16xf32> to vector<1x16xf32>
    %499 = vector.extract_strided_slice %497 {offsets = [3, 3], sizes = [1, 1], strides = [1, 1]} : vector<8x16xf32> to vector<1x1xf32>
    %500 = vector.broadcast %499 : vector<1x1xf32> to vector<1x16xf32>
    %501 = arith.divf %498, %500 : vector<1x16xf32>
    %502 = vector.extract_strided_slice %497 {offsets = [0, 3], sizes = [8, 1], strides = [1, 1]} : vector<8x16xf32> to vector<8x1xf32>
    %c3_i32_148 = arith.constant 3 : i32
    %503 = vector.broadcast %c3_i32_148 : i32 to vector<8x1xi32>
    %504 = arith.cmpi eq, %15, %503 : vector<8x1xi32>
    %505 = arith.extui %504 : vector<8x1xi1> to vector<8x1xi32>
    %506 = arith.sitofp %505 : vector<8x1xi32> to vector<8x1xf32>
    %507 = arith.subf %502, %506 : vector<8x1xf32>
    %508 = vector.broadcast %507 : vector<8x1xf32> to vector<8x16xf32>
    %509 = vector.broadcast %501 : vector<1x16xf32> to vector<8x16xf32>
    %510 = arith.mulf %508, %509 : vector<8x16xf32>
    %511 = arith.subf %497, %510 : vector<8x16xf32>
    %512 = vector.extract_strided_slice %511 {offsets = [4, 0], sizes = [1, 16], strides = [1, 1]} : vector<8x16xf32> to vector<1x16xf32>
    %513 = vector.extract_strided_slice %511 {offsets = [4, 4], sizes = [1, 1], strides = [1, 1]} : vector<8x16xf32> to vector<1x1xf32>
    %514 = vector.broadcast %513 : vector<1x1xf32> to vector<1x16xf32>
    %515 = arith.divf %512, %514 : vector<1x16xf32>
    %516 = vector.extract_strided_slice %511 {offsets = [0, 4], sizes = [8, 1], strides = [1, 1]} : vector<8x16xf32> to vector<8x1xf32>
    %c4_i32_149 = arith.constant 4 : i32
    %517 = vector.broadcast %c4_i32_149 : i32 to vector<8x1xi32>
    %518 = arith.cmpi eq, %15, %517 : vector<8x1xi32>
    %519 = arith.extui %518 : vector<8x1xi1> to vector<8x1xi32>
    %520 = arith.sitofp %519 : vector<8x1xi32> to vector<8x1xf32>
    %521 = arith.subf %516, %520 : vector<8x1xf32>
    %522 = vector.broadcast %521 : vector<8x1xf32> to vector<8x16xf32>
    %523 = vector.broadcast %515 : vector<1x16xf32> to vector<8x16xf32>
    %524 = arith.mulf %522, %523 : vector<8x16xf32>
    %525 = arith.subf %511, %524 : vector<8x16xf32>
    %526 = vector.extract_strided_slice %525 {offsets = [5, 0], sizes = [1, 16], strides = [1, 1]} : vector<8x16xf32> to vector<1x16xf32>
    %527 = vector.extract_strided_slice %525 {offsets = [5, 5], sizes = [1, 1], strides = [1, 1]} : vector<8x16xf32> to vector<1x1xf32>
    %528 = vector.broadcast %527 : vector<1x1xf32> to vector<1x16xf32>
    %529 = arith.divf %526, %528 : vector<1x16xf32>
    %530 = vector.extract_strided_slice %525 {offsets = [0, 5], sizes = [8, 1], strides = [1, 1]} : vector<8x16xf32> to vector<8x1xf32>
    %c5_i32_150 = arith.constant 5 : i32
    %531 = vector.broadcast %c5_i32_150 : i32 to vector<8x1xi32>
    %532 = arith.cmpi eq, %15, %531 : vector<8x1xi32>
    %533 = arith.extui %532 : vector<8x1xi1> to vector<8x1xi32>
    %534 = arith.sitofp %533 : vector<8x1xi32> to vector<8x1xf32>
    %535 = arith.subf %530, %534 : vector<8x1xf32>
    %536 = vector.broadcast %535 : vector<8x1xf32> to vector<8x16xf32>
    %537 = vector.broadcast %529 : vector<1x16xf32> to vector<8x16xf32>
    %538 = arith.mulf %536, %537 : vector<8x16xf32>
    %539 = arith.subf %525, %538 : vector<8x16xf32>
    %540 = vector.extract_strided_slice %539 {offsets = [6, 0], sizes = [1, 16], strides = [1, 1]} : vector<8x16xf32> to vector<1x16xf32>
    %541 = vector.extract_strided_slice %539 {offsets = [6, 6], sizes = [1, 1], strides = [1, 1]} : vector<8x16xf32> to vector<1x1xf32>
    %542 = vector.broadcast %541 : vector<1x1xf32> to vector<1x16xf32>
    %543 = arith.divf %540, %542 : vector<1x16xf32>
    %544 = vector.extract_strided_slice %539 {offsets = [0, 6], sizes = [8, 1], strides = [1, 1]} : vector<8x16xf32> to vector<8x1xf32>
    %c6_i32_151 = arith.constant 6 : i32
    %545 = vector.broadcast %c6_i32_151 : i32 to vector<8x1xi32>
    %546 = arith.cmpi eq, %15, %545 : vector<8x1xi32>
    %547 = arith.extui %546 : vector<8x1xi1> to vector<8x1xi32>
    %548 = arith.sitofp %547 : vector<8x1xi32> to vector<8x1xf32>
    %549 = arith.subf %544, %548 : vector<8x1xf32>
    %550 = vector.broadcast %549 : vector<8x1xf32> to vector<8x16xf32>
    %551 = vector.broadcast %543 : vector<1x16xf32> to vector<8x16xf32>
    %552 = arith.mulf %550, %551 : vector<8x16xf32>
    %553 = arith.subf %539, %552 : vector<8x16xf32>
    %554 = vector.extract_strided_slice %553 {offsets = [7, 0], sizes = [1, 16], strides = [1, 1]} : vector<8x16xf32> to vector<1x16xf32>
    %555 = vector.extract_strided_slice %553 {offsets = [7, 7], sizes = [1, 1], strides = [1, 1]} : vector<8x16xf32> to vector<1x1xf32>
    %556 = vector.broadcast %555 : vector<1x1xf32> to vector<1x16xf32>
    %557 = arith.divf %554, %556 : vector<1x16xf32>
    %558 = vector.extract_strided_slice %553 {offsets = [0, 7], sizes = [8, 1], strides = [1, 1]} : vector<8x16xf32> to vector<8x1xf32>
    %c7_i32_152 = arith.constant 7 : i32
    %559 = vector.broadcast %c7_i32_152 : i32 to vector<8x1xi32>
    %560 = arith.cmpi eq, %15, %559 : vector<8x1xi32>
    %561 = arith.extui %560 : vector<8x1xi1> to vector<8x1xi32>
    %562 = arith.sitofp %561 : vector<8x1xi32> to vector<8x1xf32>
    %563 = arith.subf %558, %562 : vector<8x1xf32>
    %564 = vector.broadcast %563 : vector<8x1xf32> to vector<8x16xf32>
    %565 = vector.broadcast %557 : vector<1x16xf32> to vector<8x16xf32>
    %566 = arith.mulf %564, %565 : vector<8x16xf32>
    %567 = arith.subf %553, %566 : vector<8x16xf32>
    %568 = vector.extract_strided_slice %567 {offsets = [0, 8], sizes = [8, 8], strides = [1, 1]} : vector<8x16xf32> to vector<8x8xf32>
    %569 = arith.mulf %568, %4 : vector<8x8xf32>
    %cst_153 = arith.constant dense<0.000000e+00> : vector<8xf32>
    %570 = vector.multi_reduction <add>, %569, %cst_153 [1] : vector<8x8xf32> to vector<8xf32>
    %571 = vector.shape_cast %570 : vector<8xf32> to vector<8x1xf32>
    %572 = tpu.transpose %443, [1, 0] : vector<8x8xf32> -> vector<8x8xf32>
    %573 = vector.broadcast %571 : vector<8x1xf32> to vector<8x8xf32>
    %574 = arith.mulf %10, %573 : vector<8x8xf32>
    %575 = arith.mulf %14, %568 : vector<8x8xf32>
    %576 = arith.subf %574, %575 : vector<8x8xf32>
    %577 = arith.mulf %572, %576 : vector<8x8xf32>
    %cst_154 = arith.constant dense<0.000000e+00> : vector<8xf32>
    %578 = vector.multi_reduction <add>, %577, %cst_154 [1] : vector<8x8xf32> to vector<8xf32>
    %579 = vector.shape_cast %578 : vector<8xf32> to vector<8x1xf32>
    %cst_155 = arith.constant 1.000000e+00 : f32
    %580 = vector.broadcast %cst_155 : f32 to vector<8x1xf32>
    %581 = arith.addf %579, %580 : vector<8x1xf32>
    %cst_156 = arith.constant 1.000000e+00 : f32
    %582 = vector.broadcast %cst_156 : f32 to vector<8x1xf32>
    %583 = arith.divf %582, %581 : vector<8x1xf32>
    %c0_157 = arith.constant 0 : index
    %c0_158 = arith.constant 0 : index
    %584 = vector.load %arg34[%c0_157, %c0_158] : memref<8x64xf32, #tpu.memory_space<vmem>>, vector<8x32xf32>
    tpu.vector_store %arg34[%c0_157, %c0_158], %437 {strides = array<i32>} : memref<8x64xf32, #tpu.memory_space<vmem>>, vector<8x32xf32>,
    %cst_159 = arith.constant dense<0.000000e+00> : vector<8x32xf32>
    %585 = tpu.matmul %577, %437, %cst_159 {dimension_numbers = #tpu.dot_dimension_numbers<[1], [0], [0], [1], [0, 0, 1, 1], [], []>} : vector<8x8xf32>, vector<8x32xf32>, vector<8x32xf32> -> vector<8x32xf32>
    %c0_160 = arith.constant 0 : index
    %c0_161 = arith.constant 0 : index
    %586 = vector.load %arg35[%c0_160, %c0_161] : memref<8x64xf32, #tpu.memory_space<vmem>>, vector<8x32xf32>
    tpu.vector_store %arg35[%c0_160, %c0_161], %585 {strides = array<i32>} : memref<8x64xf32, #tpu.memory_space<vmem>>, vector<8x32xf32>,
    %c0_162 = arith.constant 0 : index
    %c0_163 = arith.constant 0 : index
    %587 = vector.load %arg35[%c0_162, %c0_163] : memref<8x64xf32, #tpu.memory_space<vmem>>, vector<8x32xf32>
    %c0_164 = arith.constant 0 : index
    %c0_165 = arith.constant 0 : index
    %588 = vector.load %arg34[%c0_164, %c0_165] : memref<8x64xf32, #tpu.memory_space<vmem>>, vector<8x32xf32>
    %589 = arith.addf %587, %588 : vector<8x32xf32>
    %c0_166 = arith.constant 0 : index
    %c0_167 = arith.constant 0 : index
    %590 = vector.load %arg21[%c0_166, %c0_167] : memref<32x8xf32, #tpu.memory_space<vmem>>, vector<32x8xf32>
    %cst_168 = arith.constant dense<0.000000e+00> : vector<8x8xf32>
    %591 = tpu.matmul %589, %590, %cst_168 {dimension_numbers = #tpu.dot_dimension_numbers<[1], [0], [0], [1], [0, 0, 1, 1], [], []>} : vector<8x32xf32>, vector<32x8xf32>, vector<8x8xf32> -> vector<8x8xf32>
    %c0_169 = arith.constant 0 : index
    %c0_170 = arith.constant 0 : index
    %592 = vector.load %arg25[%c0_169, %c0_170] : memref<1x8xf32, #tpu.memory_space<vmem>>, vector<1x8xf32>
    %cst_171 = arith.constant 2.000000e+00 : f32
    %593 = vector.broadcast %cst_171 : f32 to vector<1x8xf32>
    %594 = arith.mulf %593, %592 : vector<1x8xf32>
    %595 = vector.broadcast %594 : vector<1x8xf32> to vector<8x8xf32>
    %596 = arith.addf %591, %595 : vector<8x8xf32>
    %597 = vector.broadcast %583 : vector<8x1xf32> to vector<8x8xf32>
    %598 = arith.mulf %596, %597 : vector<8x8xf32>
    %cst_172 = arith.constant 0.000000e+00 : f32
    %599 = vector.broadcast %cst_172 : f32 to vector<8x8xf32>
    %600 = arith.maximumf %598, %599 : vector<8x8xf32>
    %c0_173 = arith.constant 0 : index
    %c32_174 = arith.constant 32 : index
    %601 = vector.load %arg34[%c0_173, %c32_174] : memref<8x64xf32, #tpu.memory_space<vmem>>, vector<8x8xf32>
    tpu.vector_store %arg34[%c0_173, %c32_174], %600 {strides = array<i32>} : memref<8x64xf32, #tpu.memory_space<vmem>>, vector<8x8xf32>,
    %cst_175 = arith.constant dense<0.000000e+00> : vector<8x8xf32>
    %602 = tpu.matmul %577, %600, %cst_175 {dimension_numbers = #tpu.dot_dimension_numbers<[1], [0], [0], [1], [0, 0, 1, 1], [], []>} : vector<8x8xf32>, vector<8x8xf32>, vector<8x8xf32> -> vector<8x8xf32>
    %c0_176 = arith.constant 0 : index
    %c32_177 = arith.constant 32 : index
    %603 = vector.load %arg35[%c0_176, %c32_177] : memref<8x64xf32, #tpu.memory_space<vmem>>, vector<8x8xf32>
    tpu.vector_store %arg35[%c0_176, %c32_177], %602 {strides = array<i32>} : memref<8x64xf32, #tpu.memory_space<vmem>>, vector<8x8xf32>,
    %c0_178 = arith.constant 0 : index
    %c0_179 = arith.constant 0 : index
    %604 = vector.load %arg35[%c0_178, %c0_179] : memref<8x64xf32, #tpu.memory_space<vmem>>, vector<8x40xf32>
    %c0_180 = arith.constant 0 : index
    %c0_181 = arith.constant 0 : index
    %605 = vector.load %arg34[%c0_180, %c0_181] : memref<8x64xf32, #tpu.memory_space<vmem>>, vector<8x40xf32>
    %606 = arith.addf %604, %605 : vector<8x40xf32>
    %c0_182 = arith.constant 0 : index
    %c0_183 = arith.constant 0 : index
    %607 = vector.load %arg22[%c0_182, %c0_183] : memref<40x8xf32, #tpu.memory_space<vmem>>, vector<40x8xf32>
    %cst_184 = arith.constant dense<0.000000e+00> : vector<8x8xf32>
    %608 = tpu.matmul %606, %607, %cst_184 {dimension_numbers = #tpu.dot_dimension_numbers<[1], [0], [0], [1], [0, 0, 1, 1], [], []>} : vector<8x40xf32>, vector<40x8xf32>, vector<8x8xf32> -> vector<8x8xf32>
    %c0_185 = arith.constant 0 : index
    %c0_186 = arith.constant 0 : index
    %609 = vector.load %arg26[%c0_185, %c0_186] : memref<1x8xf32, #tpu.memory_space<vmem>>, vector<1x8xf32>
    %cst_187 = arith.constant 2.000000e+00 : f32
    %610 = vector.broadcast %cst_187 : f32 to vector<1x8xf32>
    %611 = arith.mulf %610, %609 : vector<1x8xf32>
    %612 = vector.broadcast %611 : vector<1x8xf32> to vector<8x8xf32>
    %613 = arith.addf %608, %612 : vector<8x8xf32>
    %614 = vector.broadcast %583 : vector<8x1xf32> to vector<8x8xf32>
    %615 = arith.mulf %613, %614 : vector<8x8xf32>
    %cst_188 = arith.constant 0.000000e+00 : f32
    %616 = vector.broadcast %cst_188 : f32 to vector<8x8xf32>
    %617 = arith.maximumf %615, %616 : vector<8x8xf32>
    %c0_189 = arith.constant 0 : index
    %c40 = arith.constant 40 : index
    %618 = vector.load %arg34[%c0_189, %c40] : memref<8x64xf32, #tpu.memory_space<vmem>>, vector<8x8xf32>
    tpu.vector_store %arg34[%c0_189, %c40], %617 {strides = array<i32>} : memref<8x64xf32, #tpu.memory_space<vmem>>, vector<8x8xf32>,
    %cst_190 = arith.constant dense<0.000000e+00> : vector<8x8xf32>
    %619 = tpu.matmul %577, %617, %cst_190 {dimension_numbers = #tpu.dot_dimension_numbers<[1], [0], [0], [1], [0, 0, 1, 1], [], []>} : vector<8x8xf32>, vector<8x8xf32>, vector<8x8xf32> -> vector<8x8xf32>
    %c0_191 = arith.constant 0 : index
    %c40_192 = arith.constant 40 : index
    %620 = vector.load %arg35[%c0_191, %c40_192] : memref<8x64xf32, #tpu.memory_space<vmem>>, vector<8x8xf32>
    tpu.vector_store %arg35[%c0_191, %c40_192], %619 {strides = array<i32>} : memref<8x64xf32, #tpu.memory_space<vmem>>, vector<8x8xf32>,
    %c0_193 = arith.constant 0 : index
    %c0_194 = arith.constant 0 : index
    %621 = vector.load %arg35[%c0_193, %c0_194] : memref<8x64xf32, #tpu.memory_space<vmem>>, vector<8x48xf32>
    %c0_195 = arith.constant 0 : index
    %c0_196 = arith.constant 0 : index
    %622 = vector.load %arg34[%c0_195, %c0_196] : memref<8x64xf32, #tpu.memory_space<vmem>>, vector<8x48xf32>
    %623 = arith.addf %621, %622 : vector<8x48xf32>
    %c0_197 = arith.constant 0 : index
    %c0_198 = arith.constant 0 : index
    %624 = vector.load %arg23[%c0_197, %c0_198] : memref<48x8xf32, #tpu.memory_space<vmem>>, vector<48x8xf32>
    %cst_199 = arith.constant dense<0.000000e+00> : vector<8x8xf32>
    %625 = tpu.matmul %623, %624, %cst_199 {dimension_numbers = #tpu.dot_dimension_numbers<[1], [0], [0], [1], [0, 0, 1, 1], [], []>} : vector<8x48xf32>, vector<48x8xf32>, vector<8x8xf32> -> vector<8x8xf32>
    %c0_200 = arith.constant 0 : index
    %c0_201 = arith.constant 0 : index
    %626 = vector.load %arg27[%c0_200, %c0_201] : memref<1x8xf32, #tpu.memory_space<vmem>>, vector<1x8xf32>
    %cst_202 = arith.constant 2.000000e+00 : f32
    %627 = vector.broadcast %cst_202 : f32 to vector<1x8xf32>
    %628 = arith.mulf %627, %626 : vector<1x8xf32>
    %629 = vector.broadcast %628 : vector<1x8xf32> to vector<8x8xf32>
    %630 = arith.addf %625, %629 : vector<8x8xf32>
    %631 = vector.broadcast %583 : vector<8x1xf32> to vector<8x8xf32>
    %632 = arith.mulf %630, %631 : vector<8x8xf32>
    %cst_203 = arith.constant 0.000000e+00 : f32
    %633 = vector.broadcast %cst_203 : f32 to vector<8x8xf32>
    %634 = arith.maximumf %632, %633 : vector<8x8xf32>
    %c0_204 = arith.constant 0 : index
    %c48_205 = arith.constant 48 : index
    %635 = vector.load %arg34[%c0_204, %c48_205] : memref<8x64xf32, #tpu.memory_space<vmem>>, vector<8x8xf32>
    tpu.vector_store %arg34[%c0_204, %c48_205], %634 {strides = array<i32>} : memref<8x64xf32, #tpu.memory_space<vmem>>, vector<8x8xf32>,
    %cst_206 = arith.constant dense<0.000000e+00> : vector<8x8xf32>
    %636 = tpu.matmul %577, %634, %cst_206 {dimension_numbers = #tpu.dot_dimension_numbers<[1], [0], [0], [1], [0, 0, 1, 1], [], []>} : vector<8x8xf32>, vector<8x8xf32>, vector<8x8xf32> -> vector<8x8xf32>
    %c0_207 = arith.constant 0 : index
    %c48_208 = arith.constant 48 : index
    %637 = vector.load %arg35[%c0_207, %c48_208] : memref<8x64xf32, #tpu.memory_space<vmem>>, vector<8x8xf32>
    tpu.vector_store %arg35[%c0_207, %c48_208], %636 {strides = array<i32>} : memref<8x64xf32, #tpu.memory_space<vmem>>, vector<8x8xf32>,
    %c0_209 = arith.constant 0 : index
    %c0_210 = arith.constant 0 : index
    %638 = vector.load %arg35[%c0_209, %c0_210] : memref<8x64xf32, #tpu.memory_space<vmem>>, vector<8x56xf32>
    %c0_211 = arith.constant 0 : index
    %c0_212 = arith.constant 0 : index
    %639 = vector.load %arg34[%c0_211, %c0_212] : memref<8x64xf32, #tpu.memory_space<vmem>>, vector<8x56xf32>
    %640 = arith.addf %638, %639 : vector<8x56xf32>
    %c0_213 = arith.constant 0 : index
    %c0_214 = arith.constant 0 : index
    %641 = vector.load %arg24[%c0_213, %c0_214] : memref<56x8xf32, #tpu.memory_space<vmem>>, vector<56x8xf32>
    %cst_215 = arith.constant dense<0.000000e+00> : vector<8x8xf32>
    %642 = tpu.matmul %640, %641, %cst_215 {dimension_numbers = #tpu.dot_dimension_numbers<[1], [0], [0], [1], [0, 0, 1, 1], [], []>} : vector<8x56xf32>, vector<56x8xf32>, vector<8x8xf32> -> vector<8x8xf32>
    %c0_216 = arith.constant 0 : index
    %c0_217 = arith.constant 0 : index
    %643 = vector.load %arg28[%c0_216, %c0_217] : memref<1x8xf32, #tpu.memory_space<vmem>>, vector<1x8xf32>
    %cst_218 = arith.constant 2.000000e+00 : f32
    %644 = vector.broadcast %cst_218 : f32 to vector<1x8xf32>
    %645 = arith.mulf %644, %643 : vector<1x8xf32>
    %646 = vector.broadcast %645 : vector<1x8xf32> to vector<8x8xf32>
    %647 = arith.addf %642, %646 : vector<8x8xf32>
    %648 = vector.broadcast %583 : vector<8x1xf32> to vector<8x8xf32>
    %649 = arith.mulf %647, %648 : vector<8x8xf32>
    %cst_219 = arith.constant 0.000000e+00 : f32
    %650 = vector.broadcast %cst_219 : f32 to vector<8x8xf32>
    %651 = arith.maximumf %649, %650 : vector<8x8xf32>
    %c0_220 = arith.constant 0 : index
    %c56 = arith.constant 56 : index
    %652 = vector.load %arg34[%c0_220, %c56] : memref<8x64xf32, #tpu.memory_space<vmem>>, vector<8x8xf32>
    tpu.vector_store %arg34[%c0_220, %c56], %651 {strides = array<i32>} : memref<8x64xf32, #tpu.memory_space<vmem>>, vector<8x8xf32>,
    %c0_221 = arith.constant 0 : index
    %c32_222 = arith.constant 32 : index
    %653 = vector.load %arg34[%c0_221, %c32_222] : memref<8x64xf32, #tpu.memory_space<vmem>>, vector<8x32xf32>
    %654 = arith.addf %653, %437 : vector<8x32xf32>
    %c0_223 = arith.constant 0 : index
    %c0_224 = arith.constant 0 : index
    %655 = vector.load %arg29[%c0_223, %c0_224] : memref<32x32xf32, #tpu.memory_space<vmem>>, vector<32x32xf32>
    %cst_225 = arith.constant dense<0.000000e+00> : vector<8x32xf32>
    %656 = tpu.matmul %654, %655, %cst_225 {dimension_numbers = #tpu.dot_dimension_numbers<[1], [0], [0], [1], [0, 0, 1, 1], [], []>} : vector<8x32xf32>, vector<32x32xf32>, vector<8x32xf32> -> vector<8x32xf32>
    %c0_226 = arith.constant 0 : index
    %c0_227 = arith.constant 0 : index
    %657 = vector.load %arg30[%c0_226, %c0_227] : memref<1x32xf32, #tpu.memory_space<vmem>>, vector<1x32xf32>
    %658 = vector.broadcast %657 : vector<1x32xf32> to vector<8x32xf32>
    %659 = arith.addf %656, %658 : vector<8x32xf32>
    %660 = vector.extract_strided_slice %418 {offsets = [8, 0], sizes = [8, 32], strides = [1, 1]} : vector<16x32xf32> to vector<8x32xf32>
    %661 = vector.extract_strided_slice %425 {offsets = [8, 0], sizes = [8, 32], strides = [1, 1]} : vector<16x32xf32> to vector<8x32xf32>
    %662 = vector.extract_strided_slice %430 {offsets = [8, 0], sizes = [8, 32], strides = [1, 1]} : vector<16x32xf32> to vector<8x32xf32>
    %663 = vector.extract_strided_slice %436 {offsets = [8, 0], sizes = [8, 1], strides = [1, 1]} : vector<16x1xf32> to vector<8x1xf32>
    %cst_228 = arith.constant dense<0.000000e+00> : vector<8x8xf32>
    %664 = tpu.matmul %661, %662, %cst_228 {dimension_numbers = #tpu.dot_dimension_numbers<[1], [1], [0], [0], [0, 0, 1, 0], [], []>} : vector<8x32xf32>, vector<8x32xf32>, vector<8x8xf32> -> vector<8x8xf32>
    %665 = math.exp %664 : vector<8x8xf32>
    %666 = arith.mulf %665, %6 : vector<8x8xf32>
    %cst_229 = arith.constant dense<0.000000e+00> : vector<8xf32>
    %667 = vector.multi_reduction <add>, %666, %cst_229 [0] : vector<8x8xf32> to vector<8xf32>
    %668 = vector.shape_cast %667 : vector<8xf32> to vector<1x8xf32>
    %669 = vector.broadcast %668 : vector<1x8xf32> to vector<8x8xf32>
    %670 = arith.mulf %4, %669 : vector<8x8xf32>
    %671 = arith.subf %670, %666 : vector<8x8xf32>
    %c0_i32_230 = arith.constant 0 : i32
    %672 = vector.broadcast %c0_i32_230 : i32 to vector<8x8xi32>
    %673 = arith.cmpi eq, %0, %672 : vector<8x8xi32>
    %674 = tpu.transpose %663, [1, 0] : vector<8x1xf32> -> vector<1x8xf32>
    %675 = vector.shape_cast %674 : vector<1x8xf32> to vector<1x8xf32>
    %676 = vector.broadcast %675 : vector<1x8xf32> to vector<8x8xf32>
    %677 = arith.select %673, %676, %671 : vector<8x8xi1>, vector<8x8xf32>
    %678 = tpu.concatenate %677, %4 in 1 : vector<8x8xf32>, vector<8x8xf32> -> vector<8x16xf32>
    %679 = vector.extract_strided_slice %678 {offsets = [0, 0], sizes = [1, 16], strides = [1, 1]} : vector<8x16xf32> to vector<1x16xf32>
    %680 = vector.extract_strided_slice %678 {offsets = [0, 0], sizes = [1, 1], strides = [1, 1]} : vector<8x16xf32> to vector<1x1xf32>
    %681 = vector.broadcast %680 : vector<1x1xf32> to vector<1x16xf32>
    %682 = arith.divf %679, %681 : vector<1x16xf32>
    %683 = vector.extract_strided_slice %678 {offsets = [0, 0], sizes = [8, 1], strides = [1, 1]} : vector<8x16xf32> to vector<8x1xf32>
    %c0_i32_231 = arith.constant 0 : i32
    %684 = vector.broadcast %c0_i32_231 : i32 to vector<8x1xi32>
    %685 = arith.cmpi eq, %15, %684 : vector<8x1xi32>
    %686 = arith.extui %685 : vector<8x1xi1> to vector<8x1xi32>
    %687 = arith.sitofp %686 : vector<8x1xi32> to vector<8x1xf32>
    %688 = arith.subf %683, %687 : vector<8x1xf32>
    %689 = vector.broadcast %688 : vector<8x1xf32> to vector<8x16xf32>
    %690 = vector.broadcast %682 : vector<1x16xf32> to vector<8x16xf32>
    %691 = arith.mulf %689, %690 : vector<8x16xf32>
    %692 = arith.subf %678, %691 : vector<8x16xf32>
    %693 = vector.extract_strided_slice %692 {offsets = [1, 0], sizes = [1, 16], strides = [1, 1]} : vector<8x16xf32> to vector<1x16xf32>
    %694 = vector.extract_strided_slice %692 {offsets = [1, 1], sizes = [1, 1], strides = [1, 1]} : vector<8x16xf32> to vector<1x1xf32>
    %695 = vector.broadcast %694 : vector<1x1xf32> to vector<1x16xf32>
    %696 = arith.divf %693, %695 : vector<1x16xf32>
    %697 = vector.extract_strided_slice %692 {offsets = [0, 1], sizes = [8, 1], strides = [1, 1]} : vector<8x16xf32> to vector<8x1xf32>
    %c1_i32_232 = arith.constant 1 : i32
    %698 = vector.broadcast %c1_i32_232 : i32 to vector<8x1xi32>
    %699 = arith.cmpi eq, %15, %698 : vector<8x1xi32>
    %700 = arith.extui %699 : vector<8x1xi1> to vector<8x1xi32>
    %701 = arith.sitofp %700 : vector<8x1xi32> to vector<8x1xf32>
    %702 = arith.subf %697, %701 : vector<8x1xf32>
    %703 = vector.broadcast %702 : vector<8x1xf32> to vector<8x16xf32>
    %704 = vector.broadcast %696 : vector<1x16xf32> to vector<8x16xf32>
    %705 = arith.mulf %703, %704 : vector<8x16xf32>
    %706 = arith.subf %692, %705 : vector<8x16xf32>
    %707 = vector.extract_strided_slice %706 {offsets = [2, 0], sizes = [1, 16], strides = [1, 1]} : vector<8x16xf32> to vector<1x16xf32>
    %708 = vector.extract_strided_slice %706 {offsets = [2, 2], sizes = [1, 1], strides = [1, 1]} : vector<8x16xf32> to vector<1x1xf32>
    %709 = vector.broadcast %708 : vector<1x1xf32> to vector<1x16xf32>
    %710 = arith.divf %707, %709 : vector<1x16xf32>
    %711 = vector.extract_strided_slice %706 {offsets = [0, 2], sizes = [8, 1], strides = [1, 1]} : vector<8x16xf32> to vector<8x1xf32>
    %c2_i32_233 = arith.constant 2 : i32
    %712 = vector.broadcast %c2_i32_233 : i32 to vector<8x1xi32>
    %713 = arith.cmpi eq, %15, %712 : vector<8x1xi32>
    %714 = arith.extui %713 : vector<8x1xi1> to vector<8x1xi32>
    %715 = arith.sitofp %714 : vector<8x1xi32> to vector<8x1xf32>
    %716 = arith.subf %711, %715 : vector<8x1xf32>
    %717 = vector.broadcast %716 : vector<8x1xf32> to vector<8x16xf32>
    %718 = vector.broadcast %710 : vector<1x16xf32> to vector<8x16xf32>
    %719 = arith.mulf %717, %718 : vector<8x16xf32>
    %720 = arith.subf %706, %719 : vector<8x16xf32>
    %721 = vector.extract_strided_slice %720 {offsets = [3, 0], sizes = [1, 16], strides = [1, 1]} : vector<8x16xf32> to vector<1x16xf32>
    %722 = vector.extract_strided_slice %720 {offsets = [3, 3], sizes = [1, 1], strides = [1, 1]} : vector<8x16xf32> to vector<1x1xf32>
    %723 = vector.broadcast %722 : vector<1x1xf32> to vector<1x16xf32>
    %724 = arith.divf %721, %723 : vector<1x16xf32>
    %725 = vector.extract_strided_slice %720 {offsets = [0, 3], sizes = [8, 1], strides = [1, 1]} : vector<8x16xf32> to vector<8x1xf32>
    %c3_i32_234 = arith.constant 3 : i32
    %726 = vector.broadcast %c3_i32_234 : i32 to vector<8x1xi32>
    %727 = arith.cmpi eq, %15, %726 : vector<8x1xi32>
    %728 = arith.extui %727 : vector<8x1xi1> to vector<8x1xi32>
    %729 = arith.sitofp %728 : vector<8x1xi32> to vector<8x1xf32>
    %730 = arith.subf %725, %729 : vector<8x1xf32>
    %731 = vector.broadcast %730 : vector<8x1xf32> to vector<8x16xf32>
    %732 = vector.broadcast %724 : vector<1x16xf32> to vector<8x16xf32>
    %733 = arith.mulf %731, %732 : vector<8x16xf32>
    %734 = arith.subf %720, %733 : vector<8x16xf32>
    %735 = vector.extract_strided_slice %734 {offsets = [4, 0], sizes = [1, 16], strides = [1, 1]} : vector<8x16xf32> to vector<1x16xf32>
    %736 = vector.extract_strided_slice %734 {offsets = [4, 4], sizes = [1, 1], strides = [1, 1]} : vector<8x16xf32> to vector<1x1xf32>
    %737 = vector.broadcast %736 : vector<1x1xf32> to vector<1x16xf32>
    %738 = arith.divf %735, %737 : vector<1x16xf32>
    %739 = vector.extract_strided_slice %734 {offsets = [0, 4], sizes = [8, 1], strides = [1, 1]} : vector<8x16xf32> to vector<8x1xf32>
    %c4_i32_235 = arith.constant 4 : i32
    %740 = vector.broadcast %c4_i32_235 : i32 to vector<8x1xi32>
    %741 = arith.cmpi eq, %15, %740 : vector<8x1xi32>
    %742 = arith.extui %741 : vector<8x1xi1> to vector<8x1xi32>
    %743 = arith.sitofp %742 : vector<8x1xi32> to vector<8x1xf32>
    %744 = arith.subf %739, %743 : vector<8x1xf32>
    %745 = vector.broadcast %744 : vector<8x1xf32> to vector<8x16xf32>
    %746 = vector.broadcast %738 : vector<1x16xf32> to vector<8x16xf32>
    %747 = arith.mulf %745, %746 : vector<8x16xf32>
    %748 = arith.subf %734, %747 : vector<8x16xf32>
    %749 = vector.extract_strided_slice %748 {offsets = [5, 0], sizes = [1, 16], strides = [1, 1]} : vector<8x16xf32> to vector<1x16xf32>
    %750 = vector.extract_strided_slice %748 {offsets = [5, 5], sizes = [1, 1], strides = [1, 1]} : vector<8x16xf32> to vector<1x1xf32>
    %751 = vector.broadcast %750 : vector<1x1xf32> to vector<1x16xf32>
    %752 = arith.divf %749, %751 : vector<1x16xf32>
    %753 = vector.extract_strided_slice %748 {offsets = [0, 5], sizes = [8, 1], strides = [1, 1]} : vector<8x16xf32> to vector<8x1xf32>
    %c5_i32_236 = arith.constant 5 : i32
    %754 = vector.broadcast %c5_i32_236 : i32 to vector<8x1xi32>
    %755 = arith.cmpi eq, %15, %754 : vector<8x1xi32>
    %756 = arith.extui %755 : vector<8x1xi1> to vector<8x1xi32>
    %757 = arith.sitofp %756 : vector<8x1xi32> to vector<8x1xf32>
    %758 = arith.subf %753, %757 : vector<8x1xf32>
    %759 = vector.broadcast %758 : vector<8x1xf32> to vector<8x16xf32>
    %760 = vector.broadcast %752 : vector<1x16xf32> to vector<8x16xf32>
    %761 = arith.mulf %759, %760 : vector<8x16xf32>
    %762 = arith.subf %748, %761 : vector<8x16xf32>
    %763 = vector.extract_strided_slice %762 {offsets = [6, 0], sizes = [1, 16], strides = [1, 1]} : vector<8x16xf32> to vector<1x16xf32>
    %764 = vector.extract_strided_slice %762 {offsets = [6, 6], sizes = [1, 1], strides = [1, 1]} : vector<8x16xf32> to vector<1x1xf32>
    %765 = vector.broadcast %764 : vector<1x1xf32> to vector<1x16xf32>
    %766 = arith.divf %763, %765 : vector<1x16xf32>
    %767 = vector.extract_strided_slice %762 {offsets = [0, 6], sizes = [8, 1], strides = [1, 1]} : vector<8x16xf32> to vector<8x1xf32>
    %c6_i32_237 = arith.constant 6 : i32
    %768 = vector.broadcast %c6_i32_237 : i32 to vector<8x1xi32>
    %769 = arith.cmpi eq, %15, %768 : vector<8x1xi32>
    %770 = arith.extui %769 : vector<8x1xi1> to vector<8x1xi32>
    %771 = arith.sitofp %770 : vector<8x1xi32> to vector<8x1xf32>
    %772 = arith.subf %767, %771 : vector<8x1xf32>
    %773 = vector.broadcast %772 : vector<8x1xf32> to vector<8x16xf32>
    %774 = vector.broadcast %766 : vector<1x16xf32> to vector<8x16xf32>
    %775 = arith.mulf %773, %774 : vector<8x16xf32>
    %776 = arith.subf %762, %775 : vector<8x16xf32>
    %777 = vector.extract_strided_slice %776 {offsets = [7, 0], sizes = [1, 16], strides = [1, 1]} : vector<8x16xf32> to vector<1x16xf32>
    %778 = vector.extract_strided_slice %776 {offsets = [7, 7], sizes = [1, 1], strides = [1, 1]} : vector<8x16xf32> to vector<1x1xf32>
    %779 = vector.broadcast %778 : vector<1x1xf32> to vector<1x16xf32>
    %780 = arith.divf %777, %779 : vector<1x16xf32>
    %781 = vector.extract_strided_slice %776 {offsets = [0, 7], sizes = [8, 1], strides = [1, 1]} : vector<8x16xf32> to vector<8x1xf32>
    %c7_i32_238 = arith.constant 7 : i32
    %782 = vector.broadcast %c7_i32_238 : i32 to vector<8x1xi32>
    %783 = arith.cmpi eq, %15, %782 : vector<8x1xi32>
    %784 = arith.extui %783 : vector<8x1xi1> to vector<8x1xi32>
    %785 = arith.sitofp %784 : vector<8x1xi32> to vector<8x1xf32>
    %786 = arith.subf %781, %785 : vector<8x1xf32>
    %787 = vector.broadcast %786 : vector<8x1xf32> to vector<8x16xf32>
    %788 = vector.broadcast %780 : vector<1x16xf32> to vector<8x16xf32>
    %789 = arith.mulf %787, %788 : vector<8x16xf32>
    %790 = arith.subf %776, %789 : vector<8x16xf32>
    %791 = vector.extract_strided_slice %790 {offsets = [0, 8], sizes = [8, 8], strides = [1, 1]} : vector<8x16xf32> to vector<8x8xf32>
    %792 = arith.mulf %791, %4 : vector<8x8xf32>
    %cst_239 = arith.constant dense<0.000000e+00> : vector<8xf32>
    %793 = vector.multi_reduction <add>, %792, %cst_239 [1] : vector<8x8xf32> to vector<8xf32>
    %794 = vector.shape_cast %793 : vector<8xf32> to vector<8x1xf32>
    %795 = tpu.transpose %666, [1, 0] : vector<8x8xf32> -> vector<8x8xf32>
    %796 = vector.broadcast %794 : vector<8x1xf32> to vector<8x8xf32>
    %797 = arith.mulf %10, %796 : vector<8x8xf32>
    %798 = arith.mulf %14, %791 : vector<8x8xf32>
    %799 = arith.subf %797, %798 : vector<8x8xf32>
    %800 = arith.mulf %795, %799 : vector<8x8xf32>
    %cst_240 = arith.constant dense<0.000000e+00> : vector<8xf32>
    %801 = vector.multi_reduction <add>, %800, %cst_240 [1] : vector<8x8xf32> to vector<8xf32>
    %802 = vector.shape_cast %801 : vector<8xf32> to vector<8x1xf32>
    %cst_241 = arith.constant 1.000000e+00 : f32
    %803 = vector.broadcast %cst_241 : f32 to vector<8x1xf32>
    %804 = arith.addf %802, %803 : vector<8x1xf32>
    %cst_242 = arith.constant 1.000000e+00 : f32
    %805 = vector.broadcast %cst_242 : f32 to vector<8x1xf32>
    %806 = arith.divf %805, %804 : vector<8x1xf32>
    %c0_243 = arith.constant 0 : index
    %c0_244 = arith.constant 0 : index
    %807 = vector.load %arg34[%c0_243, %c0_244] : memref<8x64xf32, #tpu.memory_space<vmem>>, vector<8x32xf32>
    tpu.vector_store %arg34[%c0_243, %c0_244], %660 {strides = array<i32>} : memref<8x64xf32, #tpu.memory_space<vmem>>, vector<8x32xf32>,
    %cst_245 = arith.constant dense<0.000000e+00> : vector<8x32xf32>
    %808 = tpu.matmul %800, %660, %cst_245 {dimension_numbers = #tpu.dot_dimension_numbers<[1], [0], [0], [1], [0, 0, 1, 1], [], []>} : vector<8x8xf32>, vector<8x32xf32>, vector<8x32xf32> -> vector<8x32xf32>
    %c0_246 = arith.constant 0 : index
    %c0_247 = arith.constant 0 : index
    %809 = vector.load %arg35[%c0_246, %c0_247] : memref<8x64xf32, #tpu.memory_space<vmem>>, vector<8x32xf32>
    tpu.vector_store %arg35[%c0_246, %c0_247], %808 {strides = array<i32>} : memref<8x64xf32, #tpu.memory_space<vmem>>, vector<8x32xf32>,
    %c0_248 = arith.constant 0 : index
    %c0_249 = arith.constant 0 : index
    %810 = vector.load %arg35[%c0_248, %c0_249] : memref<8x64xf32, #tpu.memory_space<vmem>>, vector<8x32xf32>
    %c0_250 = arith.constant 0 : index
    %c0_251 = arith.constant 0 : index
    %811 = vector.load %arg34[%c0_250, %c0_251] : memref<8x64xf32, #tpu.memory_space<vmem>>, vector<8x32xf32>
    %812 = arith.addf %810, %811 : vector<8x32xf32>
    %c0_252 = arith.constant 0 : index
    %c0_253 = arith.constant 0 : index
    %813 = vector.load %arg21[%c0_252, %c0_253] : memref<32x8xf32, #tpu.memory_space<vmem>>, vector<32x8xf32>
    %cst_254 = arith.constant dense<0.000000e+00> : vector<8x8xf32>
    %814 = tpu.matmul %812, %813, %cst_254 {dimension_numbers = #tpu.dot_dimension_numbers<[1], [0], [0], [1], [0, 0, 1, 1], [], []>} : vector<8x32xf32>, vector<32x8xf32>, vector<8x8xf32> -> vector<8x8xf32>
    %c0_255 = arith.constant 0 : index
    %c0_256 = arith.constant 0 : index
    %815 = vector.load %arg25[%c0_255, %c0_256] : memref<1x8xf32, #tpu.memory_space<vmem>>, vector<1x8xf32>
    %cst_257 = arith.constant 2.000000e+00 : f32
    %816 = vector.broadcast %cst_257 : f32 to vector<1x8xf32>
    %817 = arith.mulf %816, %815 : vector<1x8xf32>
    %818 = vector.broadcast %817 : vector<1x8xf32> to vector<8x8xf32>
    %819 = arith.addf %814, %818 : vector<8x8xf32>
    %820 = vector.broadcast %806 : vector<8x1xf32> to vector<8x8xf32>
    %821 = arith.mulf %819, %820 : vector<8x8xf32>
    %cst_258 = arith.constant 0.000000e+00 : f32
    %822 = vector.broadcast %cst_258 : f32 to vector<8x8xf32>
    %823 = arith.maximumf %821, %822 : vector<8x8xf32>
    %c0_259 = arith.constant 0 : index
    %c32_260 = arith.constant 32 : index
    %824 = vector.load %arg34[%c0_259, %c32_260] : memref<8x64xf32, #tpu.memory_space<vmem>>, vector<8x8xf32>
    tpu.vector_store %arg34[%c0_259, %c32_260], %823 {strides = array<i32>} : memref<8x64xf32, #tpu.memory_space<vmem>>, vector<8x8xf32>,
    %cst_261 = arith.constant dense<0.000000e+00> : vector<8x8xf32>
    %825 = tpu.matmul %800, %823, %cst_261 {dimension_numbers = #tpu.dot_dimension_numbers<[1], [0], [0], [1], [0, 0, 1, 1], [], []>} : vector<8x8xf32>, vector<8x8xf32>, vector<8x8xf32> -> vector<8x8xf32>
    %c0_262 = arith.constant 0 : index
    %c32_263 = arith.constant 32 : index
    %826 = vector.load %arg35[%c0_262, %c32_263] : memref<8x64xf32, #tpu.memory_space<vmem>>, vector<8x8xf32>
    tpu.vector_store %arg35[%c0_262, %c32_263], %825 {strides = array<i32>} : memref<8x64xf32, #tpu.memory_space<vmem>>, vector<8x8xf32>,
    %c0_264 = arith.constant 0 : index
    %c0_265 = arith.constant 0 : index
    %827 = vector.load %arg35[%c0_264, %c0_265] : memref<8x64xf32, #tpu.memory_space<vmem>>, vector<8x40xf32>
    %c0_266 = arith.constant 0 : index
    %c0_267 = arith.constant 0 : index
    %828 = vector.load %arg34[%c0_266, %c0_267] : memref<8x64xf32, #tpu.memory_space<vmem>>, vector<8x40xf32>
    %829 = arith.addf %827, %828 : vector<8x40xf32>
    %c0_268 = arith.constant 0 : index
    %c0_269 = arith.constant 0 : index
    %830 = vector.load %arg22[%c0_268, %c0_269] : memref<40x8xf32, #tpu.memory_space<vmem>>, vector<40x8xf32>
    %cst_270 = arith.constant dense<0.000000e+00> : vector<8x8xf32>
    %831 = tpu.matmul %829, %830, %cst_270 {dimension_numbers = #tpu.dot_dimension_numbers<[1], [0], [0], [1], [0, 0, 1, 1], [], []>} : vector<8x40xf32>, vector<40x8xf32>, vector<8x8xf32> -> vector<8x8xf32>
    %c0_271 = arith.constant 0 : index
    %c0_272 = arith.constant 0 : index
    %832 = vector.load %arg26[%c0_271, %c0_272] : memref<1x8xf32, #tpu.memory_space<vmem>>, vector<1x8xf32>
    %cst_273 = arith.constant 2.000000e+00 : f32
    %833 = vector.broadcast %cst_273 : f32 to vector<1x8xf32>
    %834 = arith.mulf %833, %832 : vector<1x8xf32>
    %835 = vector.broadcast %834 : vector<1x8xf32> to vector<8x8xf32>
    %836 = arith.addf %831, %835 : vector<8x8xf32>
    %837 = vector.broadcast %806 : vector<8x1xf32> to vector<8x8xf32>
    %838 = arith.mulf %836, %837 : vector<8x8xf32>
    %cst_274 = arith.constant 0.000000e+00 : f32
    %839 = vector.broadcast %cst_274 : f32 to vector<8x8xf32>
    %840 = arith.maximumf %838, %839 : vector<8x8xf32>
    %c0_275 = arith.constant 0 : index
    %c40_276 = arith.constant 40 : index
    %841 = vector.load %arg34[%c0_275, %c40_276] : memref<8x64xf32, #tpu.memory_space<vmem>>, vector<8x8xf32>
    tpu.vector_store %arg34[%c0_275, %c40_276], %840 {strides = array<i32>} : memref<8x64xf32, #tpu.memory_space<vmem>>, vector<8x8xf32>,
    %cst_277 = arith.constant dense<0.000000e+00> : vector<8x8xf32>
    %842 = tpu.matmul %800, %840, %cst_277 {dimension_numbers = #tpu.dot_dimension_numbers<[1], [0], [0], [1], [0, 0, 1, 1], [], []>} : vector<8x8xf32>, vector<8x8xf32>, vector<8x8xf32> -> vector<8x8xf32>
    %c0_278 = arith.constant 0 : index
    %c40_279 = arith.constant 40 : index
    %843 = vector.load %arg35[%c0_278, %c40_279] : memref<8x64xf32, #tpu.memory_space<vmem>>, vector<8x8xf32>
    tpu.vector_store %arg35[%c0_278, %c40_279], %842 {strides = array<i32>} : memref<8x64xf32, #tpu.memory_space<vmem>>, vector<8x8xf32>,
    %c0_280 = arith.constant 0 : index
    %c0_281 = arith.constant 0 : index
    %844 = vector.load %arg35[%c0_280, %c0_281] : memref<8x64xf32, #tpu.memory_space<vmem>>, vector<8x48xf32>
    %c0_282 = arith.constant 0 : index
    %c0_283 = arith.constant 0 : index
    %845 = vector.load %arg34[%c0_282, %c0_283] : memref<8x64xf32, #tpu.memory_space<vmem>>, vector<8x48xf32>
    %846 = arith.addf %844, %845 : vector<8x48xf32>
    %c0_284 = arith.constant 0 : index
    %c0_285 = arith.constant 0 : index
    %847 = vector.load %arg23[%c0_284, %c0_285] : memref<48x8xf32, #tpu.memory_space<vmem>>, vector<48x8xf32>
    %cst_286 = arith.constant dense<0.000000e+00> : vector<8x8xf32>
    %848 = tpu.matmul %846, %847, %cst_286 {dimension_numbers = #tpu.dot_dimension_numbers<[1], [0], [0], [1], [0, 0, 1, 1], [], []>} : vector<8x48xf32>, vector<48x8xf32>, vector<8x8xf32> -> vector<8x8xf32>
    %c0_287 = arith.constant 0 : index
    %c0_288 = arith.constant 0 : index
    %849 = vector.load %arg27[%c0_287, %c0_288] : memref<1x8xf32, #tpu.memory_space<vmem>>, vector<1x8xf32>
    %cst_289 = arith.constant 2.000000e+00 : f32
    %850 = vector.broadcast %cst_289 : f32 to vector<1x8xf32>
    %851 = arith.mulf %850, %849 : vector<1x8xf32>
    %852 = vector.broadcast %851 : vector<1x8xf32> to vector<8x8xf32>
    %853 = arith.addf %848, %852 : vector<8x8xf32>
    %854 = vector.broadcast %806 : vector<8x1xf32> to vector<8x8xf32>
    %855 = arith.mulf %853, %854 : vector<8x8xf32>
    %cst_290 = arith.constant 0.000000e+00 : f32
    %856 = vector.broadcast %cst_290 : f32 to vector<8x8xf32>
    %857 = arith.maximumf %855, %856 : vector<8x8xf32>
    %c0_291 = arith.constant 0 : index
    %c48_292 = arith.constant 48 : index
    %858 = vector.load %arg34[%c0_291, %c48_292] : memref<8x64xf32, #tpu.memory_space<vmem>>, vector<8x8xf32>
    tpu.vector_store %arg34[%c0_291, %c48_292], %857 {strides = array<i32>} : memref<8x64xf32, #tpu.memory_space<vmem>>, vector<8x8xf32>,
    %cst_293 = arith.constant dense<0.000000e+00> : vector<8x8xf32>
    %859 = tpu.matmul %800, %857, %cst_293 {dimension_numbers = #tpu.dot_dimension_numbers<[1], [0], [0], [1], [0, 0, 1, 1], [], []>} : vector<8x8xf32>, vector<8x8xf32>, vector<8x8xf32> -> vector<8x8xf32>
    %c0_294 = arith.constant 0 : index
    %c48_295 = arith.constant 48 : index
    %860 = vector.load %arg35[%c0_294, %c48_295] : memref<8x64xf32, #tpu.memory_space<vmem>>, vector<8x8xf32>
    tpu.vector_store %arg35[%c0_294, %c48_295], %859 {strides = array<i32>} : memref<8x64xf32, #tpu.memory_space<vmem>>, vector<8x8xf32>,
    %c0_296 = arith.constant 0 : index
    %c0_297 = arith.constant 0 : index
    %861 = vector.load %arg35[%c0_296, %c0_297] : memref<8x64xf32, #tpu.memory_space<vmem>>, vector<8x56xf32>
    %c0_298 = arith.constant 0 : index
    %c0_299 = arith.constant 0 : index
    %862 = vector.load %arg34[%c0_298, %c0_299] : memref<8x64xf32, #tpu.memory_space<vmem>>, vector<8x56xf32>
    %863 = arith.addf %861, %862 : vector<8x56xf32>
    %c0_300 = arith.constant 0 : index
    %c0_301 = arith.constant 0 : index
    %864 = vector.load %arg24[%c0_300, %c0_301] : memref<56x8xf32, #tpu.memory_space<vmem>>, vector<56x8xf32>
    %cst_302 = arith.constant dense<0.000000e+00> : vector<8x8xf32>
    %865 = tpu.matmul %863, %864, %cst_302 {dimension_numbers = #tpu.dot_dimension_numbers<[1], [0], [0], [1], [0, 0, 1, 1], [], []>} : vector<8x56xf32>, vector<56x8xf32>, vector<8x8xf32> -> vector<8x8xf32>
    %c0_303 = arith.constant 0 : index
    %c0_304 = arith.constant 0 : index
    %866 = vector.load %arg28[%c0_303, %c0_304] : memref<1x8xf32, #tpu.memory_space<vmem>>, vector<1x8xf32>
    %cst_305 = arith.constant 2.000000e+00 : f32
    %867 = vector.broadcast %cst_305 : f32 to vector<1x8xf32>
    %868 = arith.mulf %867, %866 : vector<1x8xf32>
    %869 = vector.broadcast %868 : vector<1x8xf32> to vector<8x8xf32>
    %870 = arith.addf %865, %869 : vector<8x8xf32>
    %871 = vector.broadcast %806 : vector<8x1xf32> to vector<8x8xf32>
    %872 = arith.mulf %870, %871 : vector<8x8xf32>
    %cst_306 = arith.constant 0.000000e+00 : f32
    %873 = vector.broadcast %cst_306 : f32 to vector<8x8xf32>
    %874 = arith.maximumf %872, %873 : vector<8x8xf32>
    %c0_307 = arith.constant 0 : index
    %c56_308 = arith.constant 56 : index
    %875 = vector.load %arg34[%c0_307, %c56_308] : memref<8x64xf32, #tpu.memory_space<vmem>>, vector<8x8xf32>
    tpu.vector_store %arg34[%c0_307, %c56_308], %874 {strides = array<i32>} : memref<8x64xf32, #tpu.memory_space<vmem>>, vector<8x8xf32>,
    %c0_309 = arith.constant 0 : index
    %c32_310 = arith.constant 32 : index
    %876 = vector.load %arg34[%c0_309, %c32_310] : memref<8x64xf32, #tpu.memory_space<vmem>>, vector<8x32xf32>
    %877 = arith.addf %876, %660 : vector<8x32xf32>
    %c0_311 = arith.constant 0 : index
    %c0_312 = arith.constant 0 : index
    %878 = vector.load %arg29[%c0_311, %c0_312] : memref<32x32xf32, #tpu.memory_space<vmem>>, vector<32x32xf32>
    %cst_313 = arith.constant dense<0.000000e+00> : vector<8x32xf32>
    %879 = tpu.matmul %877, %878, %cst_313 {dimension_numbers = #tpu.dot_dimension_numbers<[1], [0], [0], [1], [0, 0, 1, 1], [], []>} : vector<8x32xf32>, vector<32x32xf32>, vector<8x32xf32> -> vector<8x32xf32>
    %c0_314 = arith.constant 0 : index
    %c0_315 = arith.constant 0 : index
    %880 = vector.load %arg30[%c0_314, %c0_315] : memref<1x32xf32, #tpu.memory_space<vmem>>, vector<1x32xf32>
    %881 = vector.broadcast %880 : vector<1x32xf32> to vector<8x32xf32>
    %882 = arith.addf %879, %881 : vector<8x32xf32>
    %883 = tpu.concatenate %659, %882 in 0 : vector<8x32xf32>, vector<8x32xf32> -> vector<16x32xf32>
    %884 = tpu.concatenate %418, %883 in 1 : vector<16x32xf32>, vector<16x32xf32> -> vector<16x64xf32>
    %c0_316 = arith.constant 0 : index
    %c0_317 = arith.constant 0 : index
    %885 = vector.load %arg31[%c0_316, %c0_317] : memref<64x32xf32, #tpu.memory_space<vmem>>, vector<64x32xf32>
    %cst_318 = arith.constant dense<0.000000e+00> : vector<16x32xf32>
    %886 = tpu.matmul %884, %885, %cst_318 {dimension_numbers = #tpu.dot_dimension_numbers<[1], [0], [0], [1], [0, 0, 1, 1], [], []>} : vector<16x64xf32>, vector<64x32xf32>, vector<16x32xf32> -> vector<16x32xf32>
    %c0_319 = arith.constant 0 : index
    %c0_320 = arith.constant 0 : index
    %887 = vector.load %arg32[%c0_319, %c0_320] : memref<1x32xf32, #tpu.memory_space<vmem>>, vector<1x32xf32>
    %888 = vector.broadcast %887 : vector<1x32xf32> to vector<16x32xf32>
    %889 = arith.addf %886, %888 : vector<16x32xf32>
    %c0_321 = arith.constant 0 : index
    %c0_322 = arith.constant 0 : index
    %890 = vector.load %arg33[%c0_321, %c0_322] : memref<16x32xf32, #tpu.memory_space<vmem>>, vector<16x32xf32>
    tpu.vector_store %arg33[%c0_321, %c0_322], %889 {strides = array<i32>} : memref<16x32xf32, #tpu.memory_space<vmem>>, vector<16x32xf32>,
    return
  }
}

</mosaic_0001>

<llo_original>
// kernel: tpu_custom_call.1
$region0: #{tpu_custom_call.1}
  #allocation0 [shape = 'u32[]', space=smem, size = 0x4, offset = 0x4, fixed_abs, tag = 'smem constant byte address 0x4 - core index']
  #allocation1 [shape = 'u32[72,128]{1,0:T(1,128)}', space=vmem, size = 0x9000, scoped, tag = 'internal scratch']
  #allocation2 [shape = 'f32[8,64]{1,0:T(8,128)}', space=vmem, size = 0x1000, scoped, tag = 'scratch operand']
  #allocation3 [shape = 'f32[8,64]{1,0:T(8,128)}', space=vmem, size = 0x1000, scoped, tag = 'scratch operand']
  #allocation4 [shape = 'f32[1,1]{1,0:T(1,128)S(1)}', space=vmem, size = 0x200, scoped, tag = 'scoped memory for tpu_custom_call.1']
  #allocation5 [shape = 'f32[1,1]{1,0:T(1,128)S(1)}', space=vmem, size = 0x200, scoped, tag = 'scoped memory for tpu_custom_call.1']
  %s0 = inlined_call_operand.smem [shape: u32[34], index: -1, kind: input, shape index: {}]
  %s1 = sld [smem:[%s0]]
  %s2 = scalar_lea.smem %s0, 1
  %s3 = sld [smem:[%s2]]
  %s4 = scalar_lea.smem %s0, 2
  %s5 = sld [smem:[%s4]]
  %s6 = scalar_lea.smem %s0, 3
  %s7 = sld [smem:[%s6]]
  %s8 = scalar_lea.smem %s0, 4
  %s9 = sld [smem:[%s8]]
  %s10 = scalar_lea.smem %s0, 5
  %s11 = sld [smem:[%s10]]
  %s12 = scalar_lea.smem %s0, 6
  %s13 = sld [smem:[%s12]]
  %s14 = scalar_lea.smem %s0, 7
  %s15 = sld [smem:[%s14]]
  %s16 = scalar_lea.smem %s0, 8
  %s17 = sld [smem:[%s16]]
  %s18 = scalar_lea.smem %s0, 9
  %s19 = sld [smem:[%s18]]
  %s20 = scalar_lea.smem %s0, 10
  %s21 = sld [smem:[%s20]]
  %s22 = scalar_lea.smem %s0, 11
  %s23 = sld [smem:[%s22]]
  %s24 = scalar_lea.smem %s0, 12
  %s25 = sld [smem:[%s24]]
  %s26 = scalar_lea.smem %s0, 13
  %s27 = sld [smem:[%s26]]
  %s28 = scalar_lea.smem %s0, 14
  %s29 = sld [smem:[%s28]]
  %s30 = scalar_lea.smem %s0, 15
  %s31 = sld [smem:[%s30]]
  %s32 = scalar_lea.smem %s0, 16
  %s33 = sld [smem:[%s32]]
  %s34 = scalar_lea.smem %s0, 17
  %s35 = sld [smem:[%s34]]
  %s36 = scalar_lea.smem %s0, 18
  %s37 = sld [smem:[%s36]]
  %s38 = scalar_lea.smem %s0, 19
  %s39 = sld [smem:[%s38]]
  %s40 = scalar_lea.smem %s0, 20
  %s41 = sld [smem:[%s40]]
  %s42 = scalar_lea.smem %s0, 21
  %s43 = sld [smem:[%s42]]
  %s44 = scalar_lea.smem %s0, 22
  %s45 = sld [smem:[%s44]]
  %s46 = scalar_lea.smem %s0, 23
  %s47 = sld [smem:[%s46]]
  %s48 = scalar_lea.smem %s0, 24
  %s49 = sld [smem:[%s48]]
  %s50 = scalar_lea.smem %s0, 25
  %s51 = sld [smem:[%s50]]
  %s52 = scalar_lea.smem %s0, 26
  %s53 = sld [smem:[%s52]]
  %s54 = scalar_lea.smem %s0, 27
  %s55 = sld [smem:[%s54]]
  %s56 = scalar_lea.smem %s0, 28
  %s57 = sld [smem:[%s56]]
  %s58 = scalar_lea.smem %s0, 29
  %s59 = sld [smem:[%s58]]
  %s60 = scalar_lea.smem %s0, 30
  %s61 = sld [smem:[%s60]]
  %s62 = scalar_lea.smem %s0, 31
  %s63 = sld [smem:[%s62]]
  %s64 = scalar_lea.smem %s0, 32
  %s65 = sld [smem:[%s64]]
  %s66 = scalar_lea.smem %s0, 33
  %s67 = sld [smem:[%s66]]
  %s68 = sld [smem:[#allocation0]]
  $region142: #{tpu_custom_call.1} parent=0
    _
  %s70 = ssub.s32 1, %s68
  %s71 = scalar_select 0, %s70, %s68
  %v72 = vstv %s17
  %73 = vst [vmem:[#allocation4] sm:$0x1] %v72
  %v74 = vstv %s41
  %75 = vst [vmem:[#allocation5] sm:$0x1] %v74
  $region1: #{tpu_custom_call.1} parent=0
    #allocation6 [shape = 'u8[8192]{0}', space=vmem, size = 0x2000, scoped, tag = 'output window, operand 0, single buffered']
    #allocation7 [shape = 's32[1]{0}', space=sflag, size = 0x4, scoped, tag = 'scoped memory for tpu_custom_call.1']
    %76 = vsyncpa [#allocation7], 0
    // Predicated region
    $region2: #{tpu_custom_call.1} parent=1 // pred_check
      _
    $region3: #{tpu_custom_call.1} parent=1 // pred_check_branch
      %78 = sbr.rel (0) target = $region5
    $region4: #{tpu_custom_call.1} parent=1 // pred_region
      _
    $region5: #{tpu_custom_call.1} parent=1 // pred_fallthru
      _
    // Predicated region
    $region6: #{tpu_custom_call.1} parent=1 // pred_check
      _
    $region7: #{tpu_custom_call.1} parent=1 // pred_check_branch
      %80 = sbr.rel (0) target = $region9
    $region8: #{tpu_custom_call.1} parent=1 // pred_region
      _
    $region9: #{tpu_custom_call.1} parent=1 // pred_fallthru
      _
    // Predicated region
    $region10: #{tpu_custom_call.1} parent=1 // pred_check
      _
    $region11: #{tpu_custom_call.1} parent=1 // pred_check_branch
      %82 = sbr.rel (0) target = $region13
    $region12: #{tpu_custom_call.1} parent=1 // pred_region
      _
    $region13: #{tpu_custom_call.1} parent=1 // pred_fallthru
      _
    // Predicated region
    $region14: #{tpu_custom_call.1} parent=1 // pred_check
      _
    $region15: #{tpu_custom_call.1} parent=1 // pred_check_branch
      %84 = sbr.rel (0) target = $region17
    $region16: #{tpu_custom_call.1} parent=1 // pred_region
      _
    $region17: #{tpu_custom_call.1} parent=1 // pred_fallthru
      _
    // Predicated region
    $region18: #{tpu_custom_call.1} parent=1 // pred_check
      _
    $region19: #{tpu_custom_call.1} parent=1 // pred_check_branch
      %86 = sbr.rel (0) target = $region21
    $region20: #{tpu_custom_call.1} parent=1 // pred_region
      _
    $region21: #{tpu_custom_call.1} parent=1 // pred_fallthru
      _
    // Predicated region
    $region22: #{tpu_custom_call.1} parent=1 // pred_check
      _
    $region23: #{tpu_custom_call.1} parent=1 // pred_check_branch
      %88 = sbr.rel (0) target = $region25
    $region24: #{tpu_custom_call.1} parent=1 // pred_region
      _
    $region25: #{tpu_custom_call.1} parent=1 // pred_fallthru
      _
    // Predicated region
    $region26: #{tpu_custom_call.1} parent=1 // pred_check
      _
    $region27: #{tpu_custom_call.1} parent=1 // pred_check_branch
      %90 = sbr.rel (0) target = $region29
    $region28: #{tpu_custom_call.1} parent=1 // pred_region
      _
    $region29: #{tpu_custom_call.1} parent=1 // pred_fallthru
      _
    // Predicated region
    $region30: #{tpu_custom_call.1} parent=1 // pred_check
      _
    $region31: #{tpu_custom_call.1} parent=1 // pred_check_branch
      %92 = sbr.rel (0) target = $region33
    $region32: #{tpu_custom_call.1} parent=1 // pred_region
      _
    $region33: #{tpu_custom_call.1} parent=1 // pred_fallthru
      _
    // Predicated region
    $region34: #{tpu_custom_call.1} parent=1 // pred_check
      _
    $region35: #{tpu_custom_call.1} parent=1 // pred_check_branch
      %94 = sbr.rel (0) target = $region37
    $region36: #{tpu_custom_call.1} parent=1 // pred_region
      _
    $region37: #{tpu_custom_call.1} parent=1 // pred_fallthru
      _
    // Predicated region
    $region38: #{tpu_custom_call.1} parent=1 // pred_check
      _
    $region39: #{tpu_custom_call.1} parent=1 // pred_check_branch
      %96 = sbr.rel (0) target = $region41
    $region40: #{tpu_custom_call.1} parent=1 // pred_region
      _
    $region41: #{tpu_custom_call.1} parent=1 // pred_fallthru
      _
    // Predicated region
    $region42: #{tpu_custom_call.1} parent=1 // pred_check
      _
    $region43: #{tpu_custom_call.1} parent=1 // pred_check_branch
      %98 = sbr.rel (0) target = $region45
    $region44: #{tpu_custom_call.1} parent=1 // pred_region
      _
    $region45: #{tpu_custom_call.1} parent=1 // pred_fallthru
      _
    // Predicated region
    $region46: #{tpu_custom_call.1} parent=1 // pred_check
      _
    $region47: #{tpu_custom_call.1} parent=1 // pred_check_branch
      %100 = sbr.rel (0) target = $region49
    $region48: #{tpu_custom_call.1} parent=1 // pred_region
      _
    $region49: #{tpu_custom_call.1} parent=1 // pred_fallthru
      _
    // Predicated region
    $region50: #{tpu_custom_call.1} parent=1 // pred_check
      _
    $region51: #{tpu_custom_call.1} parent=1 // pred_check_branch
      %102 = sbr.rel (0) target = $region53
    $region52: #{tpu_custom_call.1} parent=1 // pred_region
      _
    $region53: #{tpu_custom_call.1} parent=1 // pred_fallthru
      _
    // Predicated region
    $region54: #{tpu_custom_call.1} parent=1 // pred_check
      _
    $region55: #{tpu_custom_call.1} parent=1 // pred_check_branch
      %104 = sbr.rel (0) target = $region57
    $region56: #{tpu_custom_call.1} parent=1 // pred_region
      _
    $region57: #{tpu_custom_call.1} parent=1 // pred_fallthru
      _
    // Predicated region
    $region58: #{tpu_custom_call.1} parent=1 // pred_check
      _
    $region59: #{tpu_custom_call.1} parent=1 // pred_check_branch
      %106 = sbr.rel (0) target = $region61
    $region60: #{tpu_custom_call.1} parent=1 // pred_region
      _
    $region61: #{tpu_custom_call.1} parent=1 // pred_fallthru
      _
    // Predicated region
    $region62: #{tpu_custom_call.1} parent=1 // pred_check
      _
    $region63: #{tpu_custom_call.1} parent=1 // pred_check_branch
      %108 = sbr.rel (0) target = $region65
    $region64: #{tpu_custom_call.1} parent=1 // pred_region
      _
    $region65: #{tpu_custom_call.1} parent=1 // pred_fallthru
      _
    // Predicated region
    $region66: #{tpu_custom_call.1} parent=1 // pred_check
      _
    $region67: #{tpu_custom_call.1} parent=1 // pred_check_branch
      %110 = sbr.rel (0) target = $region69
    $region68: #{tpu_custom_call.1} parent=1 // pred_region
      _
    $region69: #{tpu_custom_call.1} parent=1 // pred_fallthru
      _
    // Predicated region
    $region70: #{tpu_custom_call.1} parent=1 // pred_check
      _
    $region71: #{tpu_custom_call.1} parent=1 // pred_check_branch
      %112 = sbr.rel (0) target = $region73
    $region72: #{tpu_custom_call.1} parent=1 // pred_region
      _
    $region73: #{tpu_custom_call.1} parent=1 // pred_fallthru
      _
    // Predicated region
    $region74: #{tpu_custom_call.1} parent=1 // pred_check
      _
    $region75: #{tpu_custom_call.1} parent=1 // pred_check_branch
      %114 = sbr.rel (0) target = $region77
    $region76: #{tpu_custom_call.1} parent=1 // pred_region
      _
    $region77: #{tpu_custom_call.1} parent=1 // pred_fallthru
      _
    // Predicated region
    $region78: #{tpu_custom_call.1} parent=1 // pred_check
      _
    $region79: #{tpu_custom_call.1} parent=1 // pred_check_branch
      %116 = sbr.rel (0) target = $region81
    $region80: #{tpu_custom_call.1} parent=1 // pred_region
      _
    $region81: #{tpu_custom_call.1} parent=1 // pred_fallthru
      _
    // Predicated region
    $region82: #{tpu_custom_call.1} parent=1 // pred_check
      _
    $region83: #{tpu_custom_call.1} parent=1 // pred_check_branch
      %118 = sbr.rel (0) target = $region85
    $region84: #{tpu_custom_call.1} parent=1 // pred_region
      _
    $region85: #{tpu_custom_call.1} parent=1 // pred_fallthru
      _
    // Predicated region
    $region86: #{tpu_custom_call.1} parent=1 // pred_check
      _
    $region87: #{tpu_custom_call.1} parent=1 // pred_check_branch
      %120 = sbr.rel (0) target = $region89
    $region88: #{tpu_custom_call.1} parent=1 // pred_region
      _
    $region89: #{tpu_custom_call.1} parent=1 // pred_fallthru
      _
    // Predicated region
    $region90: #{tpu_custom_call.1} parent=1 // pred_check
      _
    $region91: #{tpu_custom_call.1} parent=1 // pred_check_branch
      %122 = sbr.rel (0) target = $region93
    $region92: #{tpu_custom_call.1} parent=1 // pred_region
      _
    $region93: #{tpu_custom_call.1} parent=1 // pred_fallthru
      _
    // Predicated region
    $region94: #{tpu_custom_call.1} parent=1 // pred_check
      _
    $region95: #{tpu_custom_call.1} parent=1 // pred_check_branch
      %124 = sbr.rel (0) target = $region97
    $region96: #{tpu_custom_call.1} parent=1 // pred_region
      _
    $region97: #{tpu_custom_call.1} parent=1 // pred_fallthru
      _
    // Predicated region
    $region98: #{tpu_custom_call.1} parent=1 // pred_check
      _
    $region99: #{tpu_custom_call.1} parent=1 // pred_check_branch
      %126 = sbr.rel (0) target = $region101
    $region100: #{tpu_custom_call.1} parent=1 // pred_region
      _
    $region101: #{tpu_custom_call.1} parent=1 // pred_fallthru
      _
    // Predicated region
    $region102: #{tpu_custom_call.1} parent=1 // pred_check
      _
    $region103: #{tpu_custom_call.1} parent=1 // pred_check_branch
      %128 = sbr.rel (0) target = $region105
    $region104: #{tpu_custom_call.1} parent=1 // pred_region
      _
    $region105: #{tpu_custom_call.1} parent=1 // pred_fallthru
      _
    // Predicated region
    $region106: #{tpu_custom_call.1} parent=1 // pred_check
      _
    $region107: #{tpu_custom_call.1} parent=1 // pred_check_branch
      %130 = sbr.rel (0) target = $region109
    $region108: #{tpu_custom_call.1} parent=1 // pred_region
      _
    $region109: #{tpu_custom_call.1} parent=1 // pred_fallthru
      _
    // Predicated region
    $region110: #{tpu_custom_call.1} parent=1 // pred_check
      _
    $region111: #{tpu_custom_call.1} parent=1 // pred_check_branch
      %132 = sbr.rel (0) target = $region113
    $region112: #{tpu_custom_call.1} parent=1 // pred_region
      _
    $region113: #{tpu_custom_call.1} parent=1 // pred_fallthru
      _
    // Predicated region
    $region114: #{tpu_custom_call.1} parent=1 // pred_check
      _
    $region115: #{tpu_custom_call.1} parent=1 // pred_check_branch
      %134 = sbr.rel (0) target = $region117
    $region116: #{tpu_custom_call.1} parent=1 // pred_region
      _
    $region117: #{tpu_custom_call.1} parent=1 // pred_fallthru
      _
    // Predicated region
    $region118: #{tpu_custom_call.1} parent=1 // pred_check
      _
    $region119: #{tpu_custom_call.1} parent=1 // pred_check_branch
      %136 = sbr.rel (0) target = $region121
    $region120: #{tpu_custom_call.1} parent=1 // pred_region
      _
    $region121: #{tpu_custom_call.1} parent=1 // pred_fallthru
      _
    // Predicated region
    $region122: #{tpu_custom_call.1} parent=1 // pred_check
      _
    $region123: #{tpu_custom_call.1} parent=1 // pred_check_branch
      %138 = sbr.rel (0) target = $region125
    $region124: #{tpu_custom_call.1} parent=1 // pred_region
      _
    $region125: #{tpu_custom_call.1} parent=1 // pred_fallthru
      _
    // Predicated region
    $region126: #{tpu_custom_call.1} parent=1 // pred_check
      _
    $region127: #{tpu_custom_call.1} parent=1 // pred_check_branch
      %140 = sbr.rel (0) target = $region129
    $region128: #{tpu_custom_call.1} parent=1 // pred_region
      _
    $region129: #{tpu_custom_call.1} parent=1 // pred_fallthru
      _
    // Predicated region
    $region130: #{tpu_custom_call.1} parent=1 // pred_check
      _
    $region131: #{tpu_custom_call.1} parent=1 // pred_check_branch
      %142 = sbr.rel (0) target = $region133
    $region132: #{tpu_custom_call.1} parent=1 // pred_region
      _
    $region133: #{tpu_custom_call.1} parent=1 // pred_fallthru
      _
    %v143 = vlaneseq
    %v144 = vshrl.u32 %v143, 7
    %v145 = vlaneseq
    %v146 = vand.u32 %v145, 127
    %vm147 = vcmp.eq.s32.totalorder %v144, %v146
    %v148 = vsel %vm147, 1, 0
    %v149 = vcvt.s32.f32 %v148
    %v150 = vsub.f32 1.0, %v149
    %vm151 = vcmp.ne.s32.totalorder %v144, 0
    %v152 = vsel %vm151, 1, 0
    %v153 = vcvt.s32.f32 %v152
    %vm154 = vcmp.ne.s32.totalorder %v146, 0
    %v155 = vsel %vm154, 1, 0
    %v156 = vcvt.s32.f32 %v155
    %v157 = vld [vmem:[%s1] sm:$0xff]
    %v158 = vld [vmem:[%s1 + $0x8] sm:$0xff]
    %v159 = vld [vmem:[%s3] sm:$0xff]
    %v160 = vld [vmem:[%s3 + $0x8] sm:$0xff]
    %v161 = vld [vmem:[%s3 + $0x10] sm:$0xff]
    %v162 = vld [vmem:[%s3 + $0x18] sm:$0xff]
    %v163 = vld [vmem:[%s5] sm:$0x1]
    %v165 = vperm.slane %v163, 0
    %vm167 = vcmask 261120
    %v169 = vsel %vm167, %v157, 0
    %v172 = vsel %vm167, %v158, 0
    %174 = vmatpush.msra.mxu0 0.0
    %175 = vmatpush.msra.mxu0 0.0
    %176 = vmatpush.msra.mxu0 0.0
    %177 = vmatpush.msra.mxu0 0.0
    %178 = vmatpush.msra.mxu0 0.0
    %179 = vmatpush.msra.mxu0 0.0
    %180 = vmatpush.msra.mxu0 0.0
    %181 = vmatpush.msra.mxu0 0.0
    %182 = vmatpush.msra.mxu0 0.0
    %183 = vmatpush.msra.mxu0 0.0
    %184 = vmatpush.msra.mxu0 0.0
    %185 = vmatpush.msra.mxu0 0.0
    %186 = vmatpush.msra.mxu0 %v162
    %187 = vmatpush.msra.mxu0 %v161
    %188 = vmatpush.msra.mxu0 %v160
    %189 = vmatpush.msra.mxu0 %v159
    %190 = vmatmul.f32.gmra.mxu0 %v169
    %v191 = vpop.f32.mrf.mxu0
    %v192 = vadd.f32 %v165, %v191
    %193 = vmatmul.f32.gmra.mxu0 %v172
    %v194 = vpop.f32.mrf.mxu0
    %v195 = vadd.f32 %v165, %v194
    %196 = vdwg.mxu0
    %v197 = vld [vmem:[%s7] sm:$0xff]
    %v198 = vld [vmem:[%s7 + $0x8] sm:$0xff]
    %v199 = vld [vmem:[%s7 + $0x10] sm:$0xff]
    %v200 = vld [vmem:[%s7 + $0x18] sm:$0xff]
    %v201 = vld [vmem:[%s9] sm:$0x1]
    %v203 = vperm.slane %v201, 0
    %v206 = vsel %vm167, %v192, 0
    %v209 = vsel %vm167, %v195, 0
    %211 = vmatpush.msra.mxu0 0.0
    %212 = vmatpush.msra.mxu0 0.0
    %213 = vmatpush.msra.mxu0 0.0
    %214 = vmatpush.msra.mxu0 0.0
    %215 = vmatpush.msra.mxu0 0.0
    %216 = vmatpush.msra.mxu0 0.0
    %217 = vmatpush.msra.mxu0 0.0
    %218 = vmatpush.msra.mxu0 0.0
    %219 = vmatpush.msra.mxu0 0.0
    %220 = vmatpush.msra.mxu0 0.0
    %221 = vmatpush.msra.mxu0 0.0
    %222 = vmatpush.msra.mxu0 0.0
    %223 = vmatpush.msra.mxu0 %v200
    %224 = vmatpush.msra.mxu0 %v199
    %225 = vmatpush.msra.mxu0 %v198
    %226 = vmatpush.msra.mxu0 %v197
    %227 = vmatmul.f32.gmra.mxu0 %v206
    %v228 = vpop.f32.mrf.mxu0
    %v229 = vadd.f32 %v203, %v228
    %230 = vmatmul.f32.gmra.mxu0 %v209
    %v231 = vpop.f32.mrf.mxu0
    %v232 = vadd.f32 %v203, %v231
    %233 = vdwg.mxu0
    %v234 = vmul.f32 %v229, 0.17677669
    %v235 = vmul.f32 %v232, 0.17677669
    %v236 = vld [vmem:[%s11] sm:$0xff]
    %v237 = vld [vmem:[%s11 + $0x8] sm:$0xff]
    %v238 = vld [vmem:[%s11 + $0x10] sm:$0xff]
    %v239 = vld [vmem:[%s11 + $0x18] sm:$0xff]
    %v240 = vld [vmem:[%s13] sm:$0x1]
    %v242 = vperm.slane %v240, 0
    %244 = vmatpush.msra.mxu0 0.0
    %245 = vmatpush.msra.mxu0 0.0
    %246 = vmatpush.msra.mxu0 0.0
    %247 = vmatpush.msra.mxu0 0.0
    %248 = vmatpush.msra.mxu0 0.0
    %249 = vmatpush.msra.mxu0 0.0
    %250 = vmatpush.msra.mxu0 0.0
    %251 = vmatpush.msra.mxu0 0.0
    %252 = vmatpush.msra.mxu0 0.0
    %253 = vmatpush.msra.mxu0 0.0
    %254 = vmatpush.msra.mxu0 0.0
    %255 = vmatpush.msra.mxu0 0.0
    %256 = vmatpush.msra.mxu0 %v239
    %257 = vmatpush.msra.mxu0 %v238
    %258 = vmatpush.msra.mxu0 %v237
    %259 = vmatpush.msra.mxu0 %v236
    %260 = vmatmul.f32.gmra.mxu0 %v206
    %v261 = vpop.f32.mrf.mxu0
    %v262 = vadd.f32 %v242, %v261
    %263 = vmatmul.f32.gmra.mxu0 %v209
    %v264 = vpop.f32.mrf.mxu0
    %v265 = vadd.f32 %v242, %v264
    %266 = vdwg.mxu0
    %v267 = vld [vmem:[%s15] sm:$0xff]
    %v268 = vld [vmem:[%s15 + $0x8] sm:$0xff]
    %v269 = vld [vmem:[%s15 + $0x10] sm:$0xff]
    %v270 = vld [vmem:[%s15 + $0x18] sm:$0xff]
    %v271 = vld [vmem:[#allocation4] sm:$0x1]
    %v273 = vperm.slane %v271, 0
    %275 = vmatpush.msra.mxu0 0.0
    %276 = vmatpush.msra.mxu0 0.0
    %277 = vmatpush.msra.mxu0 0.0
    %278 = vmatpush.msra.mxu0 0.0
    %279 = vmatpush.msra.mxu0 0.0
    %280 = vmatpush.msra.mxu0 0.0
    %281 = vmatpush.msra.mxu0 0.0
    %282 = vmatpush.msra.mxu0 0.0
    %283 = vmatpush.msra.mxu0 0.0
    %284 = vmatpush.msra.mxu0 0.0
    %285 = vmatpush.msra.mxu0 0.0
    %286 = vmatpush.msra.mxu0 0.0
    %287 = vmatpush.msra.mxu0 %v270
    %288 = vmatpush.msra.mxu0 %v269
    %289 = vmatpush.msra.mxu0 %v268
    %290 = vmatpush.msra.mxu0 %v267
    %291 = vmatmul.f32.gmra.mxu0 %v206
    %v292 = vpop.f32.mrf.mxu0
    %v293 = vadd.f32 %v273, %v292
    %294 = vmatmul.f32.gmra.mxu0 %v209
    %v295 = vpop.f32.mrf.mxu0
    %v296 = vadd.f32 %v273, %v295
    %297 = vdwg.mxu0
    %v298 = vmul.f32 %v293, 1.442695
    %v299 = vpow.pop %v298
    %v300 = vmul.f32 %v296, 1.442695
    %v301 = vpow.pop %v300
    %v303 = vsel %vm167, %v234, 0
    %v306 = vsel %vm167, %v262, 0
    %308 = vmatpush.xpose.msra.mxu0 0.0
    %309 = vmatpush.xpose.msra.mxu0 0.0
    %310 = vmatpush.xpose.msra.mxu0 0.0
    %311 = vmatpush.xpose.msra.mxu0 0.0
    %312 = vmatpush.xpose.msra.mxu0 0.0
    %313 = vmatpush.xpose.msra.mxu0 0.0
    %314 = vmatpush.xpose.msra.mxu0 0.0
    %315 = vmatpush.xpose.msra.mxu0 0.0
    %316 = vmatpush.xpose.msra.mxu0 0.0
    %317 = vmatpush.xpose.msra.mxu0 0.0
    %318 = vmatpush.xpose.msra.mxu0 0.0
    %319 = vmatpush.xpose.msra.mxu0 0.0
    %320 = vmatpush.xpose.msra.mxu0 0.0
    %321 = vmatpush.xpose.msra.mxu0 0.0
    %322 = vmatpush.xpose.msra.mxu0 0.0
    %323 = vmatpush.xpose.msra.mxu0 %v306
    %324 = vmatmul.f32.gmra.mxu0 %v303
    %v325 = vpop.f32.mrf.mxu0
    %v326 = vadd.f32 0.0, %v325
    %327 = vdwg.mxu0
    %v328 = vmul.f32 %v326, 1.442695
    %v329 = vpow.pop %v328
    %v330 = vmul.f32 %v329, %v150
    %vm331 = vcmask 64512
    %v332 = vsel %vm331, %v330, 0.0
    %v333 = vrot.slane %v332, 4
    %v334 = vadd.f32 %v332, %v333
    %v335 = vrot.slane %v334, 2
    %v336 = vadd.f32 %v334, %v335
    %v337 = vrot.slane %v336, 1
    %v338 = vadd.f32 %v336, %v337
    %v339 = vmul.f32 %v149, %v338
    %v340 = vsub.f32 %v339, %v330
    %vm341 = vcmp.eq.s32.totalorder %v144, 0
    %342 = vxpose.xlu0.b32.start [1/16] %v299, 128
    %343 = vxpose.xlu0.b32.cont [2/16] 0.0, 128
    %344 = vxpose.xlu0.b32.cont [3/16] 0.0, 128
    %345 = vxpose.xlu0.b32.cont [4/16] 0.0, 128
    %346 = vxpose.xlu0.b32.cont [5/16] 0.0, 128
    %347 = vxpose.xlu0.b32.cont [6/16] 0.0, 128
    %348 = vxpose.xlu0.b32.cont [7/16] 0.0, 128
    %349 = vxpose.xlu0.b32.cont [8/16] 0.0, 128
    %350 = vxpose.xlu0.b32.cont [9/16] 0.0, 128
    %351 = vxpose.xlu0.b32.cont [10/16] 0.0, 128
    %352 = vxpose.xlu0.b32.cont [11/16] 0.0, 128
    %353 = vxpose.xlu0.b32.cont [12/16] 0.0, 128
    %354 = vxpose.xlu0.b32.cont [13/16] 0.0, 128
    %355 = vxpose.xlu0.b32.cont [14/16] 0.0, 128
    %356 = vxpose.xlu0.b32.cont [15/16] 0.0, 128
    %357 = vxpose.xlu0.b32.end [16/16] 0.0, 128
    %v358 = vpop.trf.xlu0
    %v359 = vpop.trf.xlu0
    %v360 = vpop.trf.xlu0
    %v361 = vpop.trf.xlu0
    %v362 = vpop.trf.xlu0
    %v363 = vpop.trf.xlu0
    %v364 = vpop.trf.xlu0
    %v365 = vpop.trf.xlu0
    %v366 = vpop.trf.xlu0
    %v367 = vpop.trf.xlu0
    %v368 = vpop.trf.xlu0
    %v369 = vpop.trf.xlu0
    %v370 = vpop.trf.xlu0
    %v371 = vpop.trf.xlu0
    %v372 = vpop.trf.xlu0
    %v373 = vpop.trf.xlu0
    %v374 = vperm.slane %v358, 0
    %v375 = vsel %vm341, %v374, %v340
    %377 = vrot.lane.b32.xlu0 %v149, 8
    %v378 = vpop.permute.xlu0 %377
    %v380 = vsel %vm331, %v375, %v378
    %382 = vset.pattern.permute.xlu0 0
    %383 = vperm.xlu0 %382, %v380
    %v384 = vpop.permute.xlu0 %383
    %v386 = vrcp.pop %v384
    %v387 = vmul.f32 %v384, %v386
    %v388 = vsub.f32 1.0, %v387
    %v389 = vmul.f32 %v386, %v388
    %v390 = vadd.f32 %v386, %v389
    %vm391 = vweird.f32 %v384
    %vm392 = vweird.f32 %v386
    %vm393 = vmor %vm391, %vm392
    %v394 = vsel %vm393, %v386, %v390
    %v395 = vand.u32 2147483647, %v384
    %vm396 = vcmp.eq.f32.partialorder %v395, 8.507059e+37
    %v397 = vand.u32 %v384, 2147483648
    %v398 = vor.u32 1.1754944e-38, %v397
    %v399 = vsel %vm396, %v398, %v394
    %v400 = vmul.f32 %v380, %v399
    %v401 = vsel %vm341, 1, 0
    %v402 = vcvt.s32.f32 %v401
    %v403 = vsub.f32 %v380, %v402
    %405 = vset.pattern.permute.xlu0 0
    %406 = vperm.xlu0 %405, %v403
    %v407 = vpop.permute.xlu0 %406
    %v409 = vperm.slane %v400, 0
    %v410 = vmul.f32 %v407, %v409
    %v411 = vsub.f32 %v380, %v410
    %413 = vset.pattern.permute.xlu0 1
    %414 = vperm.xlu0 %413, %v411
    %v415 = vpop.permute.xlu0 %414
    %v417 = vrcp.pop %v415
    %v418 = vmul.f32 %v415, %v417
    %v419 = vsub.f32 1.0, %v418
    %v420 = vmul.f32 %v417, %v419
    %v421 = vadd.f32 %v417, %v420
    %vm422 = vweird.f32 %v415
    %vm423 = vweird.f32 %v417
    %vm424 = vmor %vm422, %vm423
    %v425 = vsel %vm424, %v417, %v421
    %v426 = vand.u32 2147483647, %v415
    %vm427 = vcmp.eq.f32.partialorder %v426, 8.507059e+37
    %v428 = vand.u32 %v415, 2147483648
    %v429 = vor.u32 1.1754944e-38, %v428
    %v430 = vsel %vm427, %v429, %v425
    %v431 = vmul.f32 %v411, %v430
    %vm432 = vcmp.eq.s32.totalorder %v144, 1
    %v433 = vsel %vm432, 1, 0
    %v434 = vcvt.s32.f32 %v433
    %v435 = vsub.f32 %v411, %v434
    %437 = vset.pattern.permute.xlu0 1
    %438 = vperm.xlu0 %437, %v435
    %v439 = vpop.permute.xlu0 %438
    %v441 = vperm.slane %v431, 1
    %v442 = vmul.f32 %v439, %v441
    %v443 = vsub.f32 %v411, %v442
    %445 = vset.pattern.permute.xlu0 2
    %446 = vperm.xlu0 %445, %v443
    %v447 = vpop.permute.xlu0 %446
    %v449 = vrcp.pop %v447
    %v450 = vmul.f32 %v447, %v449
    %v451 = vsub.f32 1.0, %v450
    %v452 = vmul.f32 %v449, %v451
    %v453 = vadd.f32 %v449, %v452
    %vm454 = vweird.f32 %v447
    %vm455 = vweird.f32 %v449
    %vm456 = vmor %vm454, %vm455
    %v457 = vsel %vm456, %v449, %v453
    %v458 = vand.u32 2147483647, %v447
    %vm459 = vcmp.eq.f32.partialorder %v458, 8.507059e+37
    %v460 = vand.u32 %v447, 2147483648
    %v461 = vor.u32 1.1754944e-38, %v460
    %v462 = vsel %vm459, %v461, %v457
    %v463 = vmul.f32 %v443, %v462
    %vm464 = vcmp.eq.s32.totalorder %v144, 2
    %v465 = vsel %vm464, 1, 0
    %v466 = vcvt.s32.f32 %v465
    %v467 = vsub.f32 %v443, %v466
    %469 = vset.pattern.permute.xlu0 2
    %470 = vperm.xlu0 %469, %v467
    %v471 = vpop.permute.xlu0 %470
    %v473 = vperm.slane %v463, 2
    %v474 = vmul.f32 %v471, %v473
    %v475 = vsub.f32 %v443, %v474
    %477 = vset.pattern.permute.xlu0 3
    %478 = vperm.xlu0 %477, %v475
    %v479 = vpop.permute.xlu0 %478
    %v481 = vrcp.pop %v479
    %v482 = vmul.f32 %v479, %v481
    %v483 = vsub.f32 1.0, %v482
    %v484 = vmul.f32 %v481, %v483
    %v485 = vadd.f32 %v481, %v484
    %vm486 = vweird.f32 %v479
    %vm487 = vweird.f32 %v481
    %vm488 = vmor %vm486, %vm487
    %v489 = vsel %vm488, %v481, %v485
    %v490 = vand.u32 2147483647, %v479
    %vm491 = vcmp.eq.f32.partialorder %v490, 8.507059e+37
    %v492 = vand.u32 %v479, 2147483648
    %v493 = vor.u32 1.1754944e-38, %v492
    %v494 = vsel %vm491, %v493, %v489
    %v495 = vmul.f32 %v475, %v494
    %vm496 = vcmp.eq.s32.totalorder %v144, 3
    %v497 = vsel %vm496, 1, 0
    %v498 = vcvt.s32.f32 %v497
    %v499 = vsub.f32 %v475, %v498
    %501 = vset.pattern.permute.xlu0 3
    %502 = vperm.xlu0 %501, %v499
    %v503 = vpop.permute.xlu0 %502
    %v505 = vperm.slane %v495, 3
    %v506 = vmul.f32 %v503, %v505
    %v507 = vsub.f32 %v475, %v506
    %509 = vset.pattern.permute.xlu0 4
    %510 = vperm.xlu0 %509, %v507
    %v511 = vpop.permute.xlu0 %510
    %v513 = vrcp.pop %v511
    %v514 = vmul.f32 %v511, %v513
    %v515 = vsub.f32 1.0, %v514
    %v516 = vmul.f32 %v513, %v515
    %v517 = vadd.f32 %v513, %v516
    %vm518 = vweird.f32 %v511
    %vm519 = vweird.f32 %v513
    %vm520 = vmor %vm518, %vm519
    %v521 = vsel %vm520, %v513, %v517
    %v522 = vand.u32 2147483647, %v511
    %vm523 = vcmp.eq.f32.partialorder %v522, 8.507059e+37
    %v524 = vand.u32 %v511, 2147483648
    %v525 = vor.u32 1.1754944e-38, %v524
    %v526 = vsel %vm523, %v525, %v521
    %v527 = vmul.f32 %v507, %v526
    %vm528 = vcmp.eq.s32.totalorder %v144, 4
    %v529 = vsel %vm528, 1, 0
    %v530 = vcvt.s32.f32 %v529
    %v531 = vsub.f32 %v507, %v530
    %533 = vset.pattern.permute.xlu0 4
    %534 = vperm.xlu0 %533, %v531
    %v535 = vpop.permute.xlu0 %534
    %v537 = vperm.slane %v527, 4
    %v538 = vmul.f32 %v535, %v537
    %v539 = vsub.f32 %v507, %v538
    %541 = vset.pattern.permute.xlu0 5
    %542 = vperm.xlu0 %541, %v539
    %v543 = vpop.permute.xlu0 %542
    %v545 = vrcp.pop %v543
    %v546 = vmul.f32 %v543, %v545
    %v547 = vsub.f32 1.0, %v546
    %v548 = vmul.f32 %v545, %v547
    %v549 = vadd.f32 %v545, %v548
    %vm550 = vweird.f32 %v543
    %vm551 = vweird.f32 %v545
    %vm552 = vmor %vm550, %vm551
    %v553 = vsel %vm552, %v545, %v549
    %v554 = vand.u32 2147483647, %v543
    %vm555 = vcmp.eq.f32.partialorder %v554, 8.507059e+37
    %v556 = vand.u32 %v543, 2147483648
    %v557 = vor.u32 1.1754944e-38, %v556
    %v558 = vsel %vm555, %v557, %v553
    %v559 = vmul.f32 %v539, %v558
    %vm560 = vcmp.eq.s32.totalorder %v144, 5
    %v561 = vsel %vm560, 1, 0
    %v562 = vcvt.s32.f32 %v561
    %v563 = vsub.f32 %v539, %v562
    %565 = vset.pattern.permute.xlu0 5
    %566 = vperm.xlu0 %565, %v563
    %v567 = vpop.permute.xlu0 %566
    %v569 = vperm.slane %v559, 5
    %v570 = vmul.f32 %v567, %v569
    %v571 = vsub.f32 %v539, %v570
    %573 = vset.pattern.permute.xlu0 6
    %574 = vperm.xlu0 %573, %v571
    %v575 = vpop.permute.xlu0 %574
    %v577 = vrcp.pop %v575
    %v578 = vmul.f32 %v575, %v577
    %v579 = vsub.f32 1.0, %v578
    %v580 = vmul.f32 %v577, %v579
    %v581 = vadd.f32 %v577, %v580
    %vm582 = vweird.f32 %v575
    %vm583 = vweird.f32 %v577
    %vm584 = vmor %vm582, %vm583
    %v585 = vsel %vm584, %v577, %v581
    %v586 = vand.u32 2147483647, %v575
    %vm587 = vcmp.eq.f32.partialorder %v586, 8.507059e+37
    %v588 = vand.u32 %v575, 2147483648
    %v589 = vor.u32 1.1754944e-38, %v588
    %v590 = vsel %vm587, %v589, %v585
    %v591 = vmul.f32 %v571, %v590
    %vm592 = vcmp.eq.s32.totalorder %v144, 6
    %v593 = vsel %vm592, 1, 0
    %v594 = vcvt.s32.f32 %v593
    %v595 = vsub.f32 %v571, %v594
    %597 = vset.pattern.permute.xlu0 6
    %598 = vperm.xlu0 %597, %v595
    %v599 = vpop.permute.xlu0 %598
    %v601 = vperm.slane %v591, 6
    %v602 = vmul.f32 %v599, %v601
    %v603 = vsub.f32 %v571, %v602
    %605 = vset.pattern.permute.xlu0 7
    %606 = vperm.xlu0 %605, %v603
    %v607 = vpop.permute.xlu0 %606
    %v609 = vrcp.pop %v607
    %v610 = vmul.f32 %v607, %v609
    %v611 = vsub.f32 1.0, %v610
    %v612 = vmul.f32 %v609, %v611
    %v613 = vadd.f32 %v609, %v612
    %vm614 = vweird.f32 %v607
    %vm615 = vweird.f32 %v609
    %vm616 = vmor %vm614, %vm615
    %v617 = vsel %vm616, %v609, %v613
    %v618 = vand.u32 2147483647, %v607
    %vm619 = vcmp.eq.f32.partialorder %v618, 8.507059e+37
    %v620 = vand.u32 %v607, 2147483648
    %v621 = vor.u32 1.1754944e-38, %v620
    %v622 = vsel %vm619, %v621, %v617
    %v623 = vmul.f32 %v603, %v622
    %vm624 = vcmp.eq.s32.totalorder %v144, 7
    %v625 = vsel %vm624, 1, 0
    %v626 = vcvt.s32.f32 %v625
    %v627 = vsub.f32 %v603, %v626
    %629 = vset.pattern.permute.xlu0 7
    %630 = vperm.xlu0 %629, %v627
    %v631 = vpop.permute.xlu0 %630
    %v633 = vperm.slane %v623, 7
    %v634 = vmul.f32 %v631, %v633
    %v635 = vsub.f32 %v603, %v634
    %v636 = vmul.f32 %v635, %v378
    %638 = vrot.lane.b32.xlu0 %v636, 120
    %v639 = vpop.permute.xlu0 %638
    %v641 = vsel %vm331, %v639, 0.0
    %642 = vadd.xlane.f32.xlu0 %v641
    %v643 = vpop.xlane.xlu0 %642
    %644 = vxpose.xlu0.b32.start [1/16] %v330, 128
    %645 = vxpose.xlu0.b32.cont [2/16] 0.0, 128
    %646 = vxpose.xlu0.b32.cont [3/16] 0.0, 128
    %647 = vxpose.xlu0.b32.cont [4/16] 0.0, 128
    %648 = vxpose.xlu0.b32.cont [5/16] 0.0, 128
    %649 = vxpose.xlu0.b32.cont [6/16] 0.0, 128
    %650 = vxpose.xlu0.b32.cont [7/16] 0.0, 128
    %651 = vxpose.xlu0.b32.cont [8/16] 0.0, 128
    %652 = vxpose.xlu0.b32.cont [9/16] 0.0, 128
    %653 = vxpose.xlu0.b32.cont [10/16] 0.0, 128
    %654 = vxpose.xlu0.b32.cont [11/16] 0.0, 128
    %655 = vxpose.xlu0.b32.cont [12/16] 0.0, 128
    %656 = vxpose.xlu0.b32.cont [13/16] 0.0, 128
    %657 = vxpose.xlu0.b32.cont [14/16] 0.0, 128
    %658 = vxpose.xlu0.b32.cont [15/16] 0.0, 128
    %659 = vxpose.xlu0.b32.end [16/16] 0.0, 128
    %v660 = vpop.trf.xlu0
    %v661 = vpop.trf.xlu0
    %v662 = vpop.trf.xlu0
    %v663 = vpop.trf.xlu0
    %v664 = vpop.trf.xlu0
    %v665 = vpop.trf.xlu0
    %v666 = vpop.trf.xlu0
    %v667 = vpop.trf.xlu0
    %v668 = vpop.trf.xlu0
    %v669 = vpop.trf.xlu0
    %v670 = vpop.trf.xlu0
    %v671 = vpop.trf.xlu0
    %v672 = vpop.trf.xlu0
    %v673 = vpop.trf.xlu0
    %v674 = vpop.trf.xlu0
    %v675 = vpop.trf.xlu0
    %v676 = vmul.f32 %v153, %v643
    %678 = vrot.lane.b32.xlu0 %v635, 120
    %v679 = vpop.permute.xlu0 %678
    %v681 = vmul.f32 %v156, %v679
    %v682 = vsub.f32 %v676, %v681
    %v683 = vmul.f32 %v660, %v682
    %v684 = vsel %vm331, %v683, 0.0
    %685 = vadd.xlane.f32.xlu0 %v684
    %v686 = vpop.xlane.xlu0 %685
    %v687 = vadd.f32 %v686, 1.0
    %v688 = vrcp.pop %v687
    %v689 = vmul.f32 %v687, %v688
    %v690 = vsub.f32 1.0, %v689
    %v691 = vmul.f32 %v688, %v690
    %v692 = vadd.f32 %v688, %v691
    %vm693 = vweird.f32 %v687
    %vm694 = vweird.f32 %v688
    %vm695 = vmor %vm693, %vm694
    %v696 = vsel %vm695, %v688, %v692
    %v697 = vand.u32 2147483647, %v687
    %vm698 = vcmp.eq.f32.partialorder %v697, 8.507059e+37
    %v699 = vand.u32 %v687, 2147483648
    %v700 = vor.u32 1.1754944e-38, %v699
    %v701 = vsel %vm698, %v700, %v696
    %v702 = vmul.f32 1.0, %v701
    %703 = vst.msk [vmem:[#allocation2] sm:$0xff] %vm167, %v192
    %v705 = vsel %vm331, %v683, 0
    %707 = vmatpush.msra.mxu0 0.0
    %708 = vmatpush.msra.mxu0 0.0
    %709 = vmatpush.msra.mxu0 0.0
    %710 = vmatpush.msra.mxu0 0.0
    %711 = vmatpush.msra.mxu0 0.0
    %712 = vmatpush.msra.mxu0 0.0
    %713 = vmatpush.msra.mxu0 0.0
    %714 = vmatpush.msra.mxu0 0.0
    %715 = vmatpush.msra.mxu0 0.0
    %716 = vmatpush.msra.mxu0 0.0
    %717 = vmatpush.msra.mxu0 0.0
    %718 = vmatpush.msra.mxu0 0.0
    %719 = vmatpush.msra.mxu0 0.0
    %720 = vmatpush.msra.mxu0 0.0
    %721 = vmatpush.msra.mxu0 0.0
    %722 = vmatpush.msra.mxu0 %v192
    %723 = vmatmul.f32.gmra.mxu0 %v705
    %v724 = vpop.f32.mrf.mxu0
    %v725 = vadd.f32 0.0, %v724
    %726 = vdwg.mxu0
    %727 = vst.msk [vmem:[#allocation3] sm:$0xff] %vm167, %v725
    %v728 = vld [vmem:[#allocation3] sm:$0xff]
    %v729 = vld [vmem:[#allocation2] sm:$0xff]
    %v730 = vadd.f32 %v728, %v729
    %v731 = vld [vmem:[%s19] sm:$0xff]
    %v732 = vld [vmem:[%s19 + $0x8] sm:$0xff]
    %v733 = vld [vmem:[%s19 + $0x10] sm:$0xff]
    %v734 = vld [vmem:[%s19 + $0x18] sm:$0xff]
    %v735 = vld [vmem:[%s23] sm:$0x1]
    %v736 = vmul.f32 %v735, 2.0
    %v738 = vperm.slane %v736, 0
    %v741 = vsel %vm167, %v730, 0
    %743 = vmatpush.msra.mxu0 0.0
    %744 = vmatpush.msra.mxu0 0.0
    %745 = vmatpush.msra.mxu0 0.0
    %746 = vmatpush.msra.mxu0 0.0
    %747 = vmatpush.msra.mxu0 0.0
    %748 = vmatpush.msra.mxu0 0.0
    %749 = vmatpush.msra.mxu0 0.0
    %750 = vmatpush.msra.mxu0 0.0
    %751 = vmatpush.msra.mxu0 0.0
    %752 = vmatpush.msra.mxu0 0.0
    %753 = vmatpush.msra.mxu0 0.0
    %754 = vmatpush.msra.mxu0 0.0
    %755 = vmatpush.msra.mxu0 %v734
    %756 = vmatpush.msra.mxu0 %v733
    %757 = vmatpush.msra.mxu0 %v732
    %758 = vmatpush.msra.mxu0 %v731
    %759 = vmatmul.f32.gmra.mxu0 %v741
    %v760 = vpop.f32.mrf.mxu0
    %v761 = vadd.f32 %v738, %v760
    %762 = vdwg.mxu0
    %v763 = vmul.f32 %v761, %v702
    %v764 = vmax.f32 %v763, 0.0
    %766 = vrot.lane.b32.xlu0 %v764, 32
    %v767 = vpop.permute.xlu0 %766
    %vm769 = vcmask 392448
    %770 = vst.msk [vmem:[#allocation2] sm:$0xff] %vm769, %v767
    %771 = vmatpush.msra.mxu0 0.0
    %772 = vmatpush.msra.mxu0 0.0
    %773 = vmatpush.msra.mxu0 0.0
    %774 = vmatpush.msra.mxu0 0.0
    %775 = vmatpush.msra.mxu0 0.0
    %776 = vmatpush.msra.mxu0 0.0
    %777 = vmatpush.msra.mxu0 0.0
    %778 = vmatpush.msra.mxu0 0.0
    %779 = vmatpush.msra.mxu0 0.0
    %780 = vmatpush.msra.mxu0 0.0
    %781 = vmatpush.msra.mxu0 0.0
    %782 = vmatpush.msra.mxu0 0.0
    %783 = vmatpush.msra.mxu0 0.0
    %784 = vmatpush.msra.mxu0 0.0
    %785 = vmatpush.msra.mxu0 0.0
    %786 = vmatpush.msra.mxu0 %v764
    %787 = vmatmul.f32.gmra.mxu0 %v705
    %v788 = vpop.f32.mrf.mxu0
    %v789 = vadd.f32 0.0, %v788
    %790 = vdwg.mxu0
    %792 = vrot.lane.b32.xlu0 %v789, 32
    %v793 = vpop.permute.xlu0 %792
    %795 = vst.msk [vmem:[#allocation3] sm:$0xff] %vm769, %v793
    %v796 = vld [vmem:[#allocation3] sm:$0xff]
    %v797 = vld [vmem:[#allocation2] sm:$0xff]
    %v798 = vadd.f32 %v796, %v797
    %v799 = vld [vmem:[%s21] sm:$0xff]
    %v800 = vld [vmem:[%s21 + $0x8] sm:$0xff]
    %v801 = vld [vmem:[%s21 + $0x10] sm:$0xff]
    %v802 = vld [vmem:[%s21 + $0x18] sm:$0xff]
    %v803 = vld [vmem:[%s21 + $0x20] sm:$0xff]
    %v804 = vld [vmem:[%s21 + $0x28] sm:$0xff]
    %v805 = vld [vmem:[%s25] sm:$0x1]
    %v806 = vmul.f32 %v805, 2.0
    %v808 = vperm.slane %v806, 0
    %vm810 = vcmask 392192
    %v812 = vsel %vm810, %v798, 0
    %814 = vmatpush.msra.mxu0 0.0
    %815 = vmatpush.msra.mxu0 0.0
    %816 = vmatpush.msra.mxu0 0.0
    %817 = vmatpush.msra.mxu0 0.0
    %818 = vmatpush.msra.mxu0 0.0
    %819 = vmatpush.msra.mxu0 0.0
    %820 = vmatpush.msra.mxu0 0.0
    %821 = vmatpush.msra.mxu0 0.0
    %822 = vmatpush.msra.mxu0 0.0
    %823 = vmatpush.msra.mxu0 0.0
    %824 = vmatpush.msra.mxu0 %v804
    %825 = vmatpush.msra.mxu0 %v803
    %826 = vmatpush.msra.mxu0 %v802
    %827 = vmatpush.msra.mxu0 %v801
    %828 = vmatpush.msra.mxu0 %v800
    %829 = vmatpush.msra.mxu0 %v799
    %830 = vmatmul.f32.gmra.mxu0 %v812
    %v831 = vpop.f32.mrf.mxu0
    %v832 = vadd.f32 %v808, %v831
    %833 = vdwg.mxu0
    %v834 = vmul.f32 %v832, %v702
    %v835 = vmax.f32 %v834, 0.0
    %837 = vrot.lane.b32.xlu0 %v835, 48
    %v838 = vpop.permute.xlu0 %837
    %vm840 = vcmask 523648
    %841 = vst.msk [vmem:[#allocation2] sm:$0xff] %vm840, %v838
    %v842 = vld [vmem:[#allocation2] sm:$0xff]
    %843 = vrot.lane.b32.xlu0 %v192, 32
    %v844 = vpop.permute.xlu0 %843
    %v846 = vadd.f32 %v842, %v844
    %v847 = vld [vmem:[%s27] sm:$0xff]
    %v848 = vld [vmem:[%s27 + $0x8] sm:$0xff]
    %v849 = vld [vmem:[%s27 + $0x10] sm:$0xff]
    %v850 = vld [vmem:[%s27 + $0x18] sm:$0xff]
    %v851 = vld [vmem:[%s29] sm:$0x1]
    %v853 = vperm.slane %v851, 0
    %856 = vrot.lane.b32.xlu0 %v846, 96
    %v857 = vpop.permute.xlu0 %856
    %v858 = vsel %vm167, %v857, 0
    %860 = vmatpush.msra.mxu0 0.0
    %861 = vmatpush.msra.mxu0 0.0
    %862 = vmatpush.msra.mxu0 0.0
    %863 = vmatpush.msra.mxu0 0.0
    %864 = vmatpush.msra.mxu0 0.0
    %865 = vmatpush.msra.mxu0 0.0
    %866 = vmatpush.msra.mxu0 0.0
    %867 = vmatpush.msra.mxu0 0.0
    %868 = vmatpush.msra.mxu0 0.0
    %869 = vmatpush.msra.mxu0 0.0
    %870 = vmatpush.msra.mxu0 0.0
    %871 = vmatpush.msra.mxu0 0.0
    %872 = vmatpush.msra.mxu0 %v850
    %873 = vmatpush.msra.mxu0 %v849
    %874 = vmatpush.msra.mxu0 %v848
    %875 = vmatpush.msra.mxu0 %v847
    %876 = vmatmul.f32.gmra.mxu0 %v858
    %v877 = vpop.f32.mrf.mxu0
    %v878 = vadd.f32 %v853, %v877
    %879 = vdwg.mxu0
    %v881 = vsel %vm167, %v235, 0
    %v884 = vsel %vm167, %v265, 0
    %886 = vmatpush.xpose.msra.mxu0 0.0
    %887 = vmatpush.xpose.msra.mxu0 0.0
    %888 = vmatpush.xpose.msra.mxu0 0.0
    %889 = vmatpush.xpose.msra.mxu0 0.0
    %890 = vmatpush.xpose.msra.mxu0 0.0
    %891 = vmatpush.xpose.msra.mxu0 0.0
    %892 = vmatpush.xpose.msra.mxu0 0.0
    %893 = vmatpush.xpose.msra.mxu0 0.0
    %894 = vmatpush.xpose.msra.mxu0 0.0
    %895 = vmatpush.xpose.msra.mxu0 0.0
    %896 = vmatpush.xpose.msra.mxu0 0.0
    %897 = vmatpush.xpose.msra.mxu0 0.0
    %898 = vmatpush.xpose.msra.mxu0 0.0
    %899 = vmatpush.xpose.msra.mxu0 0.0
    %900 = vmatpush.xpose.msra.mxu0 0.0
    %901 = vmatpush.xpose.msra.mxu0 %v884
    %902 = vmatmul.f32.gmra.mxu0 %v881
    %v903 = vpop.f32.mrf.mxu0
    %v904 = vadd.f32 0.0, %v903
    %905 = vdwg.mxu0
    %v906 = vmul.f32 %v904, 1.442695
    %v907 = vpow.pop %v906
    %v908 = vmul.f32 %v907, %v150
    %v909 = vsel %vm331, %v908, 0.0
    %v910 = vrot.slane %v909, 4
    %v911 = vadd.f32 %v909, %v910
    %v912 = vrot.slane %v911, 2
    %v913 = vadd.f32 %v911, %v912
    %v914 = vrot.slane %v913, 1
    %v915 = vadd.f32 %v913, %v914
    %v916 = vmul.f32 %v149, %v915
    %v917 = vsub.f32 %v916, %v908
    %918 = vxpose.xlu0.b32.start [1/16] %v301, 128
    %919 = vxpose.xlu0.b32.cont [2/16] 0.0, 128
    %920 = vxpose.xlu0.b32.cont [3/16] 0.0, 128
    %921 = vxpose.xlu0.b32.cont [4/16] 0.0, 128
    %922 = vxpose.xlu0.b32.cont [5/16] 0.0, 128
    %923 = vxpose.xlu0.b32.cont [6/16] 0.0, 128
    %924 = vxpose.xlu0.b32.cont [7/16] 0.0, 128
    %925 = vxpose.xlu0.b32.cont [8/16] 0.0, 128
    %926 = vxpose.xlu0.b32.cont [9/16] 0.0, 128
    %927 = vxpose.xlu0.b32.cont [10/16] 0.0, 128
    %928 = vxpose.xlu0.b32.cont [11/16] 0.0, 128
    %929 = vxpose.xlu0.b32.cont [12/16] 0.0, 128
    %930 = vxpose.xlu0.b32.cont [13/16] 0.0, 128
    %931 = vxpose.xlu0.b32.cont [14/16] 0.0, 128
    %932 = vxpose.xlu0.b32.cont [15/16] 0.0, 128
    %933 = vxpose.xlu0.b32.end [16/16] 0.0, 128
    %v934 = vpop.trf.xlu0
    %v935 = vpop.trf.xlu0
    %v936 = vpop.trf.xlu0
    %v937 = vpop.trf.xlu0
    %v938 = vpop.trf.xlu0
    %v939 = vpop.trf.xlu0
    %v940 = vpop.trf.xlu0
    %v941 = vpop.trf.xlu0
    %v942 = vpop.trf.xlu0
    %v943 = vpop.trf.xlu0
    %v944 = vpop.trf.xlu0
    %v945 = vpop.trf.xlu0
    %v946 = vpop.trf.xlu0
    %v947 = vpop.trf.xlu0
    %v948 = vpop.trf.xlu0
    %v949 = vpop.trf.xlu0
    %v950 = vperm.slane %v934, 0
    %v951 = vsel %vm341, %v950, %v917
    %v952 = vsel %vm331, %v951, %v378
    %954 = vset.pattern.permute.xlu0 0
    %955 = vperm.xlu0 %954, %v952
    %v956 = vpop.permute.xlu0 %955
    %v958 = vrcp.pop %v956
    %v959 = vmul.f32 %v956, %v958
    %v960 = vsub.f32 1.0, %v959
    %v961 = vmul.f32 %v958, %v960
    %v962 = vadd.f32 %v958, %v961
    %vm963 = vweird.f32 %v956
    %vm964 = vweird.f32 %v958
    %vm965 = vmor %vm963, %vm964
    %v966 = vsel %vm965, %v958, %v962
    %v967 = vand.u32 2147483647, %v956
    %vm968 = vcmp.eq.f32.partialorder %v967, 8.507059e+37
    %v969 = vand.u32 %v956, 2147483648
    %v970 = vor.u32 1.1754944e-38, %v969
    %v971 = vsel %vm968, %v970, %v966
    %v972 = vmul.f32 %v952, %v971
    %v973 = vsub.f32 %v952, %v402
    %975 = vset.pattern.permute.xlu0 0
    %976 = vperm.xlu0 %975, %v973
    %v977 = vpop.permute.xlu0 %976
    %v979 = vperm.slane %v972, 0
    %v980 = vmul.f32 %v977, %v979
    %v981 = vsub.f32 %v952, %v980
    %983 = vset.pattern.permute.xlu0 1
    %984 = vperm.xlu0 %983, %v981
    %v985 = vpop.permute.xlu0 %984
    %v987 = vrcp.pop %v985
    %v988 = vmul.f32 %v985, %v987
    %v989 = vsub.f32 1.0, %v988
    %v990 = vmul.f32 %v987, %v989
    %v991 = vadd.f32 %v987, %v990
    %vm992 = vweird.f32 %v985
    %vm993 = vweird.f32 %v987
    %vm994 = vmor %vm992, %vm993
    %v995 = vsel %vm994, %v987, %v991
    %v996 = vand.u32 2147483647, %v985
    %vm997 = vcmp.eq.f32.partialorder %v996, 8.507059e+37
    %v998 = vand.u32 %v985, 2147483648
    %v999 = vor.u32 1.1754944e-38, %v998
    %v1000 = vsel %vm997, %v999, %v995
    %v1001 = vmul.f32 %v981, %v1000
    %v1002 = vsub.f32 %v981, %v434
    %1004 = vset.pattern.permute.xlu0 1
    %1005 = vperm.xlu0 %1004, %v1002
    %v1006 = vpop.permute.xlu0 %1005
    %v1008 = vperm.slane %v1001, 1
    %v1009 = vmul.f32 %v1006, %v1008
    %v1010 = vsub.f32 %v981, %v1009
    %1012 = vset.pattern.permute.xlu0 2
    %1013 = vperm.xlu0 %1012, %v1010
    %v1014 = vpop.permute.xlu0 %1013
    %v1016 = vrcp.pop %v1014
    %v1017 = vmul.f32 %v1014, %v1016
    %v1018 = vsub.f32 1.0, %v1017
    %v1019 = vmul.f32 %v1016, %v1018
    %v1020 = vadd.f32 %v1016, %v1019
    %vm1021 = vweird.f32 %v1014
    %vm1022 = vweird.f32 %v1016
    %vm1023 = vmor %vm1021, %vm1022
    %v1024 = vsel %vm1023, %v1016, %v1020
    %v1025 = vand.u32 2147483647, %v1014
    %vm1026 = vcmp.eq.f32.partialorder %v1025, 8.507059e+37
    %v1027 = vand.u32 %v1014, 2147483648
    %v1028 = vor.u32 1.1754944e-38, %v1027
    %v1029 = vsel %vm1026, %v1028, %v1024
    %v1030 = vmul.f32 %v1010, %v1029
    %v1031 = vsub.f32 %v1010, %v466
    %1033 = vset.pattern.permute.xlu0 2
    %1034 = vperm.xlu0 %1033, %v1031
    %v1035 = vpop.permute.xlu0 %1034
    %v1037 = vperm.slane %v1030, 2
    %v1038 = vmul.f32 %v1035, %v1037
    %v1039 = vsub.f32 %v1010, %v1038
    %1041 = vset.pattern.permute.xlu0 3
    %1042 = vperm.xlu0 %1041, %v1039
    %v1043 = vpop.permute.xlu0 %1042
    %v1045 = vrcp.pop %v1043
    %v1046 = vmul.f32 %v1043, %v1045
    %v1047 = vsub.f32 1.0, %v1046
    %v1048 = vmul.f32 %v1045, %v1047
    %v1049 = vadd.f32 %v1045, %v1048
    %vm1050 = vweird.f32 %v1043
    %vm1051 = vweird.f32 %v1045
    %vm1052 = vmor %vm1050, %vm1051
    %v1053 = vsel %vm1052, %v1045, %v1049
    %v1054 = vand.u32 2147483647, %v1043
    %vm1055 = vcmp.eq.f32.partialorder %v1054, 8.507059e+37
    %v1056 = vand.u32 %v1043, 2147483648
    %v1057 = vor.u32 1.1754944e-38, %v1056
    %v1058 = vsel %vm1055, %v1057, %v1053
    %v1059 = vmul.f32 %v1039, %v1058
    %v1060 = vsub.f32 %v1039, %v498
    %1062 = vset.pattern.permute.xlu0 3
    %1063 = vperm.xlu0 %1062, %v1060
    %v1064 = vpop.permute.xlu0 %1063
    %v1066 = vperm.slane %v1059, 3
    %v1067 = vmul.f32 %v1064, %v1066
    %v1068 = vsub.f32 %v1039, %v1067
    %1070 = vset.pattern.permute.xlu0 4
    %1071 = vperm.xlu0 %1070, %v1068
    %v1072 = vpop.permute.xlu0 %1071
    %v1074 = vrcp.pop %v1072
    %v1075 = vmul.f32 %v1072, %v1074
    %v1076 = vsub.f32 1.0, %v1075
    %v1077 = vmul.f32 %v1074, %v1076
    %v1078 = vadd.f32 %v1074, %v1077
    %vm1079 = vweird.f32 %v1072
    %vm1080 = vweird.f32 %v1074
    %vm1081 = vmor %vm1079, %vm1080
    %v1082 = vsel %vm1081, %v1074, %v1078
    %v1083 = vand.u32 2147483647, %v1072
    %vm1084 = vcmp.eq.f32.partialorder %v1083, 8.507059e+37
    %v1085 = vand.u32 %v1072, 2147483648
    %v1086 = vor.u32 1.1754944e-38, %v1085
    %v1087 = vsel %vm1084, %v1086, %v1082
    %v1088 = vmul.f32 %v1068, %v1087
    %v1089 = vsub.f32 %v1068, %v530
    %1091 = vset.pattern.permute.xlu0 4
    %1092 = vperm.xlu0 %1091, %v1089
    %v1093 = vpop.permute.xlu0 %1092
    %v1095 = vperm.slane %v1088, 4
    %v1096 = vmul.f32 %v1093, %v1095
    %v1097 = vsub.f32 %v1068, %v1096
    %1099 = vset.pattern.permute.xlu0 5
    %1100 = vperm.xlu0 %1099, %v1097
    %v1101 = vpop.permute.xlu0 %1100
    %v1103 = vrcp.pop %v1101
    %v1104 = vmul.f32 %v1101, %v1103
    %v1105 = vsub.f32 1.0, %v1104
    %v1106 = vmul.f32 %v1103, %v1105
    %v1107 = vadd.f32 %v1103, %v1106
    %vm1108 = vweird.f32 %v1101
    %vm1109 = vweird.f32 %v1103
    %vm1110 = vmor %vm1108, %vm1109
    %v1111 = vsel %vm1110, %v1103, %v1107
    %v1112 = vand.u32 2147483647, %v1101
    %vm1113 = vcmp.eq.f32.partialorder %v1112, 8.507059e+37
    %v1114 = vand.u32 %v1101, 2147483648
    %v1115 = vor.u32 1.1754944e-38, %v1114
    %v1116 = vsel %vm1113, %v1115, %v1111
    %v1117 = vmul.f32 %v1097, %v1116
    %v1118 = vsub.f32 %v1097, %v562
    %1120 = vset.pattern.permute.xlu0 5
    %1121 = vperm.xlu0 %1120, %v1118
    %v1122 = vpop.permute.xlu0 %1121
    %v1124 = vperm.slane %v1117, 5
    %v1125 = vmul.f32 %v1122, %v1124
    %v1126 = vsub.f32 %v1097, %v1125
    %1128 = vset.pattern.permute.xlu0 6
    %1129 = vperm.xlu0 %1128, %v1126
    %v1130 = vpop.permute.xlu0 %1129
    %v1132 = vrcp.pop %v1130
    %v1133 = vmul.f32 %v1130, %v1132
    %v1134 = vsub.f32 1.0, %v1133
    %v1135 = vmul.f32 %v1132, %v1134
    %v1136 = vadd.f32 %v1132, %v1135
    %vm1137 = vweird.f32 %v1130
    %vm1138 = vweird.f32 %v1132
    %vm1139 = vmor %vm1137, %vm1138
    %v1140 = vsel %vm1139, %v1132, %v1136
    %v1141 = vand.u32 2147483647, %v1130
    %vm1142 = vcmp.eq.f32.partialorder %v1141, 8.507059e+37
    %v1143 = vand.u32 %v1130, 2147483648
    %v1144 = vor.u32 1.1754944e-38, %v1143
    %v1145 = vsel %vm1142, %v1144, %v1140
    %v1146 = vmul.f32 %v1126, %v1145
    %v1147 = vsub.f32 %v1126, %v594
    %1149 = vset.pattern.permute.xlu0 6
    %1150 = vperm.xlu0 %1149, %v1147
    %v1151 = vpop.permute.xlu0 %1150
    %v1153 = vperm.slane %v1146, 6
    %v1154 = vmul.f32 %v1151, %v1153
    %v1155 = vsub.f32 %v1126, %v1154
    %1157 = vset.pattern.permute.xlu0 7
    %1158 = vperm.xlu0 %1157, %v1155
    %v1159 = vpop.permute.xlu0 %1158
    %v1161 = vrcp.pop %v1159
    %v1162 = vmul.f32 %v1159, %v1161
    %v1163 = vsub.f32 1.0, %v1162
    %v1164 = vmul.f32 %v1161, %v1163
    %v1165 = vadd.f32 %v1161, %v1164
    %vm1166 = vweird.f32 %v1159
    %vm1167 = vweird.f32 %v1161
    %vm1168 = vmor %vm1166, %vm1167
    %v1169 = vsel %vm1168, %v1161, %v1165
    %v1170 = vand.u32 2147483647, %v1159
    %vm1171 = vcmp.eq.f32.partialorder %v1170, 8.507059e+37
    %v1172 = vand.u32 %v1159, 2147483648
    %v1173 = vor.u32 1.1754944e-38, %v1172
    %v1174 = vsel %vm1171, %v1173, %v1169
    %v1175 = vmul.f32 %v1155, %v1174
    %v1176 = vsub.f32 %v1155, %v626
    %1178 = vset.pattern.permute.xlu0 7
    %1179 = vperm.xlu0 %1178, %v1176
    %v1180 = vpop.permute.xlu0 %1179
    %v1182 = vperm.slane %v1175, 7
    %v1183 = vmul.f32 %v1180, %v1182
    %v1184 = vsub.f32 %v1155, %v1183
    %v1185 = vmul.f32 %v1184, %v378
    %1187 = vrot.lane.b32.xlu0 %v1185, 120
    %v1188 = vpop.permute.xlu0 %1187
    %v1190 = vsel %vm331, %v1188, 0.0
    %1191 = vadd.xlane.f32.xlu0 %v1190
    %v1192 = vpop.xlane.xlu0 %1191
    %1193 = vxpose.xlu0.b32.start [1/16] %v908, 128
    %1194 = vxpose.xlu0.b32.cont [2/16] 0.0, 128
    %1195 = vxpose.xlu0.b32.cont [3/16] 0.0, 128
    %1196 = vxpose.xlu0.b32.cont [4/16] 0.0, 128
    %1197 = vxpose.xlu0.b32.cont [5/16] 0.0, 128
    %1198 = vxpose.xlu0.b32.cont [6/16] 0.0, 128
    %1199 = vxpose.xlu0.b32.cont [7/16] 0.0, 128
    %1200 = vxpose.xlu0.b32.cont [8/16] 0.0, 128
    %1201 = vxpose.xlu0.b32.cont [9/16] 0.0, 128
    %1202 = vxpose.xlu0.b32.cont [10/16] 0.0, 128
    %1203 = vxpose.xlu0.b32.cont [11/16] 0.0, 128
    %1204 = vxpose.xlu0.b32.cont [12/16] 0.0, 128
    %1205 = vxpose.xlu0.b32.cont [13/16] 0.0, 128
    %1206 = vxpose.xlu0.b32.cont [14/16] 0.0, 128
    %1207 = vxpose.xlu0.b32.cont [15/16] 0.0, 128
    %1208 = vxpose.xlu0.b32.end [16/16] 0.0, 128
    %v1209 = vpop.trf.xlu0
    %v1210 = vpop.trf.xlu0
    %v1211 = vpop.trf.xlu0
    %v1212 = vpop.trf.xlu0
    %v1213 = vpop.trf.xlu0
    %v1214 = vpop.trf.xlu0
    %v1215 = vpop.trf.xlu0
    %v1216 = vpop.trf.xlu0
    %v1217 = vpop.trf.xlu0
    %v1218 = vpop.trf.xlu0
    %v1219 = vpop.trf.xlu0
    %v1220 = vpop.trf.xlu0
    %v1221 = vpop.trf.xlu0
    %v1222 = vpop.trf.xlu0
    %v1223 = vpop.trf.xlu0
    %v1224 = vpop.trf.xlu0
    %v1225 = vmul.f32 %v153, %v1192
    %1227 = vrot.lane.b32.xlu0 %v1184, 120
    %v1228 = vpop.permute.xlu0 %1227
    %v1230 = vmul.f32 %v156, %v1228
    %v1231 = vsub.f32 %v1225, %v1230
    %v1232 = vmul.f32 %v1209, %v1231
    %v1233 = vsel %vm331, %v1232, 0.0
    %1234 = vadd.xlane.f32.xlu0 %v1233
    %v1235 = vpop.xlane.xlu0 %1234
    %v1236 = vadd.f32 %v1235, 1.0
    %v1237 = vrcp.pop %v1236
    %v1238 = vmul.f32 %v1236, %v1237
    %v1239 = vsub.f32 1.0, %v1238
    %v1240 = vmul.f32 %v1237, %v1239
    %v1241 = vadd.f32 %v1237, %v1240
    %vm1242 = vweird.f32 %v1236
    %vm1243 = vweird.f32 %v1237
    %vm1244 = vmor %vm1242, %vm1243
    %v1245 = vsel %vm1244, %v1237, %v1241
    %v1246 = vand.u32 2147483647, %v1236
    %vm1247 = vcmp.eq.f32.partialorder %v1246, 8.507059e+37
    %v1248 = vand.u32 %v1236, 2147483648
    %v1249 = vor.u32 1.1754944e-38, %v1248
    %v1250 = vsel %vm1247, %v1249, %v1245
    %v1251 = vmul.f32 1.0, %v1250
    %1252 = vst.msk [vmem:[#allocation2] sm:$0xff] %vm167, %v195
    %v1254 = vsel %vm331, %v1232, 0
    %1256 = vmatpush.msra.mxu0 0.0
    %1257 = vmatpush.msra.mxu0 0.0
    %1258 = vmatpush.msra.mxu0 0.0
    %1259 = vmatpush.msra.mxu0 0.0
    %1260 = vmatpush.msra.mxu0 0.0
    %1261 = vmatpush.msra.mxu0 0.0
    %1262 = vmatpush.msra.mxu0 0.0
    %1263 = vmatpush.msra.mxu0 0.0
    %1264 = vmatpush.msra.mxu0 0.0
    %1265 = vmatpush.msra.mxu0 0.0
    %1266 = vmatpush.msra.mxu0 0.0
    %1267 = vmatpush.msra.mxu0 0.0
    %1268 = vmatpush.msra.mxu0 0.0
    %1269 = vmatpush.msra.mxu0 0.0
    %1270 = vmatpush.msra.mxu0 0.0
    %1271 = vmatpush.msra.mxu0 %v195
    %1272 = vmatmul.f32.gmra.mxu0 %v1254
    %v1273 = vpop.f32.mrf.mxu0
    %v1274 = vadd.f32 0.0, %v1273
    %1275 = vdwg.mxu0
    %1276 = vst.msk [vmem:[#allocation3] sm:$0xff] %vm167, %v1274
    %v1277 = vld [vmem:[#allocation3] sm:$0xff]
    %v1278 = vld [vmem:[#allocation2] sm:$0xff]
    %v1279 = vadd.f32 %v1277, %v1278
    %v1280 = vld [vmem:[%s19] sm:$0xff]
    %v1281 = vld [vmem:[%s19 + $0x8] sm:$0xff]
    %v1282 = vld [vmem:[%s19 + $0x10] sm:$0xff]
    %v1283 = vld [vmem:[%s19 + $0x18] sm:$0xff]
    %v1284 = vld [vmem:[%s23] sm:$0x1]
    %v1285 = vmul.f32 %v1284, 2.0
    %v1287 = vperm.slane %v1285, 0
    %v1290 = vsel %vm167, %v1279, 0
    %1292 = vmatpush.msra.mxu0 0.0
    %1293 = vmatpush.msra.mxu0 0.0
    %1294 = vmatpush.msra.mxu0 0.0
    %1295 = vmatpush.msra.mxu0 0.0
    %1296 = vmatpush.msra.mxu0 0.0
    %1297 = vmatpush.msra.mxu0 0.0
    %1298 = vmatpush.msra.mxu0 0.0
    %1299 = vmatpush.msra.mxu0 0.0
    %1300 = vmatpush.msra.mxu0 0.0
    %1301 = vmatpush.msra.mxu0 0.0
    %1302 = vmatpush.msra.mxu0 0.0
    %1303 = vmatpush.msra.mxu0 0.0
    %1304 = vmatpush.msra.mxu0 %v1283
    %1305 = vmatpush.msra.mxu0 %v1282
    %1306 = vmatpush.msra.mxu0 %v1281
    %1307 = vmatpush.msra.mxu0 %v1280
    %1308 = vmatmul.f32.gmra.mxu0 %v1290
    %v1309 = vpop.f32.mrf.mxu0
    %v1310 = vadd.f32 %v1287, %v1309
    %1311 = vdwg.mxu0
    %v1312 = vmul.f32 %v1310, %v1251
    %v1313 = vmax.f32 %v1312, 0.0
    %1315 = vrot.lane.b32.xlu0 %v1313, 32
    %v1316 = vpop.permute.xlu0 %1315
    %1318 = vst.msk [vmem:[#allocation2] sm:$0xff] %vm769, %v1316
    %1319 = vmatpush.msra.mxu0 0.0
    %1320 = vmatpush.msra.mxu0 0.0
    %1321 = vmatpush.msra.mxu0 0.0
    %1322 = vmatpush.msra.mxu0 0.0
    %1323 = vmatpush.msra.mxu0 0.0
    %1324 = vmatpush.msra.mxu0 0.0
    %1325 = vmatpush.msra.mxu0 0.0
    %1326 = vmatpush.msra.mxu0 0.0
    %1327 = vmatpush.msra.mxu0 0.0
    %1328 = vmatpush.msra.mxu0 0.0
    %1329 = vmatpush.msra.mxu0 0.0
    %1330 = vmatpush.msra.mxu0 0.0
    %1331 = vmatpush.msra.mxu0 0.0
    %1332 = vmatpush.msra.mxu0 0.0
    %1333 = vmatpush.msra.mxu0 0.0
    %1334 = vmatpush.msra.mxu0 %v1313
    %1335 = vmatmul.f32.gmra.mxu0 %v1254
    %v1336 = vpop.f32.mrf.mxu0
    %v1337 = vadd.f32 0.0, %v1336
    %1338 = vdwg.mxu0
    %1340 = vrot.lane.b32.xlu0 %v1337, 32
    %v1341 = vpop.permute.xlu0 %1340
    %1343 = vst.msk [vmem:[#allocation3] sm:$0xff] %vm769, %v1341
    %v1344 = vld [vmem:[#allocation3] sm:$0xff]
    %v1345 = vld [vmem:[#allocation2] sm:$0xff]
    %v1346 = vadd.f32 %v1344, %v1345
    %v1347 = vld [vmem:[%s21] sm:$0xff]
    %v1348 = vld [vmem:[%s21 + $0x8] sm:$0xff]
    %v1349 = vld [vmem:[%s21 + $0x10] sm:$0xff]
    %v1350 = vld [vmem:[%s21 + $0x18] sm:$0xff]
    %v1351 = vld [vmem:[%s21 + $0x20] sm:$0xff]
    %v1352 = vld [vmem:[%s21 + $0x28] sm:$0xff]
    %v1353 = vld [vmem:[%s25] sm:$0x1]
    %v1354 = vmul.f32 %v1353, 2.0
    %v1356 = vperm.slane %v1354, 0
    %v1359 = vsel %vm810, %v1346, 0
    %1361 = vmatpush.msra.mxu0 0.0
    %1362 = vmatpush.msra.mxu0 0.0
    %1363 = vmatpush.msra.mxu0 0.0
    %1364 = vmatpush.msra.mxu0 0.0
    %1365 = vmatpush.msra.mxu0 0.0
    %1366 = vmatpush.msra.mxu0 0.0
    %1367 = vmatpush.msra.mxu0 0.0
    %1368 = vmatpush.msra.mxu0 0.0
    %1369 = vmatpush.msra.mxu0 0.0
    %1370 = vmatpush.msra.mxu0 0.0
    %1371 = vmatpush.msra.mxu0 %v1352
    %1372 = vmatpush.msra.mxu0 %v1351
    %1373 = vmatpush.msra.mxu0 %v1350
    %1374 = vmatpush.msra.mxu0 %v1349
    %1375 = vmatpush.msra.mxu0 %v1348
    %1376 = vmatpush.msra.mxu0 %v1347
    %1377 = vmatmul.f32.gmra.mxu0 %v1359
    %v1378 = vpop.f32.mrf.mxu0
    %v1379 = vadd.f32 %v1356, %v1378
    %1380 = vdwg.mxu0
    %v1381 = vmul.f32 %v1379, %v1251
    %v1382 = vmax.f32 %v1381, 0.0
    %1384 = vrot.lane.b32.xlu0 %v1382, 48
    %v1385 = vpop.permute.xlu0 %1384
    %1387 = vst.msk [vmem:[#allocation2] sm:$0xff] %vm840, %v1385
    %v1388 = vld [vmem:[#allocation2] sm:$0xff]
    %1389 = vrot.lane.b32.xlu0 %v195, 32
    %v1390 = vpop.permute.xlu0 %1389
    %v1392 = vadd.f32 %v1388, %v1390
    %v1393 = vld [vmem:[%s27] sm:$0xff]
    %v1394 = vld [vmem:[%s27 + $0x8] sm:$0xff]
    %v1395 = vld [vmem:[%s27 + $0x10] sm:$0xff]
    %v1396 = vld [vmem:[%s27 + $0x18] sm:$0xff]
    %v1397 = vld [vmem:[%s29] sm:$0x1]
    %v1399 = vperm.slane %v1397, 0
    %1402 = vrot.lane.b32.xlu0 %v1392, 96
    %v1403 = vpop.permute.xlu0 %1402
    %v1404 = vsel %vm167, %v1403, 0
    %1406 = vmatpush.msra.mxu0 0.0
    %1407 = vmatpush.msra.mxu0 0.0
    %1408 = vmatpush.msra.mxu0 0.0
    %1409 = vmatpush.msra.mxu0 0.0
    %1410 = vmatpush.msra.mxu0 0.0
    %1411 = vmatpush.msra.mxu0 0.0
    %1412 = vmatpush.msra.mxu0 0.0
    %1413 = vmatpush.msra.mxu0 0.0
    %1414 = vmatpush.msra.mxu0 0.0
    %1415 = vmatpush.msra.mxu0 0.0
    %1416 = vmatpush.msra.mxu0 0.0
    %1417 = vmatpush.msra.mxu0 0.0
    %1418 = vmatpush.msra.mxu0 %v1396
    %1419 = vmatpush.msra.mxu0 %v1395
    %1420 = vmatpush.msra.mxu0 %v1394
    %1421 = vmatpush.msra.mxu0 %v1393
    %1422 = vmatmul.f32.gmra.mxu0 %v1404
    %v1423 = vpop.f32.mrf.mxu0
    %v1424 = vadd.f32 %v1399, %v1423
    %1425 = vdwg.mxu0
    %v1426 = vld [vmem:[%s31] sm:$0xff]
    %v1427 = vld [vmem:[%s31 + $0x8] sm:$0xff]
    %v1428 = vld [vmem:[%s31 + $0x10] sm:$0xff]
    %v1429 = vld [vmem:[%s31 + $0x18] sm:$0xff]
    %v1430 = vld [vmem:[%s33] sm:$0x1]
    %v1432 = vperm.slane %v1430, 0
    %v1435 = vsel %vm167, %v878, 0
    %v1438 = vsel %vm167, %v1424, 0
    %1440 = vmatpush.msra.mxu0 0.0
    %1441 = vmatpush.msra.mxu0 0.0
    %1442 = vmatpush.msra.mxu0 0.0
    %1443 = vmatpush.msra.mxu0 0.0
    %1444 = vmatpush.msra.mxu0 0.0
    %1445 = vmatpush.msra.mxu0 0.0
    %1446 = vmatpush.msra.mxu0 0.0
    %1447 = vmatpush.msra.mxu0 0.0
    %1448 = vmatpush.msra.mxu0 0.0
    %1449 = vmatpush.msra.mxu0 0.0
    %1450 = vmatpush.msra.mxu0 0.0
    %1451 = vmatpush.msra.mxu0 0.0
    %1452 = vmatpush.msra.mxu0 %v1429
    %1453 = vmatpush.msra.mxu0 %v1428
    %1454 = vmatpush.msra.mxu0 %v1427
    %1455 = vmatpush.msra.mxu0 %v1426
    %1456 = vmatmul.f32.gmra.mxu0 %v1435
    %v1457 = vpop.f32.mrf.mxu0
    %v1458 = vadd.f32 %v1432, %v1457
    %1459 = vmatmul.f32.gmra.mxu0 %v1438
    %v1460 = vpop.f32.mrf.mxu0
    %v1461 = vadd.f32 %v1432, %v1460
    %1462 = vdwg.mxu0
    %v1463 = vmul.f32 %v1458, 0.17677669
    %v1464 = vmul.f32 %v1461, 0.17677669
    %v1465 = vld [vmem:[%s35] sm:$0xff]
    %v1466 = vld [vmem:[%s35 + $0x8] sm:$0xff]
    %v1467 = vld [vmem:[%s35 + $0x10] sm:$0xff]
    %v1468 = vld [vmem:[%s35 + $0x18] sm:$0xff]
    %v1469 = vld [vmem:[%s37] sm:$0x1]
    %v1471 = vperm.slane %v1469, 0
    %1473 = vmatpush.msra.mxu0 0.0
    %1474 = vmatpush.msra.mxu0 0.0
    %1475 = vmatpush.msra.mxu0 0.0
    %1476 = vmatpush.msra.mxu0 0.0
    %1477 = vmatpush.msra.mxu0 0.0
    %1478 = vmatpush.msra.mxu0 0.0
    %1479 = vmatpush.msra.mxu0 0.0
    %1480 = vmatpush.msra.mxu0 0.0
    %1481 = vmatpush.msra.mxu0 0.0
    %1482 = vmatpush.msra.mxu0 0.0
    %1483 = vmatpush.msra.mxu0 0.0
    %1484 = vmatpush.msra.mxu0 0.0
    %1485 = vmatpush.msra.mxu0 %v1468
    %1486 = vmatpush.msra.mxu0 %v1467
    %1487 = vmatpush.msra.mxu0 %v1466
    %1488 = vmatpush.msra.mxu0 %v1465
    %1489 = vmatmul.f32.gmra.mxu0 %v1435
    %v1490 = vpop.f32.mrf.mxu0
    %v1491 = vadd.f32 %v1471, %v1490
    %1492 = vmatmul.f32.gmra.mxu0 %v1438
    %v1493 = vpop.f32.mrf.mxu0
    %v1494 = vadd.f32 %v1471, %v1493
    %1495 = vdwg.mxu0
    %v1496 = vld [vmem:[%s39] sm:$0xff]
    %v1497 = vld [vmem:[%s39 + $0x8] sm:$0xff]
    %v1498 = vld [vmem:[%s39 + $0x10] sm:$0xff]
    %v1499 = vld [vmem:[%s39 + $0x18] sm:$0xff]
    %v1500 = vld [vmem:[#allocation5] sm:$0x1]
    %v1502 = vperm.slane %v1500, 0
    %1504 = vmatpush.msra.mxu0 0.0
    %1505 = vmatpush.msra.mxu0 0.0
    %1506 = vmatpush.msra.mxu0 0.0
    %1507 = vmatpush.msra.mxu0 0.0
    %1508 = vmatpush.msra.mxu0 0.0
    %1509 = vmatpush.msra.mxu0 0.0
    %1510 = vmatpush.msra.mxu0 0.0
    %1511 = vmatpush.msra.mxu0 0.0
    %1512 = vmatpush.msra.mxu0 0.0
    %1513 = vmatpush.msra.mxu0 0.0
    %1514 = vmatpush.msra.mxu0 0.0
    %1515 = vmatpush.msra.mxu0 0.0
    %1516 = vmatpush.msra.mxu0 %v1499
    %1517 = vmatpush.msra.mxu0 %v1498
    %1518 = vmatpush.msra.mxu0 %v1497
    %1519 = vmatpush.msra.mxu0 %v1496
    %1520 = vmatmul.f32.gmra.mxu0 %v1435
    %v1521 = vpop.f32.mrf.mxu0
    %v1522 = vadd.f32 %v1502, %v1521
    %1523 = vmatmul.f32.gmra.mxu0 %v1438
    %v1524 = vpop.f32.mrf.mxu0
    %v1525 = vadd.f32 %v1502, %v1524
    %1526 = vdwg.mxu0
    %v1527 = vmul.f32 %v1522, 1.442695
    %v1528 = vpow.pop %v1527
    %v1529 = vmul.f32 %v1525, 1.442695
    %v1530 = vpow.pop %v1529
    %v1532 = vsel %vm167, %v1463, 0
    %v1535 = vsel %vm167, %v1491, 0
    %1537 = vmatpush.xpose.msra.mxu0 0.0
    %1538 = vmatpush.xpose.msra.mxu0 0.0
    %1539 = vmatpush.xpose.msra.mxu0 0.0
    %1540 = vmatpush.xpose.msra.mxu0 0.0
    %1541 = vmatpush.xpose.msra.mxu0 0.0
    %1542 = vmatpush.xpose.msra.mxu0 0.0
    %1543 = vmatpush.xpose.msra.mxu0 0.0
    %1544 = vmatpush.xpose.msra.mxu0 0.0
    %1545 = vmatpush.xpose.msra.mxu0 0.0
    %1546 = vmatpush.xpose.msra.mxu0 0.0
    %1547 = vmatpush.xpose.msra.mxu0 0.0
    %1548 = vmatpush.xpose.msra.mxu0 0.0
    %1549 = vmatpush.xpose.msra.mxu0 0.0
    %1550 = vmatpush.xpose.msra.mxu0 0.0
    %1551 = vmatpush.xpose.msra.mxu0 0.0
    %1552 = vmatpush.xpose.msra.mxu0 %v1535
    %1553 = vmatmul.f32.gmra.mxu0 %v1532
    %v1554 = vpop.f32.mrf.mxu0
    %v1555 = vadd.f32 0.0, %v1554
    %1556 = vdwg.mxu0
    %v1557 = vmul.f32 %v1555, 1.442695
    %v1558 = vpow.pop %v1557
    %v1559 = vmul.f32 %v1558, %v150
    %v1560 = vsel %vm331, %v1559, 0.0
    %v1561 = vrot.slane %v1560, 4
    %v1562 = vadd.f32 %v1560, %v1561
    %v1563 = vrot.slane %v1562, 2
    %v1564 = vadd.f32 %v1562, %v1563
    %v1565 = vrot.slane %v1564, 1
    %v1566 = vadd.f32 %v1564, %v1565
    %v1567 = vmul.f32 %v149, %v1566
    %v1568 = vsub.f32 %v1567, %v1559
    %1569 = vxpose.xlu0.b32.start [1/16] %v1528, 128
    %1570 = vxpose.xlu0.b32.cont [2/16] 0.0, 128
    %1571 = vxpose.xlu0.b32.cont [3/16] 0.0, 128
    %1572 = vxpose.xlu0.b32.cont [4/16] 0.0, 128
    %1573 = vxpose.xlu0.b32.cont [5/16] 0.0, 128
    %1574 = vxpose.xlu0.b32.cont [6/16] 0.0, 128
    %1575 = vxpose.xlu0.b32.cont [7/16] 0.0, 128
    %1576 = vxpose.xlu0.b32.cont [8/16] 0.0, 128
    %1577 = vxpose.xlu0.b32.cont [9/16] 0.0, 128
    %1578 = vxpose.xlu0.b32.cont [10/16] 0.0, 128
    %1579 = vxpose.xlu0.b32.cont [11/16] 0.0, 128
    %1580 = vxpose.xlu0.b32.cont [12/16] 0.0, 128
    %1581 = vxpose.xlu0.b32.cont [13/16] 0.0, 128
    %1582 = vxpose.xlu0.b32.cont [14/16] 0.0, 128
    %1583 = vxpose.xlu0.b32.cont [15/16] 0.0, 128
    %1584 = vxpose.xlu0.b32.end [16/16] 0.0, 128
    %v1585 = vpop.trf.xlu0
    %v1586 = vpop.trf.xlu0
    %v1587 = vpop.trf.xlu0
    %v1588 = vpop.trf.xlu0
    %v1589 = vpop.trf.xlu0
    %v1590 = vpop.trf.xlu0
    %v1591 = vpop.trf.xlu0
    %v1592 = vpop.trf.xlu0
    %v1593 = vpop.trf.xlu0
    %v1594 = vpop.trf.xlu0
    %v1595 = vpop.trf.xlu0
    %v1596 = vpop.trf.xlu0
    %v1597 = vpop.trf.xlu0
    %v1598 = vpop.trf.xlu0
    %v1599 = vpop.trf.xlu0
    %v1600 = vpop.trf.xlu0
    %v1601 = vperm.slane %v1585, 0
    %v1602 = vsel %vm341, %v1601, %v1568
    %v1603 = vsel %vm331, %v1602, %v378
    %1605 = vset.pattern.permute.xlu0 0
    %1606 = vperm.xlu0 %1605, %v1603
    %v1607 = vpop.permute.xlu0 %1606
    %v1609 = vrcp.pop %v1607
    %v1610 = vmul.f32 %v1607, %v1609
    %v1611 = vsub.f32 1.0, %v1610
    %v1612 = vmul.f32 %v1609, %v1611
    %v1613 = vadd.f32 %v1609, %v1612
    %vm1614 = vweird.f32 %v1607
    %vm1615 = vweird.f32 %v1609
    %vm1616 = vmor %vm1614, %vm1615
    %v1617 = vsel %vm1616, %v1609, %v1613
    %v1618 = vand.u32 2147483647, %v1607
    %vm1619 = vcmp.eq.f32.partialorder %v1618, 8.507059e+37
    %v1620 = vand.u32 %v1607, 2147483648
    %v1621 = vor.u32 1.1754944e-38, %v1620
    %v1622 = vsel %vm1619, %v1621, %v1617
    %v1623 = vmul.f32 %v1603, %v1622
    %v1624 = vsub.f32 %v1603, %v402
    %1626 = vset.pattern.permute.xlu0 0
    %1627 = vperm.xlu0 %1626, %v1624
    %v1628 = vpop.permute.xlu0 %1627
    %v1630 = vperm.slane %v1623, 0
    %v1631 = vmul.f32 %v1628, %v1630
    %v1632 = vsub.f32 %v1603, %v1631
    %1634 = vset.pattern.permute.xlu0 1
    %1635 = vperm.xlu0 %1634, %v1632
    %v1636 = vpop.permute.xlu0 %1635
    %v1638 = vrcp.pop %v1636
    %v1639 = vmul.f32 %v1636, %v1638
    %v1640 = vsub.f32 1.0, %v1639
    %v1641 = vmul.f32 %v1638, %v1640
    %v1642 = vadd.f32 %v1638, %v1641
    %vm1643 = vweird.f32 %v1636
    %vm1644 = vweird.f32 %v1638
    %vm1645 = vmor %vm1643, %vm1644
    %v1646 = vsel %vm1645, %v1638, %v1642
    %v1647 = vand.u32 2147483647, %v1636
    %vm1648 = vcmp.eq.f32.partialorder %v1647, 8.507059e+37
    %v1649 = vand.u32 %v1636, 2147483648
    %v1650 = vor.u32 1.1754944e-38, %v1649
    %v1651 = vsel %vm1648, %v1650, %v1646
    %v1652 = vmul.f32 %v1632, %v1651
    %v1653 = vsub.f32 %v1632, %v434
    %1655 = vset.pattern.permute.xlu0 1
    %1656 = vperm.xlu0 %1655, %v1653
    %v1657 = vpop.permute.xlu0 %1656
    %v1659 = vperm.slane %v1652, 1
    %v1660 = vmul.f32 %v1657, %v1659
    %v1661 = vsub.f32 %v1632, %v1660
    %1663 = vset.pattern.permute.xlu0 2
    %1664 = vperm.xlu0 %1663, %v1661
    %v1665 = vpop.permute.xlu0 %1664
    %v1667 = vrcp.pop %v1665
    %v1668 = vmul.f32 %v1665, %v1667
    %v1669 = vsub.f32 1.0, %v1668
    %v1670 = vmul.f32 %v1667, %v1669
    %v1671 = vadd.f32 %v1667, %v1670
    %vm1672 = vweird.f32 %v1665
    %vm1673 = vweird.f32 %v1667
    %vm1674 = vmor %vm1672, %vm1673
    %v1675 = vsel %vm1674, %v1667, %v1671
    %v1676 = vand.u32 2147483647, %v1665
    %vm1677 = vcmp.eq.f32.partialorder %v1676, 8.507059e+37
    %v1678 = vand.u32 %v1665, 2147483648
    %v1679 = vor.u32 1.1754944e-38, %v1678
    %v1680 = vsel %vm1677, %v1679, %v1675
    %v1681 = vmul.f32 %v1661, %v1680
    %v1682 = vsub.f32 %v1661, %v466
    %1684 = vset.pattern.permute.xlu0 2
    %1685 = vperm.xlu0 %1684, %v1682
    %v1686 = vpop.permute.xlu0 %1685
    %v1688 = vperm.slane %v1681, 2
    %v1689 = vmul.f32 %v1686, %v1688
    %v1690 = vsub.f32 %v1661, %v1689
    %1692 = vset.pattern.permute.xlu0 3
    %1693 = vperm.xlu0 %1692, %v1690
    %v1694 = vpop.permute.xlu0 %1693
    %v1696 = vrcp.pop %v1694
    %v1697 = vmul.f32 %v1694, %v1696
    %v1698 = vsub.f32 1.0, %v1697
    %v1699 = vmul.f32 %v1696, %v1698
    %v1700 = vadd.f32 %v1696, %v1699
    %vm1701 = vweird.f32 %v1694
    %vm1702 = vweird.f32 %v1696
    %vm1703 = vmor %vm1701, %vm1702
    %v1704 = vsel %vm1703, %v1696, %v1700
    %v1705 = vand.u32 2147483647, %v1694
    %vm1706 = vcmp.eq.f32.partialorder %v1705, 8.507059e+37
    %v1707 = vand.u32 %v1694, 2147483648
    %v1708 = vor.u32 1.1754944e-38, %v1707
    %v1709 = vsel %vm1706, %v1708, %v1704
    %v1710 = vmul.f32 %v1690, %v1709
    %v1711 = vsub.f32 %v1690, %v498
    %1713 = vset.pattern.permute.xlu0 3
    %1714 = vperm.xlu0 %1713, %v1711
    %v1715 = vpop.permute.xlu0 %1714
    %v1717 = vperm.slane %v1710, 3
    %v1718 = vmul.f32 %v1715, %v1717
    %v1719 = vsub.f32 %v1690, %v1718
    %1721 = vset.pattern.permute.xlu0 4
    %1722 = vperm.xlu0 %1721, %v1719
    %v1723 = vpop.permute.xlu0 %1722
    %v1725 = vrcp.pop %v1723
    %v1726 = vmul.f32 %v1723, %v1725
    %v1727 = vsub.f32 1.0, %v1726
    %v1728 = vmul.f32 %v1725, %v1727
    %v1729 = vadd.f32 %v1725, %v1728
    %vm1730 = vweird.f32 %v1723
    %vm1731 = vweird.f32 %v1725
    %vm1732 = vmor %vm1730, %vm1731
    %v1733 = vsel %vm1732, %v1725, %v1729
    %v1734 = vand.u32 2147483647, %v1723
    %vm1735 = vcmp.eq.f32.partialorder %v1734, 8.507059e+37
    %v1736 = vand.u32 %v1723, 2147483648
    %v1737 = vor.u32 1.1754944e-38, %v1736
    %v1738 = vsel %vm1735, %v1737, %v1733
    %v1739 = vmul.f32 %v1719, %v1738
    %v1740 = vsub.f32 %v1719, %v530
    %1742 = vset.pattern.permute.xlu0 4
    %1743 = vperm.xlu0 %1742, %v1740
    %v1744 = vpop.permute.xlu0 %1743
    %v1746 = vperm.slane %v1739, 4
    %v1747 = vmul.f32 %v1744, %v1746
    %v1748 = vsub.f32 %v1719, %v1747
    %1750 = vset.pattern.permute.xlu0 5
    %1751 = vperm.xlu0 %1750, %v1748
    %v1752 = vpop.permute.xlu0 %1751
    %v1754 = vrcp.pop %v1752
    %v1755 = vmul.f32 %v1752, %v1754
    %v1756 = vsub.f32 1.0, %v1755
    %v1757 = vmul.f32 %v1754, %v1756
    %v1758 = vadd.f32 %v1754, %v1757
    %vm1759 = vweird.f32 %v1752
    %vm1760 = vweird.f32 %v1754
    %vm1761 = vmor %vm1759, %vm1760
    %v1762 = vsel %vm1761, %v1754, %v1758
    %v1763 = vand.u32 2147483647, %v1752
    %vm1764 = vcmp.eq.f32.partialorder %v1763, 8.507059e+37
    %v1765 = vand.u32 %v1752, 2147483648
    %v1766 = vor.u32 1.1754944e-38, %v1765
    %v1767 = vsel %vm1764, %v1766, %v1762
    %v1768 = vmul.f32 %v1748, %v1767
    %v1769 = vsub.f32 %v1748, %v562
    %1771 = vset.pattern.permute.xlu0 5
    %1772 = vperm.xlu0 %1771, %v1769
    %v1773 = vpop.permute.xlu0 %1772
    %v1775 = vperm.slane %v1768, 5
    %v1776 = vmul.f32 %v1773, %v1775
    %v1777 = vsub.f32 %v1748, %v1776
    %1779 = vset.pattern.permute.xlu0 6
    %1780 = vperm.xlu0 %1779, %v1777
    %v1781 = vpop.permute.xlu0 %1780
    %v1783 = vrcp.pop %v1781
    %v1784 = vmul.f32 %v1781, %v1783
    %v1785 = vsub.f32 1.0, %v1784
    %v1786 = vmul.f32 %v1783, %v1785
    %v1787 = vadd.f32 %v1783, %v1786
    %vm1788 = vweird.f32 %v1781
    %vm1789 = vweird.f32 %v1783
    %vm1790 = vmor %vm1788, %vm1789
    %v1791 = vsel %vm1790, %v1783, %v1787
    %v1792 = vand.u32 2147483647, %v1781
    %vm1793 = vcmp.eq.f32.partialorder %v1792, 8.507059e+37
    %v1794 = vand.u32 %v1781, 2147483648
    %v1795 = vor.u32 1.1754944e-38, %v1794
    %v1796 = vsel %vm1793, %v1795, %v1791
    %v1797 = vmul.f32 %v1777, %v1796
    %v1798 = vsub.f32 %v1777, %v594
    %1800 = vset.pattern.permute.xlu0 6
    %1801 = vperm.xlu0 %1800, %v1798
    %v1802 = vpop.permute.xlu0 %1801
    %v1804 = vperm.slane %v1797, 6
    %v1805 = vmul.f32 %v1802, %v1804
    %v1806 = vsub.f32 %v1777, %v1805
    %1808 = vset.pattern.permute.xlu0 7
    %1809 = vperm.xlu0 %1808, %v1806
    %v1810 = vpop.permute.xlu0 %1809
    %v1812 = vrcp.pop %v1810
    %v1813 = vmul.f32 %v1810, %v1812
    %v1814 = vsub.f32 1.0, %v1813
    %v1815 = vmul.f32 %v1812, %v1814
    %v1816 = vadd.f32 %v1812, %v1815
    %vm1817 = vweird.f32 %v1810
    %vm1818 = vweird.f32 %v1812
    %vm1819 = vmor %vm1817, %vm1818
    %v1820 = vsel %vm1819, %v1812, %v1816
    %v1821 = vand.u32 2147483647, %v1810
    %vm1822 = vcmp.eq.f32.partialorder %v1821, 8.507059e+37
    %v1823 = vand.u32 %v1810, 2147483648
    %v1824 = vor.u32 1.1754944e-38, %v1823
    %v1825 = vsel %vm1822, %v1824, %v1820
    %v1826 = vmul.f32 %v1806, %v1825
    %v1827 = vsub.f32 %v1806, %v626
    %1829 = vset.pattern.permute.xlu0 7
    %1830 = vperm.xlu0 %1829, %v1827
    %v1831 = vpop.permute.xlu0 %1830
    %v1833 = vperm.slane %v1826, 7
    %v1834 = vmul.f32 %v1831, %v1833
    %v1835 = vsub.f32 %v1806, %v1834
    %v1836 = vmul.f32 %v1835, %v378
    %1838 = vrot.lane.b32.xlu0 %v1836, 120
    %v1839 = vpop.permute.xlu0 %1838
    %v1841 = vsel %vm331, %v1839, 0.0
    %1842 = vadd.xlane.f32.xlu0 %v1841
    %v1843 = vpop.xlane.xlu0 %1842
    %1844 = vxpose.xlu0.b32.start [1/16] %v1559, 128
    %1845 = vxpose.xlu0.b32.cont [2/16] 0.0, 128
    %1846 = vxpose.xlu0.b32.cont [3/16] 0.0, 128
    %1847 = vxpose.xlu0.b32.cont [4/16] 0.0, 128
    %1848 = vxpose.xlu0.b32.cont [5/16] 0.0, 128
    %1849 = vxpose.xlu0.b32.cont [6/16] 0.0, 128
    %1850 = vxpose.xlu0.b32.cont [7/16] 0.0, 128
    %1851 = vxpose.xlu0.b32.cont [8/16] 0.0, 128
    %1852 = vxpose.xlu0.b32.cont [9/16] 0.0, 128
    %1853 = vxpose.xlu0.b32.cont [10/16] 0.0, 128
    %1854 = vxpose.xlu0.b32.cont [11/16] 0.0, 128
    %1855 = vxpose.xlu0.b32.cont [12/16] 0.0, 128
    %1856 = vxpose.xlu0.b32.cont [13/16] 0.0, 128
    %1857 = vxpose.xlu0.b32.cont [14/16] 0.0, 128
    %1858 = vxpose.xlu0.b32.cont [15/16] 0.0, 128
    %1859 = vxpose.xlu0.b32.end [16/16] 0.0, 128
    %v1860 = vpop.trf.xlu0
    %v1861 = vpop.trf.xlu0
    %v1862 = vpop.trf.xlu0
    %v1863 = vpop.trf.xlu0
    %v1864 = vpop.trf.xlu0
    %v1865 = vpop.trf.xlu0
    %v1866 = vpop.trf.xlu0
    %v1867 = vpop.trf.xlu0
    %v1868 = vpop.trf.xlu0
    %v1869 = vpop.trf.xlu0
    %v1870 = vpop.trf.xlu0
    %v1871 = vpop.trf.xlu0
    %v1872 = vpop.trf.xlu0
    %v1873 = vpop.trf.xlu0
    %v1874 = vpop.trf.xlu0
    %v1875 = vpop.trf.xlu0
    %v1876 = vmul.f32 %v153, %v1843
    %1878 = vrot.lane.b32.xlu0 %v1835, 120
    %v1879 = vpop.permute.xlu0 %1878
    %v1881 = vmul.f32 %v156, %v1879
    %v1882 = vsub.f32 %v1876, %v1881
    %v1883 = vmul.f32 %v1860, %v1882
    %v1884 = vsel %vm331, %v1883, 0.0
    %1885 = vadd.xlane.f32.xlu0 %v1884
    %v1886 = vpop.xlane.xlu0 %1885
    %v1887 = vadd.f32 %v1886, 1.0
    %v1888 = vrcp.pop %v1887
    %v1889 = vmul.f32 %v1887, %v1888
    %v1890 = vsub.f32 1.0, %v1889
    %v1891 = vmul.f32 %v1888, %v1890
    %v1892 = vadd.f32 %v1888, %v1891
    %vm1893 = vweird.f32 %v1887
    %vm1894 = vweird.f32 %v1888
    %vm1895 = vmor %vm1893, %vm1894
    %v1896 = vsel %vm1895, %v1888, %v1892
    %v1897 = vand.u32 2147483647, %v1887
    %vm1898 = vcmp.eq.f32.partialorder %v1897, 8.507059e+37
    %v1899 = vand.u32 %v1887, 2147483648
    %v1900 = vor.u32 1.1754944e-38, %v1899
    %v1901 = vsel %vm1898, %v1900, %v1896
    %v1902 = vmul.f32 1.0, %v1901
    %1903 = vst.msk [vmem:[#allocation2] sm:$0xff] %vm167, %v878
    %v1905 = vsel %vm331, %v1883, 0
    %1907 = vmatpush.msra.mxu0 0.0
    %1908 = vmatpush.msra.mxu0 0.0
    %1909 = vmatpush.msra.mxu0 0.0
    %1910 = vmatpush.msra.mxu0 0.0
    %1911 = vmatpush.msra.mxu0 0.0
    %1912 = vmatpush.msra.mxu0 0.0
    %1913 = vmatpush.msra.mxu0 0.0
    %1914 = vmatpush.msra.mxu0 0.0
    %1915 = vmatpush.msra.mxu0 0.0
    %1916 = vmatpush.msra.mxu0 0.0
    %1917 = vmatpush.msra.mxu0 0.0
    %1918 = vmatpush.msra.mxu0 0.0
    %1919 = vmatpush.msra.mxu0 0.0
    %1920 = vmatpush.msra.mxu0 0.0
    %1921 = vmatpush.msra.mxu0 0.0
    %1922 = vmatpush.msra.mxu0 %v878
    %1923 = vmatmul.f32.gmra.mxu0 %v1905
    %v1924 = vpop.f32.mrf.mxu0
    %v1925 = vadd.f32 0.0, %v1924
    %1926 = vdwg.mxu0
    %1927 = vst.msk [vmem:[#allocation3] sm:$0xff] %vm167, %v1925
    %v1928 = vld [vmem:[#allocation3] sm:$0xff]
    %v1929 = vld [vmem:[#allocation2] sm:$0xff]
    %v1930 = vadd.f32 %v1928, %v1929
    %v1931 = vld [vmem:[%s43] sm:$0xff]
    %v1932 = vld [vmem:[%s43 + $0x8] sm:$0xff]
    %v1933 = vld [vmem:[%s43 + $0x10] sm:$0xff]
    %v1934 = vld [vmem:[%s43 + $0x18] sm:$0xff]
    %v1935 = vld [vmem:[%s51] sm:$0x1]
    %v1936 = vmul.f32 %v1935, 2.0
    %v1938 = vperm.slane %v1936, 0
    %v1941 = vsel %vm167, %v1930, 0
    %1943 = vmatpush.msra.mxu0 0.0
    %1944 = vmatpush.msra.mxu0 0.0
    %1945 = vmatpush.msra.mxu0 0.0
    %1946 = vmatpush.msra.mxu0 0.0
    %1947 = vmatpush.msra.mxu0 0.0
    %1948 = vmatpush.msra.mxu0 0.0
    %1949 = vmatpush.msra.mxu0 0.0
    %1950 = vmatpush.msra.mxu0 0.0
    %1951 = vmatpush.msra.mxu0 0.0
    %1952 = vmatpush.msra.mxu0 0.0
    %1953 = vmatpush.msra.mxu0 0.0
    %1954 = vmatpush.msra.mxu0 0.0
    %1955 = vmatpush.msra.mxu0 %v1934
    %1956 = vmatpush.msra.mxu0 %v1933
    %1957 = vmatpush.msra.mxu0 %v1932
    %1958 = vmatpush.msra.mxu0 %v1931
    %1959 = vmatmul.f32.gmra.mxu0 %v1941
    %v1960 = vpop.f32.mrf.mxu0
    %v1961 = vadd.f32 %v1938, %v1960
    %1962 = vdwg.mxu0
    %v1963 = vmul.f32 %v1961, %v1902
    %v1964 = vmax.f32 %v1963, 0.0
    %1966 = vrot.lane.b32.xlu0 %v1964, 32
    %v1967 = vpop.permute.xlu0 %1966
    %vm1969 = vcmask 326912
    %1970 = vst.msk [vmem:[#allocation2] sm:$0xff] %vm1969, %v1967
    %1971 = vmatpush.msra.mxu0 0.0
    %1972 = vmatpush.msra.mxu0 0.0
    %1973 = vmatpush.msra.mxu0 0.0
    %1974 = vmatpush.msra.mxu0 0.0
    %1975 = vmatpush.msra.mxu0 0.0
    %1976 = vmatpush.msra.mxu0 0.0
    %1977 = vmatpush.msra.mxu0 0.0
    %1978 = vmatpush.msra.mxu0 0.0
    %1979 = vmatpush.msra.mxu0 0.0
    %1980 = vmatpush.msra.mxu0 0.0
    %1981 = vmatpush.msra.mxu0 0.0
    %1982 = vmatpush.msra.mxu0 0.0
    %1983 = vmatpush.msra.mxu0 0.0
    %1984 = vmatpush.msra.mxu0 0.0
    %1985 = vmatpush.msra.mxu0 0.0
    %1986 = vmatpush.msra.mxu0 %v1964
    %1987 = vmatmul.f32.gmra.mxu0 %v1905
    %v1988 = vpop.f32.mrf.mxu0
    %v1989 = vadd.f32 0.0, %v1988
    %1990 = vdwg.mxu0
    %1992 = vrot.lane.b32.xlu0 %v1989, 32
    %v1993 = vpop.permute.xlu0 %1992
    %1995 = vst.msk [vmem:[#allocation3] sm:$0xff] %vm1969, %v1993
    %v1996 = vld [vmem:[#allocation3] sm:$0xff]
    %v1997 = vld [vmem:[#allocation2] sm:$0xff]
    %v1998 = vadd.f32 %v1996, %v1997
    %v1999 = vld [vmem:[%s45] sm:$0xff]
    %v2000 = vld [vmem:[%s45 + $0x8] sm:$0xff]
    %v2001 = vld [vmem:[%s45 + $0x10] sm:$0xff]
    %v2002 = vld [vmem:[%s45 + $0x18] sm:$0xff]
    %v2003 = vld [vmem:[%s45 + $0x20] sm:$0xff]
    %v2004 = vld [vmem:[%s53] sm:$0x1]
    %v2005 = vmul.f32 %v2004, 2.0
    %v2007 = vperm.slane %v2005, 0
    %vm2009 = vcmask 326656
    %v2011 = vsel %vm2009, %v1998, 0
    %2013 = vmatpush.msra.mxu0 0.0
    %2014 = vmatpush.msra.mxu0 0.0
    %2015 = vmatpush.msra.mxu0 0.0
    %2016 = vmatpush.msra.mxu0 0.0
    %2017 = vmatpush.msra.mxu0 0.0
    %2018 = vmatpush.msra.mxu0 0.0
    %2019 = vmatpush.msra.mxu0 0.0
    %2020 = vmatpush.msra.mxu0 0.0
    %2021 = vmatpush.msra.mxu0 0.0
    %2022 = vmatpush.msra.mxu0 0.0
    %2023 = vmatpush.msra.mxu0 0.0
    %2024 = vmatpush.msra.mxu0 %v2003
    %2025 = vmatpush.msra.mxu0 %v2002
    %2026 = vmatpush.msra.mxu0 %v2001
    %2027 = vmatpush.msra.mxu0 %v2000
    %2028 = vmatpush.msra.mxu0 %v1999
    %2029 = vmatmul.f32.gmra.mxu0 %v2011
    %v2030 = vpop.f32.mrf.mxu0
    %v2031 = vadd.f32 %v2007, %v2030
    %2032 = vdwg.mxu0
    %v2033 = vmul.f32 %v2031, %v1902
    %v2034 = vmax.f32 %v2033, 0.0
    %2036 = vrot.lane.b32.xlu0 %v2034, 40
    %v2037 = vpop.permute.xlu0 %2036
    %vm2039 = vcmask 392512
    %2040 = vst.msk [vmem:[#allocation2] sm:$0xff] %vm2039, %v2037
    %2041 = vmatpush.msra.mxu0 0.0
    %2042 = vmatpush.msra.mxu0 0.0
    %2043 = vmatpush.msra.mxu0 0.0
    %2044 = vmatpush.msra.mxu0 0.0
    %2045 = vmatpush.msra.mxu0 0.0
    %2046 = vmatpush.msra.mxu0 0.0
    %2047 = vmatpush.msra.mxu0 0.0
    %2048 = vmatpush.msra.mxu0 0.0
    %2049 = vmatpush.msra.mxu0 0.0
    %2050 = vmatpush.msra.mxu0 0.0
    %2051 = vmatpush.msra.mxu0 0.0
    %2052 = vmatpush.msra.mxu0 0.0
    %2053 = vmatpush.msra.mxu0 0.0
    %2054 = vmatpush.msra.mxu0 0.0
    %2055 = vmatpush.msra.mxu0 0.0
    %2056 = vmatpush.msra.mxu0 %v2034
    %2057 = vmatmul.f32.gmra.mxu0 %v1905
    %v2058 = vpop.f32.mrf.mxu0
    %v2059 = vadd.f32 0.0, %v2058
    %2060 = vdwg.mxu0
    %2062 = vrot.lane.b32.xlu0 %v2059, 40
    %v2063 = vpop.permute.xlu0 %2062
    %2065 = vst.msk [vmem:[#allocation3] sm:$0xff] %vm2039, %v2063
    %v2066 = vld [vmem:[#allocation3] sm:$0xff]
    %v2067 = vld [vmem:[#allocation2] sm:$0xff]
    %v2068 = vadd.f32 %v2066, %v2067
    %v2069 = vld [vmem:[%s47] sm:$0xff]
    %v2070 = vld [vmem:[%s47 + $0x8] sm:$0xff]
    %v2071 = vld [vmem:[%s47 + $0x10] sm:$0xff]
    %v2072 = vld [vmem:[%s47 + $0x18] sm:$0xff]
    %v2073 = vld [vmem:[%s47 + $0x20] sm:$0xff]
    %v2074 = vld [vmem:[%s47 + $0x28] sm:$0xff]
    %v2075 = vld [vmem:[%s55] sm:$0x1]
    %v2076 = vmul.f32 %v2075, 2.0
    %v2078 = vperm.slane %v2076, 0
    %v2081 = vsel %vm810, %v2068, 0
    %2083 = vmatpush.msra.mxu0 0.0
    %2084 = vmatpush.msra.mxu0 0.0
    %2085 = vmatpush.msra.mxu0 0.0
    %2086 = vmatpush.msra.mxu0 0.0
    %2087 = vmatpush.msra.mxu0 0.0
    %2088 = vmatpush.msra.mxu0 0.0
    %2089 = vmatpush.msra.mxu0 0.0
    %2090 = vmatpush.msra.mxu0 0.0
    %2091 = vmatpush.msra.mxu0 0.0
    %2092 = vmatpush.msra.mxu0 0.0
    %2093 = vmatpush.msra.mxu0 %v2074
    %2094 = vmatpush.msra.mxu0 %v2073
    %2095 = vmatpush.msra.mxu0 %v2072
    %2096 = vmatpush.msra.mxu0 %v2071
    %2097 = vmatpush.msra.mxu0 %v2070
    %2098 = vmatpush.msra.mxu0 %v2069
    %2099 = vmatmul.f32.gmra.mxu0 %v2081
    %v2100 = vpop.f32.mrf.mxu0
    %v2101 = vadd.f32 %v2078, %v2100
    %2102 = vdwg.mxu0
    %v2103 = vmul.f32 %v2101, %v1902
    %v2104 = vmax.f32 %v2103, 0.0
    %2106 = vrot.lane.b32.xlu0 %v2104, 48
    %v2107 = vpop.permute.xlu0 %2106
    %vm2109 = vcmask 458112
    %2110 = vst.msk [vmem:[#allocation2] sm:$0xff] %vm2109, %v2107
    %2111 = vmatpush.msra.mxu0 0.0
    %2112 = vmatpush.msra.mxu0 0.0
    %2113 = vmatpush.msra.mxu0 0.0
    %2114 = vmatpush.msra.mxu0 0.0
    %2115 = vmatpush.msra.mxu0 0.0
    %2116 = vmatpush.msra.mxu0 0.0
    %2117 = vmatpush.msra.mxu0 0.0
    %2118 = vmatpush.msra.mxu0 0.0
    %2119 = vmatpush.msra.mxu0 0.0
    %2120 = vmatpush.msra.mxu0 0.0
    %2121 = vmatpush.msra.mxu0 0.0
    %2122 = vmatpush.msra.mxu0 0.0
    %2123 = vmatpush.msra.mxu0 0.0
    %2124 = vmatpush.msra.mxu0 0.0
    %2125 = vmatpush.msra.mxu0 0.0
    %2126 = vmatpush.msra.mxu0 %v2104
    %2127 = vmatmul.f32.gmra.mxu0 %v1905
    %v2128 = vpop.f32.mrf.mxu0
    %v2129 = vadd.f32 0.0, %v2128
    %2130 = vdwg.mxu0
    %2132 = vrot.lane.b32.xlu0 %v2129, 48
    %v2133 = vpop.permute.xlu0 %2132
    %2135 = vst.msk [vmem:[#allocation3] sm:$0xff] %vm2109, %v2133
    %v2136 = vld [vmem:[#allocation3] sm:$0xff]
    %v2137 = vld [vmem:[#allocation2] sm:$0xff]
    %v2138 = vadd.f32 %v2136, %v2137
    %v2139 = vld [vmem:[%s49] sm:$0xff]
    %v2140 = vld [vmem:[%s49 + $0x8] sm:$0xff]
    %v2141 = vld [vmem:[%s49 + $0x10] sm:$0xff]
    %v2142 = vld [vmem:[%s49 + $0x18] sm:$0xff]
    %v2143 = vld [vmem:[%s49 + $0x20] sm:$0xff]
    %v2144 = vld [vmem:[%s49 + $0x28] sm:$0xff]
    %v2145 = vld [vmem:[%s49 + $0x30] sm:$0xff]
    %v2146 = vld [vmem:[%s57] sm:$0x1]
    %v2147 = vmul.f32 %v2146, 2.0
    %v2149 = vperm.slane %v2147, 0
    %vm2151 = vcmask 457728
    %v2153 = vsel %vm2151, %v2138, 0
    %2155 = vmatpush.msra.mxu0 0.0
    %2156 = vmatpush.msra.mxu0 0.0
    %2157 = vmatpush.msra.mxu0 0.0
    %2158 = vmatpush.msra.mxu0 0.0
    %2159 = vmatpush.msra.mxu0 0.0
    %2160 = vmatpush.msra.mxu0 0.0
    %2161 = vmatpush.msra.mxu0 0.0
    %2162 = vmatpush.msra.mxu0 0.0
    %2163 = vmatpush.msra.mxu0 0.0
    %2164 = vmatpush.msra.mxu0 %v2145
    %2165 = vmatpush.msra.mxu0 %v2144
    %2166 = vmatpush.msra.mxu0 %v2143
    %2167 = vmatpush.msra.mxu0 %v2142
    %2168 = vmatpush.msra.mxu0 %v2141
    %2169 = vmatpush.msra.mxu0 %v2140
    %2170 = vmatpush.msra.mxu0 %v2139
    %2171 = vmatmul.f32.gmra.mxu0 %v2153
    %v2172 = vpop.f32.mrf.mxu0
    %v2173 = vadd.f32 %v2149, %v2172
    %2174 = vdwg.mxu0
    %v2175 = vmul.f32 %v2173, %v1902
    %v2176 = vmax.f32 %v2175, 0.0
    %2178 = vrot.lane.b32.xlu0 %v2176, 56
    %v2179 = vpop.permute.xlu0 %2178
    %vm2181 = vcmask 523712
    %2182 = vst.msk [vmem:[#allocation2] sm:$0xff] %vm2181, %v2179
    %v2183 = vld [vmem:[#allocation2] sm:$0xff]
    %2184 = vrot.lane.b32.xlu0 %v878, 32
    %v2185 = vpop.permute.xlu0 %2184
    %v2187 = vadd.f32 %v2183, %v2185
    %v2188 = vld [vmem:[%s59] sm:$0xff]
    %v2189 = vld [vmem:[%s59 + $0x8] sm:$0xff]
    %v2190 = vld [vmem:[%s59 + $0x10] sm:$0xff]
    %v2191 = vld [vmem:[%s59 + $0x18] sm:$0xff]
    %v2192 = vld [vmem:[%s61] sm:$0x1]
    %v2194 = vperm.slane %v2192, 0
    %2197 = vrot.lane.b32.xlu0 %v2187, 96
    %v2198 = vpop.permute.xlu0 %2197
    %v2199 = vsel %vm167, %v2198, 0
    %2201 = vmatpush.msra.mxu0 0.0
    %2202 = vmatpush.msra.mxu0 0.0
    %2203 = vmatpush.msra.mxu0 0.0
    %2204 = vmatpush.msra.mxu0 0.0
    %2205 = vmatpush.msra.mxu0 0.0
    %2206 = vmatpush.msra.mxu0 0.0
    %2207 = vmatpush.msra.mxu0 0.0
    %2208 = vmatpush.msra.mxu0 0.0
    %2209 = vmatpush.msra.mxu0 0.0
    %2210 = vmatpush.msra.mxu0 0.0
    %2211 = vmatpush.msra.mxu0 0.0
    %2212 = vmatpush.msra.mxu0 0.0
    %2213 = vmatpush.msra.mxu0 %v2191
    %2214 = vmatpush.msra.mxu0 %v2190
    %2215 = vmatpush.msra.mxu0 %v2189
    %2216 = vmatpush.msra.mxu0 %v2188
    %2217 = vmatmul.f32.gmra.mxu0 %v2199
    %v2218 = vpop.f32.mrf.mxu0
    %v2219 = vadd.f32 %v2194, %v2218
    %2220 = vdwg.mxu0
    %v2222 = vsel %vm167, %v1464, 0
    %v2225 = vsel %vm167, %v1494, 0
    %2227 = vmatpush.xpose.msra.mxu0 0.0
    %2228 = vmatpush.xpose.msra.mxu0 0.0
    %2229 = vmatpush.xpose.msra.mxu0 0.0
    %2230 = vmatpush.xpose.msra.mxu0 0.0
    %2231 = vmatpush.xpose.msra.mxu0 0.0
    %2232 = vmatpush.xpose.msra.mxu0 0.0
    %2233 = vmatpush.xpose.msra.mxu0 0.0
    %2234 = vmatpush.xpose.msra.mxu0 0.0
    %2235 = vmatpush.xpose.msra.mxu0 0.0
    %2236 = vmatpush.xpose.msra.mxu0 0.0
    %2237 = vmatpush.xpose.msra.mxu0 0.0
    %2238 = vmatpush.xpose.msra.mxu0 0.0
    %2239 = vmatpush.xpose.msra.mxu0 0.0
    %2240 = vmatpush.xpose.msra.mxu0 0.0
    %2241 = vmatpush.xpose.msra.mxu0 0.0
    %2242 = vmatpush.xpose.msra.mxu0 %v2225
    %2243 = vmatmul.f32.gmra.mxu0 %v2222
    %v2244 = vpop.f32.mrf.mxu0
    %v2245 = vadd.f32 0.0, %v2244
    %2246 = vdwg.mxu0
    %v2247 = vmul.f32 %v2245, 1.442695
    %v2248 = vpow.pop %v2247
    %v2249 = vmul.f32 %v2248, %v150
    %v2250 = vsel %vm331, %v2249, 0.0
    %v2251 = vrot.slane %v2250, 4
    %v2252 = vadd.f32 %v2250, %v2251
    %v2253 = vrot.slane %v2252, 2
    %v2254 = vadd.f32 %v2252, %v2253
    %v2255 = vrot.slane %v2254, 1
    %v2256 = vadd.f32 %v2254, %v2255
    %v2257 = vmul.f32 %v149, %v2256
    %v2258 = vsub.f32 %v2257, %v2249
    %2259 = vxpose.xlu0.b32.start [1/16] %v1530, 128
    %2260 = vxpose.xlu0.b32.cont [2/16] 0.0, 128
    %2261 = vxpose.xlu0.b32.cont [3/16] 0.0, 128
    %2262 = vxpose.xlu0.b32.cont [4/16] 0.0, 128
    %2263 = vxpose.xlu0.b32.cont [5/16] 0.0, 128
    %2264 = vxpose.xlu0.b32.cont [6/16] 0.0, 128
    %2265 = vxpose.xlu0.b32.cont [7/16] 0.0, 128
    %2266 = vxpose.xlu0.b32.cont [8/16] 0.0, 128
    %2267 = vxpose.xlu0.b32.cont [9/16] 0.0, 128
    %2268 = vxpose.xlu0.b32.cont [10/16] 0.0, 128
    %2269 = vxpose.xlu0.b32.cont [11/16] 0.0, 128
    %2270 = vxpose.xlu0.b32.cont [12/16] 0.0, 128
    %2271 = vxpose.xlu0.b32.cont [13/16] 0.0, 128
    %2272 = vxpose.xlu0.b32.cont [14/16] 0.0, 128
    %2273 = vxpose.xlu0.b32.cont [15/16] 0.0, 128
    %2274 = vxpose.xlu0.b32.end [16/16] 0.0, 128
    %v2275 = vpop.trf.xlu0
    %v2276 = vpop.trf.xlu0
    %v2277 = vpop.trf.xlu0
    %v2278 = vpop.trf.xlu0
    %v2279 = vpop.trf.xlu0
    %v2280 = vpop.trf.xlu0
    %v2281 = vpop.trf.xlu0
    %v2282 = vpop.trf.xlu0
    %v2283 = vpop.trf.xlu0
    %v2284 = vpop.trf.xlu0
    %v2285 = vpop.trf.xlu0
    %v2286 = vpop.trf.xlu0
    %v2287 = vpop.trf.xlu0
    %v2288 = vpop.trf.xlu0
    %v2289 = vpop.trf.xlu0
    %v2290 = vpop.trf.xlu0
    %v2291 = vperm.slane %v2275, 0
    %v2292 = vsel %vm341, %v2291, %v2258
    %v2293 = vsel %vm331, %v2292, %v378
    %2295 = vset.pattern.permute.xlu0 0
    %2296 = vperm.xlu0 %2295, %v2293
    %v2297 = vpop.permute.xlu0 %2296
    %v2299 = vrcp.pop %v2297
    %v2300 = vmul.f32 %v2297, %v2299
    %v2301 = vsub.f32 1.0, %v2300
    %v2302 = vmul.f32 %v2299, %v2301
    %v2303 = vadd.f32 %v2299, %v2302
    %vm2304 = vweird.f32 %v2297
    %vm2305 = vweird.f32 %v2299
    %vm2306 = vmor %vm2304, %vm2305
    %v2307 = vsel %vm2306, %v2299, %v2303
    %v2308 = vand.u32 2147483647, %v2297
    %vm2309 = vcmp.eq.f32.partialorder %v2308, 8.507059e+37
    %v2310 = vand.u32 %v2297, 2147483648
    %v2311 = vor.u32 1.1754944e-38, %v2310
    %v2312 = vsel %vm2309, %v2311, %v2307
    %v2313 = vmul.f32 %v2293, %v2312
    %v2314 = vsub.f32 %v2293, %v402
    %2316 = vset.pattern.permute.xlu0 0
    %2317 = vperm.xlu0 %2316, %v2314
    %v2318 = vpop.permute.xlu0 %2317
    %v2320 = vperm.slane %v2313, 0
    %v2321 = vmul.f32 %v2318, %v2320
    %v2322 = vsub.f32 %v2293, %v2321
    %2324 = vset.pattern.permute.xlu0 1
    %2325 = vperm.xlu0 %2324, %v2322
    %v2326 = vpop.permute.xlu0 %2325
    %v2328 = vrcp.pop %v2326
    %v2329 = vmul.f32 %v2326, %v2328
    %v2330 = vsub.f32 1.0, %v2329
    %v2331 = vmul.f32 %v2328, %v2330
    %v2332 = vadd.f32 %v2328, %v2331
    %vm2333 = vweird.f32 %v2326
    %vm2334 = vweird.f32 %v2328
    %vm2335 = vmor %vm2333, %vm2334
    %v2336 = vsel %vm2335, %v2328, %v2332
    %v2337 = vand.u32 2147483647, %v2326
    %vm2338 = vcmp.eq.f32.partialorder %v2337, 8.507059e+37
    %v2339 = vand.u32 %v2326, 2147483648
    %v2340 = vor.u32 1.1754944e-38, %v2339
    %v2341 = vsel %vm2338, %v2340, %v2336
    %v2342 = vmul.f32 %v2322, %v2341
    %v2343 = vsub.f32 %v2322, %v434
    %2345 = vset.pattern.permute.xlu0 1
    %2346 = vperm.xlu0 %2345, %v2343
    %v2347 = vpop.permute.xlu0 %2346
    %v2349 = vperm.slane %v2342, 1
    %v2350 = vmul.f32 %v2347, %v2349
    %v2351 = vsub.f32 %v2322, %v2350
    %2353 = vset.pattern.permute.xlu0 2
    %2354 = vperm.xlu0 %2353, %v2351
    %v2355 = vpop.permute.xlu0 %2354
    %v2357 = vrcp.pop %v2355
    %v2358 = vmul.f32 %v2355, %v2357
    %v2359 = vsub.f32 1.0, %v2358
    %v2360 = vmul.f32 %v2357, %v2359
    %v2361 = vadd.f32 %v2357, %v2360
    %vm2362 = vweird.f32 %v2355
    %vm2363 = vweird.f32 %v2357
    %vm2364 = vmor %vm2362, %vm2363
    %v2365 = vsel %vm2364, %v2357, %v2361
    %v2366 = vand.u32 2147483647, %v2355
    %vm2367 = vcmp.eq.f32.partialorder %v2366, 8.507059e+37
    %v2368 = vand.u32 %v2355, 2147483648
    %v2369 = vor.u32 1.1754944e-38, %v2368
    %v2370 = vsel %vm2367, %v2369, %v2365
    %v2371 = vmul.f32 %v2351, %v2370
    %v2372 = vsub.f32 %v2351, %v466
    %2374 = vset.pattern.permute.xlu0 2
    %2375 = vperm.xlu0 %2374, %v2372
    %v2376 = vpop.permute.xlu0 %2375
    %v2378 = vperm.slane %v2371, 2
    %v2379 = vmul.f32 %v2376, %v2378
    %v2380 = vsub.f32 %v2351, %v2379
    %2382 = vset.pattern.permute.xlu0 3
    %2383 = vperm.xlu0 %2382, %v2380
    %v2384 = vpop.permute.xlu0 %2383
    %v2386 = vrcp.pop %v2384
    %v2387 = vmul.f32 %v2384, %v2386
    %v2388 = vsub.f32 1.0, %v2387
    %v2389 = vmul.f32 %v2386, %v2388
    %v2390 = vadd.f32 %v2386, %v2389
    %vm2391 = vweird.f32 %v2384
    %vm2392 = vweird.f32 %v2386
    %vm2393 = vmor %vm2391, %vm2392
    %v2394 = vsel %vm2393, %v2386, %v2390
    %v2395 = vand.u32 2147483647, %v2384
    %vm2396 = vcmp.eq.f32.partialorder %v2395, 8.507059e+37
    %v2397 = vand.u32 %v2384, 2147483648
    %v2398 = vor.u32 1.1754944e-38, %v2397
    %v2399 = vsel %vm2396, %v2398, %v2394
    %v2400 = vmul.f32 %v2380, %v2399
    %v2401 = vsub.f32 %v2380, %v498
    %2403 = vset.pattern.permute.xlu0 3
    %2404 = vperm.xlu0 %2403, %v2401
    %v2405 = vpop.permute.xlu0 %2404
    %v2407 = vperm.slane %v2400, 3
    %v2408 = vmul.f32 %v2405, %v2407
    %v2409 = vsub.f32 %v2380, %v2408
    %2411 = vset.pattern.permute.xlu0 4
    %2412 = vperm.xlu0 %2411, %v2409
    %v2413 = vpop.permute.xlu0 %2412
    %v2415 = vrcp.pop %v2413
    %v2416 = vmul.f32 %v2413, %v2415
    %v2417 = vsub.f32 1.0, %v2416
    %v2418 = vmul.f32 %v2415, %v2417
    %v2419 = vadd.f32 %v2415, %v2418
    %vm2420 = vweird.f32 %v2413
    %vm2421 = vweird.f32 %v2415
    %vm2422 = vmor %vm2420, %vm2421
    %v2423 = vsel %vm2422, %v2415, %v2419
    %v2424 = vand.u32 2147483647, %v2413
    %vm2425 = vcmp.eq.f32.partialorder %v2424, 8.507059e+37
    %v2426 = vand.u32 %v2413, 2147483648
    %v2427 = vor.u32 1.1754944e-38, %v2426
    %v2428 = vsel %vm2425, %v2427, %v2423
    %v2429 = vmul.f32 %v2409, %v2428
    %v2430 = vsub.f32 %v2409, %v530
    %2432 = vset.pattern.permute.xlu0 4
    %2433 = vperm.xlu0 %2432, %v2430
    %v2434 = vpop.permute.xlu0 %2433
    %v2436 = vperm.slane %v2429, 4
    %v2437 = vmul.f32 %v2434, %v2436
    %v2438 = vsub.f32 %v2409, %v2437
    %2440 = vset.pattern.permute.xlu0 5
    %2441 = vperm.xlu0 %2440, %v2438
    %v2442 = vpop.permute.xlu0 %2441
    %v2444 = vrcp.pop %v2442
    %v2445 = vmul.f32 %v2442, %v2444
    %v2446 = vsub.f32 1.0, %v2445
    %v2447 = vmul.f32 %v2444, %v2446
    %v2448 = vadd.f32 %v2444, %v2447
    %vm2449 = vweird.f32 %v2442
    %vm2450 = vweird.f32 %v2444
    %vm2451 = vmor %vm2449, %vm2450
    %v2452 = vsel %vm2451, %v2444, %v2448
    %v2453 = vand.u32 2147483647, %v2442
    %vm2454 = vcmp.eq.f32.partialorder %v2453, 8.507059e+37
    %v2455 = vand.u32 %v2442, 2147483648
    %v2456 = vor.u32 1.1754944e-38, %v2455
    %v2457 = vsel %vm2454, %v2456, %v2452
    %v2458 = vmul.f32 %v2438, %v2457
    %v2459 = vsub.f32 %v2438, %v562
    %2461 = vset.pattern.permute.xlu0 5
    %2462 = vperm.xlu0 %2461, %v2459
    %v2463 = vpop.permute.xlu0 %2462
    %v2465 = vperm.slane %v2458, 5
    %v2466 = vmul.f32 %v2463, %v2465
    %v2467 = vsub.f32 %v2438, %v2466
    %2469 = vset.pattern.permute.xlu0 6
    %2470 = vperm.xlu0 %2469, %v2467
    %v2471 = vpop.permute.xlu0 %2470
    %v2473 = vrcp.pop %v2471
    %v2474 = vmul.f32 %v2471, %v2473
    %v2475 = vsub.f32 1.0, %v2474
    %v2476 = vmul.f32 %v2473, %v2475
    %v2477 = vadd.f32 %v2473, %v2476
    %vm2478 = vweird.f32 %v2471
    %vm2479 = vweird.f32 %v2473
    %vm2480 = vmor %vm2478, %vm2479
    %v2481 = vsel %vm2480, %v2473, %v2477
    %v2482 = vand.u32 2147483647, %v2471
    %vm2483 = vcmp.eq.f32.partialorder %v2482, 8.507059e+37
    %v2484 = vand.u32 %v2471, 2147483648
    %v2485 = vor.u32 1.1754944e-38, %v2484
    %v2486 = vsel %vm2483, %v2485, %v2481
    %v2487 = vmul.f32 %v2467, %v2486
    %v2488 = vsub.f32 %v2467, %v594
    %2490 = vset.pattern.permute.xlu0 6
    %2491 = vperm.xlu0 %2490, %v2488
    %v2492 = vpop.permute.xlu0 %2491
    %v2494 = vperm.slane %v2487, 6
    %v2495 = vmul.f32 %v2492, %v2494
    %v2496 = vsub.f32 %v2467, %v2495
    %2498 = vset.pattern.permute.xlu0 7
    %2499 = vperm.xlu0 %2498, %v2496
    %v2500 = vpop.permute.xlu0 %2499
    %v2502 = vrcp.pop %v2500
    %v2503 = vmul.f32 %v2500, %v2502
    %v2504 = vsub.f32 1.0, %v2503
    %v2505 = vmul.f32 %v2502, %v2504
    %v2506 = vadd.f32 %v2502, %v2505
    %vm2507 = vweird.f32 %v2500
    %vm2508 = vweird.f32 %v2502
    %vm2509 = vmor %vm2507, %vm2508
    %v2510 = vsel %vm2509, %v2502, %v2506
    %v2511 = vand.u32 2147483647, %v2500
    %vm2512 = vcmp.eq.f32.partialorder %v2511, 8.507059e+37
    %v2513 = vand.u32 %v2500, 2147483648
    %v2514 = vor.u32 1.1754944e-38, %v2513
    %v2515 = vsel %vm2512, %v2514, %v2510
    %v2516 = vmul.f32 %v2496, %v2515
    %v2517 = vsub.f32 %v2496, %v626
    %2519 = vset.pattern.permute.xlu0 7
    %2520 = vperm.xlu0 %2519, %v2517
    %v2521 = vpop.permute.xlu0 %2520
    %v2523 = vperm.slane %v2516, 7
    %v2524 = vmul.f32 %v2521, %v2523
    %v2525 = vsub.f32 %v2496, %v2524
    %v2526 = vmul.f32 %v2525, %v378
    %2528 = vrot.lane.b32.xlu0 %v2526, 120
    %v2529 = vpop.permute.xlu0 %2528
    %v2531 = vsel %vm331, %v2529, 0.0
    %2532 = vadd.xlane.f32.xlu0 %v2531
    %v2533 = vpop.xlane.xlu0 %2532
    %2534 = vxpose.xlu0.b32.start [1/16] %v2249, 128
    %2535 = vxpose.xlu0.b32.cont [2/16] 0.0, 128
    %2536 = vxpose.xlu0.b32.cont [3/16] 0.0, 128
    %2537 = vxpose.xlu0.b32.cont [4/16] 0.0, 128
    %2538 = vxpose.xlu0.b32.cont [5/16] 0.0, 128
    %2539 = vxpose.xlu0.b32.cont [6/16] 0.0, 128
    %2540 = vxpose.xlu0.b32.cont [7/16] 0.0, 128
    %2541 = vxpose.xlu0.b32.cont [8/16] 0.0, 128
    %2542 = vxpose.xlu0.b32.cont [9/16] 0.0, 128
    %2543 = vxpose.xlu0.b32.cont [10/16] 0.0, 128
    %2544 = vxpose.xlu0.b32.cont [11/16] 0.0, 128
    %2545 = vxpose.xlu0.b32.cont [12/16] 0.0, 128
    %2546 = vxpose.xlu0.b32.cont [13/16] 0.0, 128
    %2547 = vxpose.xlu0.b32.cont [14/16] 0.0, 128
    %2548 = vxpose.xlu0.b32.cont [15/16] 0.0, 128
    %2549 = vxpose.xlu0.b32.end [16/16] 0.0, 128
    %v2550 = vpop.trf.xlu0
    %v2551 = vpop.trf.xlu0
    %v2552 = vpop.trf.xlu0
    %v2553 = vpop.trf.xlu0
    %v2554 = vpop.trf.xlu0
    %v2555 = vpop.trf.xlu0
    %v2556 = vpop.trf.xlu0
    %v2557 = vpop.trf.xlu0
    %v2558 = vpop.trf.xlu0
    %v2559 = vpop.trf.xlu0
    %v2560 = vpop.trf.xlu0
    %v2561 = vpop.trf.xlu0
    %v2562 = vpop.trf.xlu0
    %v2563 = vpop.trf.xlu0
    %v2564 = vpop.trf.xlu0
    %v2565 = vpop.trf.xlu0
    %v2566 = vmul.f32 %v153, %v2533
    %2568 = vrot.lane.b32.xlu0 %v2525, 120
    %v2569 = vpop.permute.xlu0 %2568
    %v2571 = vmul.f32 %v156, %v2569
    %v2572 = vsub.f32 %v2566, %v2571
    %v2573 = vmul.f32 %v2550, %v2572
    %v2574 = vsel %vm331, %v2573, 0.0
    %2575 = vadd.xlane.f32.xlu0 %v2574
    %v2576 = vpop.xlane.xlu0 %2575
    %v2577 = vadd.f32 %v2576, 1.0
    %v2578 = vrcp.pop %v2577
    %v2579 = vmul.f32 %v2577, %v2578
    %v2580 = vsub.f32 1.0, %v2579
    %v2581 = vmul.f32 %v2578, %v2580
    %v2582 = vadd.f32 %v2578, %v2581
    %vm2583 = vweird.f32 %v2577
    %vm2584 = vweird.f32 %v2578
    %vm2585 = vmor %vm2583, %vm2584
    %v2586 = vsel %vm2585, %v2578, %v2582
    %v2587 = vand.u32 2147483647, %v2577
    %vm2588 = vcmp.eq.f32.partialorder %v2587, 8.507059e+37
    %v2589 = vand.u32 %v2577, 2147483648
    %v2590 = vor.u32 1.1754944e-38, %v2589
    %v2591 = vsel %vm2588, %v2590, %v2586
    %v2592 = vmul.f32 1.0, %v2591
    %2593 = vst.msk [vmem:[#allocation2] sm:$0xff] %vm167, %v1424
    %v2595 = vsel %vm331, %v2573, 0
    %2597 = vmatpush.msra.mxu0 0.0
    %2598 = vmatpush.msra.mxu0 0.0
    %2599 = vmatpush.msra.mxu0 0.0
    %2600 = vmatpush.msra.mxu0 0.0
    %2601 = vmatpush.msra.mxu0 0.0
    %2602 = vmatpush.msra.mxu0 0.0
    %2603 = vmatpush.msra.mxu0 0.0
    %2604 = vmatpush.msra.mxu0 0.0
    %2605 = vmatpush.msra.mxu0 0.0
    %2606 = vmatpush.msra.mxu0 0.0
    %2607 = vmatpush.msra.mxu0 0.0
    %2608 = vmatpush.msra.mxu0 0.0
    %2609 = vmatpush.msra.mxu0 0.0
    %2610 = vmatpush.msra.mxu0 0.0
    %2611 = vmatpush.msra.mxu0 0.0
    %2612 = vmatpush.msra.mxu0 %v1424
    %2613 = vmatmul.f32.gmra.mxu0 %v2595
    %v2614 = vpop.f32.mrf.mxu0
    %v2615 = vadd.f32 0.0, %v2614
    %2616 = vdwg.mxu0
    %2617 = vst.msk [vmem:[#allocation3] sm:$0xff] %vm167, %v2615
    %v2618 = vld [vmem:[#allocation3] sm:$0xff]
    %v2619 = vld [vmem:[#allocation2] sm:$0xff]
    %v2620 = vadd.f32 %v2618, %v2619
    %v2621 = vld [vmem:[%s43] sm:$0xff]
    %v2622 = vld [vmem:[%s43 + $0x8] sm:$0xff]
    %v2623 = vld [vmem:[%s43 + $0x10] sm:$0xff]
    %v2624 = vld [vmem:[%s43 + $0x18] sm:$0xff]
    %v2625 = vld [vmem:[%s51] sm:$0x1]
    %v2626 = vmul.f32 %v2625, 2.0
    %v2628 = vperm.slane %v2626, 0
    %v2631 = vsel %vm167, %v2620, 0
    %2633 = vmatpush.msra.mxu0 0.0
    %2634 = vmatpush.msra.mxu0 0.0
    %2635 = vmatpush.msra.mxu0 0.0
    %2636 = vmatpush.msra.mxu0 0.0
    %2637 = vmatpush.msra.mxu0 0.0
    %2638 = vmatpush.msra.mxu0 0.0
    %2639 = vmatpush.msra.mxu0 0.0
    %2640 = vmatpush.msra.mxu0 0.0
    %2641 = vmatpush.msra.mxu0 0.0
    %2642 = vmatpush.msra.mxu0 0.0
    %2643 = vmatpush.msra.mxu0 0.0
    %2644 = vmatpush.msra.mxu0 0.0
    %2645 = vmatpush.msra.mxu0 %v2624
    %2646 = vmatpush.msra.mxu0 %v2623
    %2647 = vmatpush.msra.mxu0 %v2622
    %2648 = vmatpush.msra.mxu0 %v2621
    %2649 = vmatmul.f32.gmra.mxu0 %v2631
    %v2650 = vpop.f32.mrf.mxu0
    %v2651 = vadd.f32 %v2628, %v2650
    %2652 = vdwg.mxu0
    %v2653 = vmul.f32 %v2651, %v2592
    %v2654 = vmax.f32 %v2653, 0.0
    %2656 = vrot.lane.b32.xlu0 %v2654, 32
    %v2657 = vpop.permute.xlu0 %2656
    %2659 = vst.msk [vmem:[#allocation2] sm:$0xff] %vm1969, %v2657
    %2660 = vmatpush.msra.mxu0 0.0
    %2661 = vmatpush.msra.mxu0 0.0
    %2662 = vmatpush.msra.mxu0 0.0
    %2663 = vmatpush.msra.mxu0 0.0
    %2664 = vmatpush.msra.mxu0 0.0
    %2665 = vmatpush.msra.mxu0 0.0
    %2666 = vmatpush.msra.mxu0 0.0
    %2667 = vmatpush.msra.mxu0 0.0
    %2668 = vmatpush.msra.mxu0 0.0
    %2669 = vmatpush.msra.mxu0 0.0
    %2670 = vmatpush.msra.mxu0 0.0
    %2671 = vmatpush.msra.mxu0 0.0
    %2672 = vmatpush.msra.mxu0 0.0
    %2673 = vmatpush.msra.mxu0 0.0
    %2674 = vmatpush.msra.mxu0 0.0
    %2675 = vmatpush.msra.mxu0 %v2654
    %2676 = vmatmul.f32.gmra.mxu0 %v2595
    %v2677 = vpop.f32.mrf.mxu0
    %v2678 = vadd.f32 0.0, %v2677
    %2679 = vdwg.mxu0
    %2681 = vrot.lane.b32.xlu0 %v2678, 32
    %v2682 = vpop.permute.xlu0 %2681
    %2684 = vst.msk [vmem:[#allocation3] sm:$0xff] %vm1969, %v2682
    %v2685 = vld [vmem:[#allocation3] sm:$0xff]
    %v2686 = vld [vmem:[#allocation2] sm:$0xff]
    %v2687 = vadd.f32 %v2685, %v2686
    %v2688 = vld [vmem:[%s45] sm:$0xff]
    %v2689 = vld [vmem:[%s45 + $0x8] sm:$0xff]
    %v2690 = vld [vmem:[%s45 + $0x10] sm:$0xff]
    %v2691 = vld [vmem:[%s45 + $0x18] sm:$0xff]
    %v2692 = vld [vmem:[%s45 + $0x20] sm:$0xff]
    %v2693 = vld [vmem:[%s53] sm:$0x1]
    %v2694 = vmul.f32 %v2693, 2.0
    %v2696 = vperm.slane %v2694, 0
    %v2699 = vsel %vm2009, %v2687, 0
    %2701 = vmatpush.msra.mxu0 0.0
    %2702 = vmatpush.msra.mxu0 0.0
    %2703 = vmatpush.msra.mxu0 0.0
    %2704 = vmatpush.msra.mxu0 0.0
    %2705 = vmatpush.msra.mxu0 0.0
    %2706 = vmatpush.msra.mxu0 0.0
    %2707 = vmatpush.msra.mxu0 0.0
    %2708 = vmatpush.msra.mxu0 0.0
    %2709 = vmatpush.msra.mxu0 0.0
    %2710 = vmatpush.msra.mxu0 0.0
    %2711 = vmatpush.msra.mxu0 0.0
    %2712 = vmatpush.msra.mxu0 %v2692
    %2713 = vmatpush.msra.mxu0 %v2691
    %2714 = vmatpush.msra.mxu0 %v2690
    %2715 = vmatpush.msra.mxu0 %v2689
    %2716 = vmatpush.msra.mxu0 %v2688
    %2717 = vmatmul.f32.gmra.mxu0 %v2699
    %v2718 = vpop.f32.mrf.mxu0
    %v2719 = vadd.f32 %v2696, %v2718
    %2720 = vdwg.mxu0
    %v2721 = vmul.f32 %v2719, %v2592
    %v2722 = vmax.f32 %v2721, 0.0
    %2724 = vrot.lane.b32.xlu0 %v2722, 40
    %v2725 = vpop.permute.xlu0 %2724
    %2727 = vst.msk [vmem:[#allocation2] sm:$0xff] %vm2039, %v2725
    %2728 = vmatpush.msra.mxu0 0.0
    %2729 = vmatpush.msra.mxu0 0.0
    %2730 = vmatpush.msra.mxu0 0.0
    %2731 = vmatpush.msra.mxu0 0.0
    %2732 = vmatpush.msra.mxu0 0.0
    %2733 = vmatpush.msra.mxu0 0.0
    %2734 = vmatpush.msra.mxu0 0.0
    %2735 = vmatpush.msra.mxu0 0.0
    %2736 = vmatpush.msra.mxu0 0.0
    %2737 = vmatpush.msra.mxu0 0.0
    %2738 = vmatpush.msra.mxu0 0.0
    %2739 = vmatpush.msra.mxu0 0.0
    %2740 = vmatpush.msra.mxu0 0.0
    %2741 = vmatpush.msra.mxu0 0.0
    %2742 = vmatpush.msra.mxu0 0.0
    %2743 = vmatpush.msra.mxu0 %v2722
    %2744 = vmatmul.f32.gmra.mxu0 %v2595
    %v2745 = vpop.f32.mrf.mxu0
    %v2746 = vadd.f32 0.0, %v2745
    %2747 = vdwg.mxu0
    %2749 = vrot.lane.b32.xlu0 %v2746, 40
    %v2750 = vpop.permute.xlu0 %2749
    %2752 = vst.msk [vmem:[#allocation3] sm:$0xff] %vm2039, %v2750
    %v2753 = vld [vmem:[#allocation3] sm:$0xff]
    %v2754 = vld [vmem:[#allocation2] sm:$0xff]
    %v2755 = vadd.f32 %v2753, %v2754
    %v2756 = vld [vmem:[%s47] sm:$0xff]
    %v2757 = vld [vmem:[%s47 + $0x8] sm:$0xff]
    %v2758 = vld [vmem:[%s47 + $0x10] sm:$0xff]
    %v2759 = vld [vmem:[%s47 + $0x18] sm:$0xff]
    %v2760 = vld [vmem:[%s47 + $0x20] sm:$0xff]
    %v2761 = vld [vmem:[%s47 + $0x28] sm:$0xff]
    %v2762 = vld [vmem:[%s55] sm:$0x1]
    %v2763 = vmul.f32 %v2762, 2.0
    %v2765 = vperm.slane %v2763, 0
    %v2768 = vsel %vm810, %v2755, 0
    %2770 = vmatpush.msra.mxu0 0.0
    %2771 = vmatpush.msra.mxu0 0.0
    %2772 = vmatpush.msra.mxu0 0.0
    %2773 = vmatpush.msra.mxu0 0.0
    %2774 = vmatpush.msra.mxu0 0.0
    %2775 = vmatpush.msra.mxu0 0.0
    %2776 = vmatpush.msra.mxu0 0.0
    %2777 = vmatpush.msra.mxu0 0.0
    %2778 = vmatpush.msra.mxu0 0.0
    %2779 = vmatpush.msra.mxu0 0.0
    %2780 = vmatpush.msra.mxu0 %v2761
    %2781 = vmatpush.msra.mxu0 %v2760
    %2782 = vmatpush.msra.mxu0 %v2759
    %2783 = vmatpush.msra.mxu0 %v2758
    %2784 = vmatpush.msra.mxu0 %v2757
    %2785 = vmatpush.msra.mxu0 %v2756
    %2786 = vmatmul.f32.gmra.mxu0 %v2768
    %v2787 = vpop.f32.mrf.mxu0
    %v2788 = vadd.f32 %v2765, %v2787
    %2789 = vdwg.mxu0
    %v2790 = vmul.f32 %v2788, %v2592
    %v2791 = vmax.f32 %v2790, 0.0
    %2793 = vrot.lane.b32.xlu0 %v2791, 48
    %v2794 = vpop.permute.xlu0 %2793
    %2796 = vst.msk [vmem:[#allocation2] sm:$0xff] %vm2109, %v2794
    %2797 = vmatpush.msra.mxu0 0.0
    %2798 = vmatpush.msra.mxu0 0.0
    %2799 = vmatpush.msra.mxu0 0.0
    %2800 = vmatpush.msra.mxu0 0.0
    %2801 = vmatpush.msra.mxu0 0.0
    %2802 = vmatpush.msra.mxu0 0.0
    %2803 = vmatpush.msra.mxu0 0.0
    %2804 = vmatpush.msra.mxu0 0.0
    %2805 = vmatpush.msra.mxu0 0.0
    %2806 = vmatpush.msra.mxu0 0.0
    %2807 = vmatpush.msra.mxu0 0.0
    %2808 = vmatpush.msra.mxu0 0.0
    %2809 = vmatpush.msra.mxu0 0.0
    %2810 = vmatpush.msra.mxu0 0.0
    %2811 = vmatpush.msra.mxu0 0.0
    %2812 = vmatpush.msra.mxu0 %v2791
    %2813 = vmatmul.f32.gmra.mxu0 %v2595
    %v2814 = vpop.f32.mrf.mxu0
    %v2815 = vadd.f32 0.0, %v2814
    %2816 = vdwg.mxu0
    %2818 = vrot.lane.b32.xlu0 %v2815, 48
    %v2819 = vpop.permute.xlu0 %2818
    %2821 = vst.msk [vmem:[#allocation3] sm:$0xff] %vm2109, %v2819
    %v2822 = vld [vmem:[#allocation3] sm:$0xff]
    %v2823 = vld [vmem:[#allocation2] sm:$0xff]
    %v2824 = vadd.f32 %v2822, %v2823
    %v2825 = vld [vmem:[%s49] sm:$0xff]
    %v2826 = vld [vmem:[%s49 + $0x8] sm:$0xff]
    %v2827 = vld [vmem:[%s49 + $0x10] sm:$0xff]
    %v2828 = vld [vmem:[%s49 + $0x18] sm:$0xff]
    %v2829 = vld [vmem:[%s49 + $0x20] sm:$0xff]
    %v2830 = vld [vmem:[%s49 + $0x28] sm:$0xff]
    %v2831 = vld [vmem:[%s49 + $0x30] sm:$0xff]
    %v2832 = vld [vmem:[%s57] sm:$0x1]
    %v2833 = vmul.f32 %v2832, 2.0
    %v2835 = vperm.slane %v2833, 0
    %v2838 = vsel %vm2151, %v2824, 0
    %2840 = vmatpush.msra.mxu0 0.0
    %2841 = vmatpush.msra.mxu0 0.0
    %2842 = vmatpush.msra.mxu0 0.0
    %2843 = vmatpush.msra.mxu0 0.0
    %2844 = vmatpush.msra.mxu0 0.0
    %2845 = vmatpush.msra.mxu0 0.0
    %2846 = vmatpush.msra.mxu0 0.0
    %2847 = vmatpush.msra.mxu0 0.0
    %2848 = vmatpush.msra.mxu0 0.0
    %2849 = vmatpush.msra.mxu0 %v2831
    %2850 = vmatpush.msra.mxu0 %v2830
    %2851 = vmatpush.msra.mxu0 %v2829
    %2852 = vmatpush.msra.mxu0 %v2828
    %2853 = vmatpush.msra.mxu0 %v2827
    %2854 = vmatpush.msra.mxu0 %v2826
    %2855 = vmatpush.msra.mxu0 %v2825
    %2856 = vmatmul.f32.gmra.mxu0 %v2838
    %v2857 = vpop.f32.mrf.mxu0
    %v2858 = vadd.f32 %v2835, %v2857
    %2859 = vdwg.mxu0
    %v2860 = vmul.f32 %v2858, %v2592
    %v2861 = vmax.f32 %v2860, 0.0
    %2863 = vrot.lane.b32.xlu0 %v2861, 56
    %v2864 = vpop.permute.xlu0 %2863
    %2866 = vst.msk [vmem:[#allocation2] sm:$0xff] %vm2181, %v2864
    %v2867 = vld [vmem:[#allocation2] sm:$0xff]
    %2868 = vrot.lane.b32.xlu0 %v1424, 32
    %v2869 = vpop.permute.xlu0 %2868
    %v2871 = vadd.f32 %v2867, %v2869
    %v2872 = vld [vmem:[%s59] sm:$0xff]
    %v2873 = vld [vmem:[%s59 + $0x8] sm:$0xff]
    %v2874 = vld [vmem:[%s59 + $0x10] sm:$0xff]
    %v2875 = vld [vmem:[%s59 + $0x18] sm:$0xff]
    %v2876 = vld [vmem:[%s61] sm:$0x1]
    %v2878 = vperm.slane %v2876, 0
    %2881 = vrot.lane.b32.xlu0 %v2871, 96
    %v2882 = vpop.permute.xlu0 %2881
    %v2883 = vsel %vm167, %v2882, 0
    %2885 = vmatpush.msra.mxu0 0.0
    %2886 = vmatpush.msra.mxu0 0.0
    %2887 = vmatpush.msra.mxu0 0.0
    %2888 = vmatpush.msra.mxu0 0.0
    %2889 = vmatpush.msra.mxu0 0.0
    %2890 = vmatpush.msra.mxu0 0.0
    %2891 = vmatpush.msra.mxu0 0.0
    %2892 = vmatpush.msra.mxu0 0.0
    %2893 = vmatpush.msra.mxu0 0.0
    %2894 = vmatpush.msra.mxu0 0.0
    %2895 = vmatpush.msra.mxu0 0.0
    %2896 = vmatpush.msra.mxu0 0.0
    %2897 = vmatpush.msra.mxu0 %v2875
    %2898 = vmatpush.msra.mxu0 %v2874
    %2899 = vmatpush.msra.mxu0 %v2873
    %2900 = vmatpush.msra.mxu0 %v2872
    %2901 = vmatmul.f32.gmra.mxu0 %v2883
    %v2902 = vpop.f32.mrf.mxu0
    %v2903 = vadd.f32 %v2878, %v2902
    %2904 = vdwg.mxu0
    %2907 = vrot.lane.b32.xlu0 %v2219, 32
    %v2908 = vpop.permute.xlu0 %2907
    %2909 = vrot.lane.b32.xlu0 %v2903, 32
    %v2910 = vpop.permute.xlu0 %2909
    %v2913 = vsel %vm167, %v878, %v2908
    %v2914 = vsel %vm167, %v1424, %v2910
    %v2915 = vld [vmem:[%s63] sm:$0xff]
    %v2916 = vld [vmem:[%s63 + $0x8] sm:$0xff]
    %v2917 = vld [vmem:[%s63 + $0x10] sm:$0xff]
    %v2918 = vld [vmem:[%s63 + $0x18] sm:$0xff]
    %v2919 = vld [vmem:[%s63 + $0x20] sm:$0xff]
    %v2920 = vld [vmem:[%s63 + $0x28] sm:$0xff]
    %v2921 = vld [vmem:[%s63 + $0x30] sm:$0xff]
    %v2922 = vld [vmem:[%s63 + $0x38] sm:$0xff]
    %v2923 = vld [vmem:[%s65] sm:$0x1]
    %v2925 = vperm.slane %v2923, 0
    %vm2927 = vcmask 523264
    %v2929 = vsel %vm2927, %v2913, 0
    %v2932 = vsel %vm2927, %v2914, 0
    %2934 = vmatpush.msra.mxu0 0.0
    %2935 = vmatpush.msra.mxu0 0.0
    %2936 = vmatpush.msra.mxu0 0.0
    %2937 = vmatpush.msra.mxu0 0.0
    %2938 = vmatpush.msra.mxu0 0.0
    %2939 = vmatpush.msra.mxu0 0.0
    %2940 = vmatpush.msra.mxu0 0.0
    %2941 = vmatpush.msra.mxu0 0.0
    %2942 = vmatpush.msra.mxu0 %v2922
    %2943 = vmatpush.msra.mxu0 %v2921
    %2944 = vmatpush.msra.mxu0 %v2920
    %2945 = vmatpush.msra.mxu0 %v2919
    %2946 = vmatpush.msra.mxu0 %v2918
    %2947 = vmatpush.msra.mxu0 %v2917
    %2948 = vmatpush.msra.mxu0 %v2916
    %2949 = vmatpush.msra.mxu0 %v2915
    %2950 = vmatmul.f32.gmra.mxu0 %v2929
    %v2951 = vpop.f32.mrf.mxu0
    %v2952 = vadd.f32 %v2925, %v2951
    %2953 = vmatmul.f32.gmra.mxu0 %v2932
    %v2954 = vpop.f32.mrf.mxu0
    %v2955 = vadd.f32 %v2925, %v2954
    %2956 = vdwg.mxu0
    %2957 = vst.msk [vmem:[#allocation6] sm:$0xff] %vm167, %v2952
    %2958 = vst.msk [vmem:[#allocation6 + $0x8] sm:$0xff] %vm167, %v2955
    // Predicated region
    $region134: #{tpu_custom_call.1} parent=1 // pred_check
      _
    $region135: #{tpu_custom_call.1} parent=1 // pred_check_branch
      %2960 = sbr.rel (0) target = $region137
    $region136: #{tpu_custom_call.1} parent=1 // pred_region
      %2962 = vsyncadd [#allocation7], 0
      %s2963 = sshll.u32 [#allocation6], 4
      %s2964 = int_to_ptr.vmem [resolvable:$true] %s2963
      %s2965 = sshll.u32 %s67, 4
      %s2966 = int_to_ptr.hbm [resolvable:$true] %s2965
      %2971 = dma.vmem_to_hbm [thread:$0]  %s2964, 256, %s2966, [#allocation7], 128, 128, 8
    $region137: #{tpu_custom_call.1} parent=1 // pred_fallthru
      _
    // Predicated region
    $region138: #{tpu_custom_call.1} parent=1 // pred_check
      _
    $region139: #{tpu_custom_call.1} parent=1 // pred_check_branch
      %2973 = sbr.rel (0) target = $region141
    $region140: #{tpu_custom_call.1} parent=1 // pred_region
      %2975 = dma.done [#allocation7], 256
    $region141: #{tpu_custom_call.1} parent=1 // pred_fallthru
      _
    %2976 = vsyncpa [#allocation7], 1

</llo_original>
